<compile_context>
chip_gen: v7x
topology: tpu7x:2x2x1
jax: 0.10.0
libtpu: 0.0.40
codegen_flags: <defaults>
</compile_context>

<pallas_src>
import math

import jax
import jax.numpy as jnp
from jax.experimental import pallas as pl
from jax.experimental.pallas import tpu as pltpu

# ----------------------------- model config (small, synthetic) ---------------
B, QPV, SEQ = 2, 2, 8
HIDDEN, HEADS, LAYERS, FFN, VOCAB, MAX_POS = 32, 2, 2, 64, 64, 32
HEAD_DIM = HIDDEN // HEADS
BN = B * QPV
M = BN * SEQ                       # flattened token rows = 32
LN_EPS = 1e-12
NEG_INF = -1e9


# ----------------------------- in-kernel helpers -----------------------------
def _layernorm(x, g, b):
    mu = jnp.mean(x, axis=-1, keepdims=True)
    var = jnp.mean((x - mu) ** 2, axis=-1, keepdims=True)
    return (x - mu) * jax.lax.rsqrt(var + LN_EPS) * g + b


def _gelu(x):
    # TODO(synk): BERT uses the exact erf-GELU; tanh approximation used for clean EUP lowering.
    c = math.sqrt(2.0 / math.pi)
    return 0.5 * x * (1.0 + jnp.tanh(c * (x + 0.044715 * x * x * x)))


# ----------------------------- fused Pallas kernel ---------------------------
def bert_encoder_kernel(emb_ref, mask_ref,
                        emb_g_ref, emb_b_ref,
                        wq_ref, bq_ref, wk_ref, bk_ref, wv_ref, bv_ref,
                        wo_ref, bo_ref, ln1g_ref, ln1b_ref,
                        w1_ref, b1_ref, w2_ref, b2_ref,
                        ln2g_ref, ln2b_ref,
                        o_ref):
    """Embedding layernorm + LAYERS post-LN BERT layers, all BN rows at once.

    Activations: lane-dense (M, HIDDEN) f32 slab (M = BN*SEQ).
    Weights: stacked over layers (and heads for QKV/O), bf16 matmul operands.
    """
    mask_add = mask_ref[...]                                         # (BN, 1, S) additive
    x = _layernorm(emb_ref[...], emb_g_ref[...], emb_b_ref[...])     # (M, H) f32

    for l in range(LAYERS):                       # static unroll; weights stay VMEM-resident
        x_bf = x.astype(jnp.bfloat16)
        attn = jnp.zeros((M, HIDDEN), jnp.float32)
        for h in range(HEADS):                    # static unroll over heads (per-head weights)
            # projections (1/sqrt(d) pre-folded into wq/bq)
            q = jnp.dot(x_bf, wq_ref[l, h], preferred_element_type=jnp.float32) + bq_ref[l, h]
            k = jnp.dot(x_bf, wk_ref[l, h], preferred_element_type=jnp.float32) + bk_ref[l, h]
            v = jnp.dot(x_bf, wv_ref[l, h], preferred_element_type=jnp.float32) + bv_ref[l, h]
            # (M, HD) -> (BN, S, HD): major-dim split only (layout-friendly)
            q3 = q.reshape(BN, SEQ, HEAD_DIM).astype(jnp.bfloat16)
            k3 = k.reshape(BN, SEQ, HEAD_DIM).astype(jnp.bfloat16)
            v3 = v.reshape(BN, SEQ, HEAD_DIM).astype(jnp.bfloat16)

            s = jnp.einsum('bqd,bkd->bqk', q3, k3,
                           preferred_element_type=jnp.float32)        # (BN, S, S)
            s = s + mask_add                                          # broadcast over queries
            s = s - jnp.max(s, axis=-1, keepdims=True)
            p = jnp.exp(s)
            p = p * pl.reciprocal(jnp.sum(p, axis=-1, keepdims=True), approx=True)

            ctx = jnp.einsum('bqk,bkd->bqd', p.astype(jnp.bfloat16), v3,
                             preferred_element_type=jnp.float32)      # (BN, S, HD)
            ctx2 = ctx.reshape(M, HEAD_DIM).astype(jnp.bfloat16)
            # summed per-head output projections == concat(heads) @ Wo
            attn = attn + jnp.dot(ctx2, wo_ref[l, h], preferred_element_type=jnp.float32)

        attn = attn + bo_ref[l]
        h1 = _layernorm(x + attn, ln1g_ref[l], ln1b_ref[l])

        ff = jnp.dot(h1.astype(jnp.bfloat16), w1_ref[l],
                     preferred_element_type=jnp.float32) + b1_ref[l]
        ff = _gelu(ff)
        ff = jnp.dot(ff.astype(jnp.bfloat16), w2_ref[l],
                     preferred_element_type=jnp.float32) + b2_ref[l]
        x = _layernorm(h1 + ff, ln2g_ref[l], ln2b_ref[l])

    o_ref[...] = x.astype(o_ref.dtype)


def bert_forward_fused(emb2d, mask_add, sp):
    """Single pallas_call (no grid): everything fits VMEM at these sizes."""
    operands = (emb2d, mask_add, sp["emb_g"], sp["emb_b"],
                sp["wq"], sp["bq"], sp["wk"], sp["bk"], sp["wv"], sp["bv"],
                sp["wo"], sp["bo"], sp["ln1g"], sp["ln1b"],
                sp["w1"], sp["b1"], sp["w2"], sp["b2"], sp["ln2g"], sp["ln2b"])
    vmem = lambda: pl.BlockSpec(memory_space=pltpu.MemorySpace.VMEM)
    return pl.pallas_call(
        bert_encoder_kernel,
        out_shape=jax.ShapeDtypeStruct((M, HIDDEN), jnp.float32),
        in_specs=[vmem() for _ in operands],
        out_specs=vmem(),
    )(*operands)


# ----------------------------- parameter init (deterministic) ----------------
def init_params(key):
    def nrm(k, shape, scale=0.02):
        return scale * jax.random.normal(k, shape, dtype=jnp.float32)

    keys = jax.random.split(key, 8 + LAYERS)
    params = {
        "word_emb": nrm(keys[0], (VOCAB, HIDDEN)),
        "pos_emb": nrm(keys[1], (MAX_POS, HIDDEN)),
        "type_emb": nrm(keys[2], (2, HIDDEN)),
        "emb_ln_g": jnp.ones((1, HIDDEN), jnp.float32),
        "emb_ln_b": jnp.zeros((1, HIDDEN), jnp.float32),
        "layers": [],
    }
    for li in range(LAYERS):
        lk = jax.random.split(keys[8 + li], 6)
        params["layers"].append({
            "wq": nrm(lk[0], (HIDDEN, HIDDEN)), "bq": jnp.zeros((1, HIDDEN), jnp.float32),
            "wk": nrm(lk[1], (HIDDEN, HIDDEN)), "bk": jnp.zeros((1, HIDDEN), jnp.float32),
            "wv": nrm(lk[2], (HIDDEN, HIDDEN)), "bv": jnp.zeros((1, HIDDEN), jnp.float32),
            "wo": nrm(lk[3], (HIDDEN, HIDDEN)), "bo": jnp.zeros((1, HIDDEN), jnp.float32),
            "ln1g": jnp.ones((1, HIDDEN), jnp.float32), "ln1b": jnp.zeros((1, HIDDEN), jnp.float32),
            "w1": nrm(lk[4], (HIDDEN, FFN)), "b1": jnp.zeros((1, FFN), jnp.float32),
            "w2": nrm(lk[5], (FFN, HIDDEN)), "b2": jnp.zeros((1, HIDDEN), jnp.float32),
            "ln2g": jnp.ones((1, HIDDEN), jnp.float32), "ln2b": jnp.zeros((1, HIDDEN), jnp.float32),
        })
    return params


def prepare_stacked_params(params):
    """Stack per-layer weights along a layer axis, split QKV / output projection per
    head, fold 1/sqrt(head_dim) into Wq/bq, and cast matmul weights to bf16."""
    scale = 1.0 / math.sqrt(HEAD_DIM)

    def per_head_in(w):        # (H, H) -> (HEADS, H, HD)
        return jnp.transpose(w.reshape(HIDDEN, HEADS, HEAD_DIM), (1, 0, 2))

    def per_head_bias(bvec):   # (1, H) -> (HEADS, 1, HD)
        return jnp.transpose(bvec.reshape(1, HEADS, HEAD_DIM), (1, 0, 2))

    L = params["layers"]
    return {
        "emb_g": params["emb_ln_g"], "emb_b": params["emb_ln_b"],
        "wq": jnp.stack([per_head_in(lp["wq"]) * scale for lp in L]).astype(jnp.bfloat16),
        "bq": jnp.stack([per_head_bias(lp["bq"]) * scale for lp in L]),
        "wk": jnp.stack([per_head_in(lp["wk"]) for lp in L]).astype(jnp.bfloat16),
        "bk": jnp.stack([per_head_bias(lp["bk"]) for lp in L]),
        "wv": jnp.stack([per_head_in(lp["wv"]) for lp in L]).astype(jnp.bfloat16),
        "bv": jnp.stack([per_head_bias(lp["bv"]) for lp in L]),
        "wo": jnp.stack([lp["wo"].reshape(HEADS, HEAD_DIM, HIDDEN) for lp in L]).astype(jnp.bfloat16),
        "bo": jnp.stack([lp["bo"] for lp in L]),
        "ln1g": jnp.stack([lp["ln1g"] for lp in L]),
        "ln1b": jnp.stack([lp["ln1b"] for lp in L]),
        "w1": jnp.stack([lp["w1"] for lp in L]).astype(jnp.bfloat16),
        "b1": jnp.stack([lp["b1"] for lp in L]),
        "w2": jnp.stack([lp["w2"] for lp in L]).astype(jnp.bfloat16),
        "b2": jnp.stack([lp["b2"] for lp in L]),
        "ln2g": jnp.stack([lp["ln2g"] for lp in L]),
        "ln2b": jnp.stack([lp["ln2b"] for lp in L]),
    }


# ----------------------------- TextEncoder.forward ---------------------------
@jax.jit
def text_encoder_forward(params, stacked, input_ids, attention_mask):
    """
    Args:
        input_ids:      [B, QPV, SEQ] int32
        attention_mask: [B, QPV, SEQ] int32 (1 = token, 0 = pad)
    Returns:
        output:    [B, QPV, SEQ, HIDDEN]  (BERT last_hidden_state, unflattened)
        attn_mask: [B, QPV, SEQ]
    """
    b, qpv, s = input_ids.shape
    bn = b * qpv
    ids_flat = input_ids.reshape(bn, s)                       # flatten(0, 1)
    mask_flat = attention_mask.reshape(bn, s)

    # Embedding gather (plain-JAX glue): word + position + token_type(=0)
    emb = (jnp.take(params["word_emb"], ids_flat, axis=0)
           + params["pos_emb"][None, :s, :]
           + params["type_emb"][0][None, None, :])
    emb2d = emb.reshape(bn * s, HIDDEN)                       # lane-dense activation slab

    # Extended additive attention mask: 0 where attended, -1e9 where padded.
    mask_add = ((1.0 - mask_flat.astype(jnp.float32)) * NEG_INF).reshape(bn, 1, s)

    h2d = bert_forward_fused(emb2d, mask_add, stacked)        # one fused kernel

    output = h2d.reshape(b, qpv, s, HIDDEN)                   # unflatten(0, (B, QPV))
    attn_mask = mask_flat.reshape(b, qpv, s)
    return output, attn_mask


# ----------------------------- main -------------------------------------------
if __name__ == "__main__":
    key = jax.random.PRNGKey(0)
    pkey, ikey = jax.random.split(key)
    params = init_params(pkey)
    stacked = prepare_stacked_params(params)

    input_ids = jax.random.randint(ikey, (B, QPV, SEQ), 0, VOCAB, dtype=jnp.int32)
    # simple right-padding pattern: first 6 tokens valid, last 2 padded
    attention_mask = jnp.concatenate(
        [jnp.ones((B, QPV, SEQ - 2), jnp.int32), jnp.zeros((B, QPV, 2), jnp.int32)],
        axis=-1)

    output, attn_mask = text_encoder_forward(params, stacked, input_ids, attention_mask)
    jax.block_until_ready((output, attn_mask))

    assert output.shape == (B, QPV, SEQ, HIDDEN)
    assert attn_mask.shape == (B, QPV, SEQ)
    print("KERNEL_OK")
</pallas_src>

<mosaic_0001>
module attributes {stable_mosaic.version = 11 : i64} {
  func.func @bert_encoder_kernel(%arg0: memref<32x32xf32, #tpu.memory_space<vmem>>, %arg1: memref<4x1x8xf32, #tpu.memory_space<vmem>>, %arg2: memref<1x32xf32, #tpu.memory_space<vmem>>, %arg3: memref<1x32xf32, #tpu.memory_space<vmem>>, %arg4: memref<2x2x32x16xbf16, #tpu.memory_space<vmem>>, %arg5: memref<2x2x1x16xf32, #tpu.memory_space<vmem>>, %arg6: memref<2x2x32x16xbf16, #tpu.memory_space<vmem>>, %arg7: memref<2x2x1x16xf32, #tpu.memory_space<vmem>>, %arg8: memref<2x2x32x16xbf16, #tpu.memory_space<vmem>>, %arg9: memref<2x2x1x16xf32, #tpu.memory_space<vmem>>, %arg10: memref<2x2x16x32xbf16, #tpu.memory_space<vmem>>, %arg11: memref<2x1x32xf32, #tpu.memory_space<vmem>>, %arg12: memref<2x1x32xf32, #tpu.memory_space<vmem>>, %arg13: memref<2x1x32xf32, #tpu.memory_space<vmem>>, %arg14: memref<2x32x64xbf16, #tpu.memory_space<vmem>>, %arg15: memref<2x1x64xf32, #tpu.memory_space<vmem>>, %arg16: memref<2x64x32xbf16, #tpu.memory_space<vmem>>, %arg17: memref<2x1x32xf32, #tpu.memory_space<vmem>>, %arg18: memref<2x1x32xf32, #tpu.memory_space<vmem>>, %arg19: memref<2x1x32xf32, #tpu.memory_space<vmem>>, %arg20: memref<32x32xf32, #tpu.memory_space<vmem>>) attributes {dimension_semantics = [], scalar_prefetch = 0 : i64, scratch_operands = 0 : i64, tpu.core_type = #tpu.core_type<tc>} {
    %c0 = arith.constant 0 : index
    %c0_0 = arith.constant 0 : index
    %c0_1 = arith.constant 0 : index
    %0 = vector.load %arg1[%c0, %c0_0, %c0_1] : memref<4x1x8xf32, #tpu.memory_space<vmem>>, vector<4x1x8xf32>
    %c0_2 = arith.constant 0 : index
    %c0_3 = arith.constant 0 : index
    %1 = vector.load %arg0[%c0_2, %c0_3] : memref<32x32xf32, #tpu.memory_space<vmem>>, vector<32x32xf32>
    %c0_4 = arith.constant 0 : index
    %c0_5 = arith.constant 0 : index
    %2 = vector.load %arg2[%c0_4, %c0_5] : memref<1x32xf32, #tpu.memory_space<vmem>>, vector<1x32xf32>
    %c0_6 = arith.constant 0 : index
    %c0_7 = arith.constant 0 : index
    %3 = vector.load %arg3[%c0_6, %c0_7] : memref<1x32xf32, #tpu.memory_space<vmem>>, vector<1x32xf32>
    %cst = arith.constant dense<0.000000e+00> : vector<32xf32>
    %4 = vector.multi_reduction <add>, %1, %cst [1] : vector<32x32xf32> to vector<32xf32>
    %5 = vector.shape_cast %4 : vector<32xf32> to vector<32x1xf32>
    %cst_8 = arith.constant 3.200000e+01 : f32
    %6 = vector.broadcast %cst_8 : f32 to vector<32x1xf32>
    %7 = arith.divf %5, %6 : vector<32x1xf32>
    %8 = vector.broadcast %7 : vector<32x1xf32> to vector<32x32xf32>
    %9 = arith.subf %1, %8 : vector<32x32xf32>
    %10 = arith.mulf %9, %9 : vector<32x32xf32>
    %cst_9 = arith.constant dense<0.000000e+00> : vector<32xf32>
    %11 = vector.multi_reduction <add>, %10, %cst_9 [1] : vector<32x32xf32> to vector<32xf32>
    %12 = vector.shape_cast %11 : vector<32xf32> to vector<32x1xf32>
    %cst_10 = arith.constant 3.200000e+01 : f32
    %13 = vector.broadcast %cst_10 : f32 to vector<32x1xf32>
    %14 = arith.divf %12, %13 : vector<32x1xf32>
    %15 = vector.broadcast %7 : vector<32x1xf32> to vector<32x32xf32>
    %16 = arith.subf %1, %15 : vector<32x32xf32>
    %cst_11 = arith.constant 9.99999996E-13 : f32
    %17 = vector.broadcast %cst_11 : f32 to vector<32x1xf32>
    %18 = arith.addf %14, %17 : vector<32x1xf32>
    %19 = math.rsqrt %18 : vector<32x1xf32>
    %20 = vector.broadcast %19 : vector<32x1xf32> to vector<32x32xf32>
    %21 = arith.mulf %16, %20 : vector<32x32xf32>
    %22 = vector.broadcast %2 : vector<1x32xf32> to vector<32x32xf32>
    %23 = arith.mulf %21, %22 : vector<32x32xf32>
    %24 = vector.broadcast %3 : vector<1x32xf32> to vector<32x32xf32>
    %25 = arith.addf %23, %24 : vector<32x32xf32>
    %26 = arith.truncf %25 : vector<32x32xf32> to vector<32x32xbf16>
    %cst_12 = arith.constant 0.000000e+00 : f32
    %27 = vector.broadcast %cst_12 : f32 to vector<32x32xf32>
    %c0_13 = arith.constant 0 : index
    %c0_14 = arith.constant 0 : index
    %c0_15 = arith.constant 0 : index
    %c0_16 = arith.constant 0 : index
    %28 = vector.load %arg4[%c0_13, %c0_14, %c0_15, %c0_16] : memref<2x2x32x16xbf16, #tpu.memory_space<vmem>>, vector<1x1x32x16xbf16>
    %29 = vector.shape_cast %28 : vector<1x1x32x16xbf16> to vector<32x16xbf16>
    %cst_17 = arith.constant dense<0.000000e+00> : vector<32x16xf32>
    %30 = tpu.matmul %26, %29, %cst_17 {dimension_numbers = #tpu.dot_dimension_numbers<[1], [0], [0], [1], [0, 0, 1, 1], [], []>} : vector<32x32xbf16>, vector<32x16xbf16>, vector<32x16xf32> -> vector<32x16xf32>
    %c0_18 = arith.constant 0 : index
    %c0_19 = arith.constant 0 : index
    %c0_20 = arith.constant 0 : index
    %c0_21 = arith.constant 0 : index
    %31 = vector.load %arg5[%c0_18, %c0_19, %c0_20, %c0_21] : memref<2x2x1x16xf32, #tpu.memory_space<vmem>>, vector<1x1x1x16xf32>
    %32 = vector.shape_cast %31 : vector<1x1x1x16xf32> to vector<1x16xf32>
    %33 = vector.broadcast %32 : vector<1x16xf32> to vector<32x16xf32>
    %34 = arith.addf %30, %33 : vector<32x16xf32>
    %c0_22 = arith.constant 0 : index
    %c0_23 = arith.constant 0 : index
    %c0_24 = arith.constant 0 : index
    %c0_25 = arith.constant 0 : index
    %35 = vector.load %arg6[%c0_22, %c0_23, %c0_24, %c0_25] : memref<2x2x32x16xbf16, #tpu.memory_space<vmem>>, vector<1x1x32x16xbf16>
    %36 = vector.shape_cast %35 : vector<1x1x32x16xbf16> to vector<32x16xbf16>
    %cst_26 = arith.constant dense<0.000000e+00> : vector<32x16xf32>
    %37 = tpu.matmul %26, %36, %cst_26 {dimension_numbers = #tpu.dot_dimension_numbers<[1], [0], [0], [1], [0, 0, 1, 1], [], []>} : vector<32x32xbf16>, vector<32x16xbf16>, vector<32x16xf32> -> vector<32x16xf32>
    %c0_27 = arith.constant 0 : index
    %c0_28 = arith.constant 0 : index
    %c0_29 = arith.constant 0 : index
    %c0_30 = arith.constant 0 : index
    %38 = vector.load %arg7[%c0_27, %c0_28, %c0_29, %c0_30] : memref<2x2x1x16xf32, #tpu.memory_space<vmem>>, vector<1x1x1x16xf32>
    %39 = vector.shape_cast %38 : vector<1x1x1x16xf32> to vector<1x16xf32>
    %40 = vector.broadcast %39 : vector<1x16xf32> to vector<32x16xf32>
    %41 = arith.addf %37, %40 : vector<32x16xf32>
    %c0_31 = arith.constant 0 : index
    %c0_32 = arith.constant 0 : index
    %c0_33 = arith.constant 0 : index
    %c0_34 = arith.constant 0 : index
    %42 = vector.load %arg8[%c0_31, %c0_32, %c0_33, %c0_34] : memref<2x2x32x16xbf16, #tpu.memory_space<vmem>>, vector<1x1x32x16xbf16>
    %43 = vector.shape_cast %42 : vector<1x1x32x16xbf16> to vector<32x16xbf16>
    %cst_35 = arith.constant dense<0.000000e+00> : vector<32x16xf32>
    %44 = tpu.matmul %26, %43, %cst_35 {dimension_numbers = #tpu.dot_dimension_numbers<[1], [0], [0], [1], [0, 0, 1, 1], [], []>} : vector<32x32xbf16>, vector<32x16xbf16>, vector<32x16xf32> -> vector<32x16xf32>
    %c0_36 = arith.constant 0 : index
    %c0_37 = arith.constant 0 : index
    %c0_38 = arith.constant 0 : index
    %c0_39 = arith.constant 0 : index
    %45 = vector.load %arg9[%c0_36, %c0_37, %c0_38, %c0_39] : memref<2x2x1x16xf32, #tpu.memory_space<vmem>>, vector<1x1x1x16xf32>
    %46 = vector.shape_cast %45 : vector<1x1x1x16xf32> to vector<1x16xf32>
    %47 = vector.broadcast %46 : vector<1x16xf32> to vector<32x16xf32>
    %48 = arith.addf %44, %47 : vector<32x16xf32>
    %49 = vector.shape_cast %34 : vector<32x16xf32> to vector<4x8x16xf32>
    %50 = arith.truncf %49 : vector<4x8x16xf32> to vector<4x8x16xbf16>
    %51 = vector.shape_cast %41 : vector<32x16xf32> to vector<4x8x16xf32>
    %52 = arith.truncf %51 : vector<4x8x16xf32> to vector<4x8x16xbf16>
    %53 = vector.shape_cast %48 : vector<32x16xf32> to vector<4x8x16xf32>
    %54 = arith.truncf %53 : vector<4x8x16xf32> to vector<4x8x16xbf16>
    "tpu.trace_start"() <{level = 10 : i32, message = "bqd,bkd->bqk"}> : () -> ()
    %cst_40 = arith.constant dense<0.000000e+00> : vector<4x8x8xf32>
    %55 = tpu.matmul %50, %52, %cst_40 {dimension_numbers = #tpu.dot_dimension_numbers<[2], [2], [1], [1], [0, 0, 0, 1, 1, 1], [0], [0]>} : vector<4x8x16xbf16>, vector<4x8x16xbf16>, vector<4x8x8xf32> -> vector<4x8x8xf32>
    "tpu.trace_stop"() : () -> ()
    %56 = vector.broadcast %0 : vector<4x1x8xf32> to vector<4x8x8xf32>
    %57 = arith.addf %55, %56 : vector<4x8x8xf32>
    %cst_41 = arith.constant dense<0xFF800000> : vector<4x8xf32>
    %58 = vector.multi_reduction <maximumf>, %57, %cst_41 [2] : vector<4x8x8xf32> to vector<4x8xf32>
    %59 = vector.shape_cast %58 : vector<4x8xf32> to vector<4x8x1xf32>
    %60 = vector.broadcast %59 : vector<4x8x1xf32> to vector<4x8x8xf32>
    %61 = arith.subf %57, %60 : vector<4x8x8xf32>
    %62 = math.exp %61 : vector<4x8x8xf32>
    %cst_42 = arith.constant dense<0.000000e+00> : vector<4x8xf32>
    %63 = vector.multi_reduction <add>, %62, %cst_42 [2] : vector<4x8x8xf32> to vector<4x8xf32>
    %64 = vector.shape_cast %63 : vector<4x8xf32> to vector<4x8x1xf32>
    %65 = tpu.reciprocal %64 {approx = true} : vector<4x8x1xf32> -> vector<4x8x1xf32>
    %66 = vector.broadcast %65 : vector<4x8x1xf32> to vector<4x8x8xf32>
    %67 = arith.mulf %62, %66 : vector<4x8x8xf32>
    %68 = arith.truncf %67 : vector<4x8x8xf32> to vector<4x8x8xbf16>
    "tpu.trace_start"() <{level = 10 : i32, message = "bqk,bkd->bqd"}> : () -> ()
    %cst_43 = arith.constant dense<0.000000e+00> : vector<4x8x16xf32>
    %69 = tpu.matmul %68, %54, %cst_43 {dimension_numbers = #tpu.dot_dimension_numbers<[2], [1], [1], [2], [0, 0, 0, 1, 1, 2], [0], [0]>} : vector<4x8x8xbf16>, vector<4x8x16xbf16>, vector<4x8x16xf32> -> vector<4x8x16xf32>
    "tpu.trace_stop"() : () -> ()
    %70 = vector.shape_cast %69 : vector<4x8x16xf32> to vector<32x16xf32>
    %71 = arith.truncf %70 : vector<32x16xf32> to vector<32x16xbf16>
    %c0_44 = arith.constant 0 : index
    %c0_45 = arith.constant 0 : index
    %c0_46 = arith.constant 0 : index
    %c0_47 = arith.constant 0 : index
    %72 = vector.load %arg10[%c0_44, %c0_45, %c0_46, %c0_47] : memref<2x2x16x32xbf16, #tpu.memory_space<vmem>>, vector<1x1x16x32xbf16>
    %73 = vector.shape_cast %72 : vector<1x1x16x32xbf16> to vector<16x32xbf16>
    %cst_48 = arith.constant dense<0.000000e+00> : vector<32x32xf32>
    %74 = tpu.matmul %71, %73, %cst_48 {dimension_numbers = #tpu.dot_dimension_numbers<[1], [0], [0], [1], [0, 0, 1, 1], [], []>} : vector<32x16xbf16>, vector<16x32xbf16>, vector<32x32xf32> -> vector<32x32xf32>
    %75 = arith.addf %27, %74 : vector<32x32xf32>
    %c0_49 = arith.constant 0 : index
    %c1 = arith.constant 1 : index
    %c0_50 = arith.constant 0 : index
    %c0_51 = arith.constant 0 : index
    %76 = vector.load %arg4[%c0_49, %c1, %c0_50, %c0_51] : memref<2x2x32x16xbf16, #tpu.memory_space<vmem>>, vector<1x1x32x16xbf16>
    %77 = vector.shape_cast %76 : vector<1x1x32x16xbf16> to vector<32x16xbf16>
    %cst_52 = arith.constant dense<0.000000e+00> : vector<32x16xf32>
    %78 = tpu.matmul %26, %77, %cst_52 {dimension_numbers = #tpu.dot_dimension_numbers<[1], [0], [0], [1], [0, 0, 1, 1], [], []>} : vector<32x32xbf16>, vector<32x16xbf16>, vector<32x16xf32> -> vector<32x16xf32>
    %c0_53 = arith.constant 0 : index
    %c1_54 = arith.constant 1 : index
    %c0_55 = arith.constant 0 : index
    %c0_56 = arith.constant 0 : index
    %79 = vector.load %arg5[%c0_53, %c1_54, %c0_55, %c0_56] : memref<2x2x1x16xf32, #tpu.memory_space<vmem>>, vector<1x1x1x16xf32>
    %80 = vector.shape_cast %79 : vector<1x1x1x16xf32> to vector<1x16xf32>
    %81 = vector.broadcast %80 : vector<1x16xf32> to vector<32x16xf32>
    %82 = arith.addf %78, %81 : vector<32x16xf32>
    %c0_57 = arith.constant 0 : index
    %c1_58 = arith.constant 1 : index
    %c0_59 = arith.constant 0 : index
    %c0_60 = arith.constant 0 : index
    %83 = vector.load %arg6[%c0_57, %c1_58, %c0_59, %c0_60] : memref<2x2x32x16xbf16, #tpu.memory_space<vmem>>, vector<1x1x32x16xbf16>
    %84 = vector.shape_cast %83 : vector<1x1x32x16xbf16> to vector<32x16xbf16>
    %cst_61 = arith.constant dense<0.000000e+00> : vector<32x16xf32>
    %85 = tpu.matmul %26, %84, %cst_61 {dimension_numbers = #tpu.dot_dimension_numbers<[1], [0], [0], [1], [0, 0, 1, 1], [], []>} : vector<32x32xbf16>, vector<32x16xbf16>, vector<32x16xf32> -> vector<32x16xf32>
    %c0_62 = arith.constant 0 : index
    %c1_63 = arith.constant 1 : index
    %c0_64 = arith.constant 0 : index
    %c0_65 = arith.constant 0 : index
    %86 = vector.load %arg7[%c0_62, %c1_63, %c0_64, %c0_65] : memref<2x2x1x16xf32, #tpu.memory_space<vmem>>, vector<1x1x1x16xf32>
    %87 = vector.shape_cast %86 : vector<1x1x1x16xf32> to vector<1x16xf32>
    %88 = vector.broadcast %87 : vector<1x16xf32> to vector<32x16xf32>
    %89 = arith.addf %85, %88 : vector<32x16xf32>
    %c0_66 = arith.constant 0 : index
    %c1_67 = arith.constant 1 : index
    %c0_68 = arith.constant 0 : index
    %c0_69 = arith.constant 0 : index
    %90 = vector.load %arg8[%c0_66, %c1_67, %c0_68, %c0_69] : memref<2x2x32x16xbf16, #tpu.memory_space<vmem>>, vector<1x1x32x16xbf16>
    %91 = vector.shape_cast %90 : vector<1x1x32x16xbf16> to vector<32x16xbf16>
    %cst_70 = arith.constant dense<0.000000e+00> : vector<32x16xf32>
    %92 = tpu.matmul %26, %91, %cst_70 {dimension_numbers = #tpu.dot_dimension_numbers<[1], [0], [0], [1], [0, 0, 1, 1], [], []>} : vector<32x32xbf16>, vector<32x16xbf16>, vector<32x16xf32> -> vector<32x16xf32>
    %c0_71 = arith.constant 0 : index
    %c1_72 = arith.constant 1 : index
    %c0_73 = arith.constant 0 : index
    %c0_74 = arith.constant 0 : index
    %93 = vector.load %arg9[%c0_71, %c1_72, %c0_73, %c0_74] : memref<2x2x1x16xf32, #tpu.memory_space<vmem>>, vector<1x1x1x16xf32>
    %94 = vector.shape_cast %93 : vector<1x1x1x16xf32> to vector<1x16xf32>
    %95 = vector.broadcast %94 : vector<1x16xf32> to vector<32x16xf32>
    %96 = arith.addf %92, %95 : vector<32x16xf32>
    %97 = vector.shape_cast %82 : vector<32x16xf32> to vector<4x8x16xf32>
    %98 = arith.truncf %97 : vector<4x8x16xf32> to vector<4x8x16xbf16>
    %99 = vector.shape_cast %89 : vector<32x16xf32> to vector<4x8x16xf32>
    %100 = arith.truncf %99 : vector<4x8x16xf32> to vector<4x8x16xbf16>
    %101 = vector.shape_cast %96 : vector<32x16xf32> to vector<4x8x16xf32>
    %102 = arith.truncf %101 : vector<4x8x16xf32> to vector<4x8x16xbf16>
    "tpu.trace_start"() <{level = 10 : i32, message = "bqd,bkd->bqk"}> : () -> ()
    %cst_75 = arith.constant dense<0.000000e+00> : vector<4x8x8xf32>
    %103 = tpu.matmul %98, %100, %cst_75 {dimension_numbers = #tpu.dot_dimension_numbers<[2], [2], [1], [1], [0, 0, 0, 1, 1, 1], [0], [0]>} : vector<4x8x16xbf16>, vector<4x8x16xbf16>, vector<4x8x8xf32> -> vector<4x8x8xf32>
    "tpu.trace_stop"() : () -> ()
    %104 = vector.broadcast %0 : vector<4x1x8xf32> to vector<4x8x8xf32>
    %105 = arith.addf %103, %104 : vector<4x8x8xf32>
    %cst_76 = arith.constant dense<0xFF800000> : vector<4x8xf32>
    %106 = vector.multi_reduction <maximumf>, %105, %cst_76 [2] : vector<4x8x8xf32> to vector<4x8xf32>
    %107 = vector.shape_cast %106 : vector<4x8xf32> to vector<4x8x1xf32>
    %108 = vector.broadcast %107 : vector<4x8x1xf32> to vector<4x8x8xf32>
    %109 = arith.subf %105, %108 : vector<4x8x8xf32>
    %110 = math.exp %109 : vector<4x8x8xf32>
    %cst_77 = arith.constant dense<0.000000e+00> : vector<4x8xf32>
    %111 = vector.multi_reduction <add>, %110, %cst_77 [2] : vector<4x8x8xf32> to vector<4x8xf32>
    %112 = vector.shape_cast %111 : vector<4x8xf32> to vector<4x8x1xf32>
    %113 = tpu.reciprocal %112 {approx = true} : vector<4x8x1xf32> -> vector<4x8x1xf32>
    %114 = vector.broadcast %113 : vector<4x8x1xf32> to vector<4x8x8xf32>
    %115 = arith.mulf %110, %114 : vector<4x8x8xf32>
    %116 = arith.truncf %115 : vector<4x8x8xf32> to vector<4x8x8xbf16>
    "tpu.trace_start"() <{level = 10 : i32, message = "bqk,bkd->bqd"}> : () -> ()
    %cst_78 = arith.constant dense<0.000000e+00> : vector<4x8x16xf32>
    %117 = tpu.matmul %116, %102, %cst_78 {dimension_numbers = #tpu.dot_dimension_numbers<[2], [1], [1], [2], [0, 0, 0, 1, 1, 2], [0], [0]>} : vector<4x8x8xbf16>, vector<4x8x16xbf16>, vector<4x8x16xf32> -> vector<4x8x16xf32>
    "tpu.trace_stop"() : () -> ()
    %118 = vector.shape_cast %117 : vector<4x8x16xf32> to vector<32x16xf32>
    %119 = arith.truncf %118 : vector<32x16xf32> to vector<32x16xbf16>
    %c0_79 = arith.constant 0 : index
    %c1_80 = arith.constant 1 : index
    %c0_81 = arith.constant 0 : index
    %c0_82 = arith.constant 0 : index
    %120 = vector.load %arg10[%c0_79, %c1_80, %c0_81, %c0_82] : memref<2x2x16x32xbf16, #tpu.memory_space<vmem>>, vector<1x1x16x32xbf16>
    %121 = vector.shape_cast %120 : vector<1x1x16x32xbf16> to vector<16x32xbf16>
    %cst_83 = arith.constant dense<0.000000e+00> : vector<32x32xf32>
    %122 = tpu.matmul %119, %121, %cst_83 {dimension_numbers = #tpu.dot_dimension_numbers<[1], [0], [0], [1], [0, 0, 1, 1], [], []>} : vector<32x16xbf16>, vector<16x32xbf16>, vector<32x32xf32> -> vector<32x32xf32>
    %123 = arith.addf %75, %122 : vector<32x32xf32>
    %c0_84 = arith.constant 0 : index
    %c0_85 = arith.constant 0 : index
    %c0_86 = arith.constant 0 : index
    %124 = vector.load %arg11[%c0_84, %c0_85, %c0_86] : memref<2x1x32xf32, #tpu.memory_space<vmem>>, vector<1x1x32xf32>
    %125 = vector.shape_cast %124 : vector<1x1x32xf32> to vector<1x32xf32>
    %126 = vector.broadcast %125 : vector<1x32xf32> to vector<32x32xf32>
    %127 = arith.addf %123, %126 : vector<32x32xf32>
    %128 = arith.addf %25, %127 : vector<32x32xf32>
    %c0_87 = arith.constant 0 : index
    %c0_88 = arith.constant 0 : index
    %c0_89 = arith.constant 0 : index
    %129 = vector.load %arg12[%c0_87, %c0_88, %c0_89] : memref<2x1x32xf32, #tpu.memory_space<vmem>>, vector<1x1x32xf32>
    %130 = vector.shape_cast %129 : vector<1x1x32xf32> to vector<1x32xf32>
    %c0_90 = arith.constant 0 : index
    %c0_91 = arith.constant 0 : index
    %c0_92 = arith.constant 0 : index
    %131 = vector.load %arg13[%c0_90, %c0_91, %c0_92] : memref<2x1x32xf32, #tpu.memory_space<vmem>>, vector<1x1x32xf32>
    %132 = vector.shape_cast %131 : vector<1x1x32xf32> to vector<1x32xf32>
    %cst_93 = arith.constant dense<0.000000e+00> : vector<32xf32>
    %133 = vector.multi_reduction <add>, %128, %cst_93 [1] : vector<32x32xf32> to vector<32xf32>
    %134 = vector.shape_cast %133 : vector<32xf32> to vector<32x1xf32>
    %cst_94 = arith.constant 3.200000e+01 : f32
    %135 = vector.broadcast %cst_94 : f32 to vector<32x1xf32>
    %136 = arith.divf %134, %135 : vector<32x1xf32>
    %137 = vector.broadcast %136 : vector<32x1xf32> to vector<32x32xf32>
    %138 = arith.subf %128, %137 : vector<32x32xf32>
    %139 = arith.mulf %138, %138 : vector<32x32xf32>
    %cst_95 = arith.constant dense<0.000000e+00> : vector<32xf32>
    %140 = vector.multi_reduction <add>, %139, %cst_95 [1] : vector<32x32xf32> to vector<32xf32>
    %141 = vector.shape_cast %140 : vector<32xf32> to vector<32x1xf32>
    %cst_96 = arith.constant 3.200000e+01 : f32
    %142 = vector.broadcast %cst_96 : f32 to vector<32x1xf32>
    %143 = arith.divf %141, %142 : vector<32x1xf32>
    %144 = vector.broadcast %136 : vector<32x1xf32> to vector<32x32xf32>
    %145 = arith.subf %128, %144 : vector<32x32xf32>
    %cst_97 = arith.constant 9.99999996E-13 : f32
    %146 = vector.broadcast %cst_97 : f32 to vector<32x1xf32>
    %147 = arith.addf %143, %146 : vector<32x1xf32>
    %148 = math.rsqrt %147 : vector<32x1xf32>
    %149 = vector.broadcast %148 : vector<32x1xf32> to vector<32x32xf32>
    %150 = arith.mulf %145, %149 : vector<32x32xf32>
    %151 = vector.broadcast %130 : vector<1x32xf32> to vector<32x32xf32>
    %152 = arith.mulf %150, %151 : vector<32x32xf32>
    %153 = vector.broadcast %132 : vector<1x32xf32> to vector<32x32xf32>
    %154 = arith.addf %152, %153 : vector<32x32xf32>
    %155 = arith.truncf %154 : vector<32x32xf32> to vector<32x32xbf16>
    %c0_98 = arith.constant 0 : index
    %c0_99 = arith.constant 0 : index
    %c0_100 = arith.constant 0 : index
    %156 = vector.load %arg14[%c0_98, %c0_99, %c0_100] : memref<2x32x64xbf16, #tpu.memory_space<vmem>>, vector<1x32x64xbf16>
    %157 = vector.shape_cast %156 : vector<1x32x64xbf16> to vector<32x64xbf16>
    %cst_101 = arith.constant dense<0.000000e+00> : vector<32x64xf32>
    %158 = tpu.matmul %155, %157, %cst_101 {dimension_numbers = #tpu.dot_dimension_numbers<[1], [0], [0], [1], [0, 0, 1, 1], [], []>} : vector<32x32xbf16>, vector<32x64xbf16>, vector<32x64xf32> -> vector<32x64xf32>
    %c0_102 = arith.constant 0 : index
    %c0_103 = arith.constant 0 : index
    %c0_104 = arith.constant 0 : index
    %159 = vector.load %arg15[%c0_102, %c0_103, %c0_104] : memref<2x1x64xf32, #tpu.memory_space<vmem>>, vector<1x1x64xf32>
    %160 = vector.shape_cast %159 : vector<1x1x64xf32> to vector<1x64xf32>
    %161 = vector.broadcast %160 : vector<1x64xf32> to vector<32x64xf32>
    %162 = arith.addf %158, %161 : vector<32x64xf32>
    %cst_105 = arith.constant 5.000000e-01 : f32
    %163 = vector.broadcast %cst_105 : f32 to vector<32x64xf32>
    %164 = arith.mulf %163, %162 : vector<32x64xf32>
    %cst_106 = arith.constant 4.471500e-02 : f32
    %165 = vector.broadcast %cst_106 : f32 to vector<32x64xf32>
    %166 = arith.mulf %165, %162 : vector<32x64xf32>
    %167 = arith.mulf %166, %162 : vector<32x64xf32>
    %168 = arith.mulf %167, %162 : vector<32x64xf32>
    %169 = arith.addf %162, %168 : vector<32x64xf32>
    %cst_107 = arith.constant 0.797884583 : f32
    %170 = vector.broadcast %cst_107 : f32 to vector<32x64xf32>
    %171 = arith.mulf %170, %169 : vector<32x64xf32>
    %172 = math.tanh %171 : vector<32x64xf32>
    %cst_108 = arith.constant 1.000000e+00 : f32
    %173 = vector.broadcast %cst_108 : f32 to vector<32x64xf32>
    %174 = arith.addf %173, %172 : vector<32x64xf32>
    %175 = arith.mulf %164, %174 : vector<32x64xf32>
    %176 = arith.truncf %175 : vector<32x64xf32> to vector<32x64xbf16>
    %c0_109 = arith.constant 0 : index
    %c0_110 = arith.constant 0 : index
    %c0_111 = arith.constant 0 : index
    %177 = vector.load %arg16[%c0_109, %c0_110, %c0_111] : memref<2x64x32xbf16, #tpu.memory_space<vmem>>, vector<1x64x32xbf16>
    %178 = vector.shape_cast %177 : vector<1x64x32xbf16> to vector<64x32xbf16>
    %cst_112 = arith.constant dense<0.000000e+00> : vector<32x32xf32>
    %179 = tpu.matmul %176, %178, %cst_112 {dimension_numbers = #tpu.dot_dimension_numbers<[1], [0], [0], [1], [0, 0, 1, 1], [], []>} : vector<32x64xbf16>, vector<64x32xbf16>, vector<32x32xf32> -> vector<32x32xf32>
    %c0_113 = arith.constant 0 : index
    %c0_114 = arith.constant 0 : index
    %c0_115 = arith.constant 0 : index
    %180 = vector.load %arg17[%c0_113, %c0_114, %c0_115] : memref<2x1x32xf32, #tpu.memory_space<vmem>>, vector<1x1x32xf32>
    %181 = vector.shape_cast %180 : vector<1x1x32xf32> to vector<1x32xf32>
    %182 = vector.broadcast %181 : vector<1x32xf32> to vector<32x32xf32>
    %183 = arith.addf %179, %182 : vector<32x32xf32>
    %184 = arith.addf %154, %183 : vector<32x32xf32>
    %c0_116 = arith.constant 0 : index
    %c0_117 = arith.constant 0 : index
    %c0_118 = arith.constant 0 : index
    %185 = vector.load %arg18[%c0_116, %c0_117, %c0_118] : memref<2x1x32xf32, #tpu.memory_space<vmem>>, vector<1x1x32xf32>
    %186 = vector.shape_cast %185 : vector<1x1x32xf32> to vector<1x32xf32>
    %c0_119 = arith.constant 0 : index
    %c0_120 = arith.constant 0 : index
    %c0_121 = arith.constant 0 : index
    %187 = vector.load %arg19[%c0_119, %c0_120, %c0_121] : memref<2x1x32xf32, #tpu.memory_space<vmem>>, vector<1x1x32xf32>
    %188 = vector.shape_cast %187 : vector<1x1x32xf32> to vector<1x32xf32>
    %cst_122 = arith.constant dense<0.000000e+00> : vector<32xf32>
    %189 = vector.multi_reduction <add>, %184, %cst_122 [1] : vector<32x32xf32> to vector<32xf32>
    %190 = vector.shape_cast %189 : vector<32xf32> to vector<32x1xf32>
    %cst_123 = arith.constant 3.200000e+01 : f32
    %191 = vector.broadcast %cst_123 : f32 to vector<32x1xf32>
    %192 = arith.divf %190, %191 : vector<32x1xf32>
    %193 = vector.broadcast %192 : vector<32x1xf32> to vector<32x32xf32>
    %194 = arith.subf %184, %193 : vector<32x32xf32>
    %195 = arith.mulf %194, %194 : vector<32x32xf32>
    %cst_124 = arith.constant dense<0.000000e+00> : vector<32xf32>
    %196 = vector.multi_reduction <add>, %195, %cst_124 [1] : vector<32x32xf32> to vector<32xf32>
    %197 = vector.shape_cast %196 : vector<32xf32> to vector<32x1xf32>
    %cst_125 = arith.constant 3.200000e+01 : f32
    %198 = vector.broadcast %cst_125 : f32 to vector<32x1xf32>
    %199 = arith.divf %197, %198 : vector<32x1xf32>
    %200 = vector.broadcast %192 : vector<32x1xf32> to vector<32x32xf32>
    %201 = arith.subf %184, %200 : vector<32x32xf32>
    %cst_126 = arith.constant 9.99999996E-13 : f32
    %202 = vector.broadcast %cst_126 : f32 to vector<32x1xf32>
    %203 = arith.addf %199, %202 : vector<32x1xf32>
    %204 = math.rsqrt %203 : vector<32x1xf32>
    %205 = vector.broadcast %204 : vector<32x1xf32> to vector<32x32xf32>
    %206 = arith.mulf %201, %205 : vector<32x32xf32>
    %207 = vector.broadcast %186 : vector<1x32xf32> to vector<32x32xf32>
    %208 = arith.mulf %206, %207 : vector<32x32xf32>
    %209 = vector.broadcast %188 : vector<1x32xf32> to vector<32x32xf32>
    %210 = arith.addf %208, %209 : vector<32x32xf32>
    %211 = arith.truncf %210 : vector<32x32xf32> to vector<32x32xbf16>
    %cst_127 = arith.constant 0.000000e+00 : f32
    %212 = vector.broadcast %cst_127 : f32 to vector<32x32xf32>
    %c1_128 = arith.constant 1 : index
    %c0_129 = arith.constant 0 : index
    %c0_130 = arith.constant 0 : index
    %c0_131 = arith.constant 0 : index
    %213 = vector.load %arg4[%c1_128, %c0_129, %c0_130, %c0_131] : memref<2x2x32x16xbf16, #tpu.memory_space<vmem>>, vector<1x1x32x16xbf16>
    %214 = vector.shape_cast %213 : vector<1x1x32x16xbf16> to vector<32x16xbf16>
    %cst_132 = arith.constant dense<0.000000e+00> : vector<32x16xf32>
    %215 = tpu.matmul %211, %214, %cst_132 {dimension_numbers = #tpu.dot_dimension_numbers<[1], [0], [0], [1], [0, 0, 1, 1], [], []>} : vector<32x32xbf16>, vector<32x16xbf16>, vector<32x16xf32> -> vector<32x16xf32>
    %c1_133 = arith.constant 1 : index
    %c0_134 = arith.constant 0 : index
    %c0_135 = arith.constant 0 : index
    %c0_136 = arith.constant 0 : index
    %216 = vector.load %arg5[%c1_133, %c0_134, %c0_135, %c0_136] : memref<2x2x1x16xf32, #tpu.memory_space<vmem>>, vector<1x1x1x16xf32>
    %217 = vector.shape_cast %216 : vector<1x1x1x16xf32> to vector<1x16xf32>
    %218 = vector.broadcast %217 : vector<1x16xf32> to vector<32x16xf32>
    %219 = arith.addf %215, %218 : vector<32x16xf32>
    %c1_137 = arith.constant 1 : index
    %c0_138 = arith.constant 0 : index
    %c0_139 = arith.constant 0 : index
    %c0_140 = arith.constant 0 : index
    %220 = vector.load %arg6[%c1_137, %c0_138, %c0_139, %c0_140] : memref<2x2x32x16xbf16, #tpu.memory_space<vmem>>, vector<1x1x32x16xbf16>
    %221 = vector.shape_cast %220 : vector<1x1x32x16xbf16> to vector<32x16xbf16>
    %cst_141 = arith.constant dense<0.000000e+00> : vector<32x16xf32>
    %222 = tpu.matmul %211, %221, %cst_141 {dimension_numbers = #tpu.dot_dimension_numbers<[1], [0], [0], [1], [0, 0, 1, 1], [], []>} : vector<32x32xbf16>, vector<32x16xbf16>, vector<32x16xf32> -> vector<32x16xf32>
    %c1_142 = arith.constant 1 : index
    %c0_143 = arith.constant 0 : index
    %c0_144 = arith.constant 0 : index
    %c0_145 = arith.constant 0 : index
    %223 = vector.load %arg7[%c1_142, %c0_143, %c0_144, %c0_145] : memref<2x2x1x16xf32, #tpu.memory_space<vmem>>, vector<1x1x1x16xf32>
    %224 = vector.shape_cast %223 : vector<1x1x1x16xf32> to vector<1x16xf32>
    %225 = vector.broadcast %224 : vector<1x16xf32> to vector<32x16xf32>
    %226 = arith.addf %222, %225 : vector<32x16xf32>
    %c1_146 = arith.constant 1 : index
    %c0_147 = arith.constant 0 : index
    %c0_148 = arith.constant 0 : index
    %c0_149 = arith.constant 0 : index
    %227 = vector.load %arg8[%c1_146, %c0_147, %c0_148, %c0_149] : memref<2x2x32x16xbf16, #tpu.memory_space<vmem>>, vector<1x1x32x16xbf16>
    %228 = vector.shape_cast %227 : vector<1x1x32x16xbf16> to vector<32x16xbf16>
    %cst_150 = arith.constant dense<0.000000e+00> : vector<32x16xf32>
    %229 = tpu.matmul %211, %228, %cst_150 {dimension_numbers = #tpu.dot_dimension_numbers<[1], [0], [0], [1], [0, 0, 1, 1], [], []>} : vector<32x32xbf16>, vector<32x16xbf16>, vector<32x16xf32> -> vector<32x16xf32>
    %c1_151 = arith.constant 1 : index
    %c0_152 = arith.constant 0 : index
    %c0_153 = arith.constant 0 : index
    %c0_154 = arith.constant 0 : index
    %230 = vector.load %arg9[%c1_151, %c0_152, %c0_153, %c0_154] : memref<2x2x1x16xf32, #tpu.memory_space<vmem>>, vector<1x1x1x16xf32>
    %231 = vector.shape_cast %230 : vector<1x1x1x16xf32> to vector<1x16xf32>
    %232 = vector.broadcast %231 : vector<1x16xf32> to vector<32x16xf32>
    %233 = arith.addf %229, %232 : vector<32x16xf32>
    %234 = vector.shape_cast %219 : vector<32x16xf32> to vector<4x8x16xf32>
    %235 = arith.truncf %234 : vector<4x8x16xf32> to vector<4x8x16xbf16>
    %236 = vector.shape_cast %226 : vector<32x16xf32> to vector<4x8x16xf32>
    %237 = arith.truncf %236 : vector<4x8x16xf32> to vector<4x8x16xbf16>
    %238 = vector.shape_cast %233 : vector<32x16xf32> to vector<4x8x16xf32>
    %239 = arith.truncf %238 : vector<4x8x16xf32> to vector<4x8x16xbf16>
    "tpu.trace_start"() <{level = 10 : i32, message = "bqd,bkd->bqk"}> : () -> ()
    %cst_155 = arith.constant dense<0.000000e+00> : vector<4x8x8xf32>
    %240 = tpu.matmul %235, %237, %cst_155 {dimension_numbers = #tpu.dot_dimension_numbers<[2], [2], [1], [1], [0, 0, 0, 1, 1, 1], [0], [0]>} : vector<4x8x16xbf16>, vector<4x8x16xbf16>, vector<4x8x8xf32> -> vector<4x8x8xf32>
    "tpu.trace_stop"() : () -> ()
    %241 = vector.broadcast %0 : vector<4x1x8xf32> to vector<4x8x8xf32>
    %242 = arith.addf %240, %241 : vector<4x8x8xf32>
    %cst_156 = arith.constant dense<0xFF800000> : vector<4x8xf32>
    %243 = vector.multi_reduction <maximumf>, %242, %cst_156 [2] : vector<4x8x8xf32> to vector<4x8xf32>
    %244 = vector.shape_cast %243 : vector<4x8xf32> to vector<4x8x1xf32>
    %245 = vector.broadcast %244 : vector<4x8x1xf32> to vector<4x8x8xf32>
    %246 = arith.subf %242, %245 : vector<4x8x8xf32>
    %247 = math.exp %246 : vector<4x8x8xf32>
    %cst_157 = arith.constant dense<0.000000e+00> : vector<4x8xf32>
    %248 = vector.multi_reduction <add>, %247, %cst_157 [2] : vector<4x8x8xf32> to vector<4x8xf32>
    %249 = vector.shape_cast %248 : vector<4x8xf32> to vector<4x8x1xf32>
    %250 = tpu.reciprocal %249 {approx = true} : vector<4x8x1xf32> -> vector<4x8x1xf32>
    %251 = vector.broadcast %250 : vector<4x8x1xf32> to vector<4x8x8xf32>
    %252 = arith.mulf %247, %251 : vector<4x8x8xf32>
    %253 = arith.truncf %252 : vector<4x8x8xf32> to vector<4x8x8xbf16>
    "tpu.trace_start"() <{level = 10 : i32, message = "bqk,bkd->bqd"}> : () -> ()
    %cst_158 = arith.constant dense<0.000000e+00> : vector<4x8x16xf32>
    %254 = tpu.matmul %253, %239, %cst_158 {dimension_numbers = #tpu.dot_dimension_numbers<[2], [1], [1], [2], [0, 0, 0, 1, 1, 2], [0], [0]>} : vector<4x8x8xbf16>, vector<4x8x16xbf16>, vector<4x8x16xf32> -> vector<4x8x16xf32>
    "tpu.trace_stop"() : () -> ()
    %255 = vector.shape_cast %254 : vector<4x8x16xf32> to vector<32x16xf32>
    %256 = arith.truncf %255 : vector<32x16xf32> to vector<32x16xbf16>
    %c1_159 = arith.constant 1 : index
    %c0_160 = arith.constant 0 : index
    %c0_161 = arith.constant 0 : index
    %c0_162 = arith.constant 0 : index
    %257 = vector.load %arg10[%c1_159, %c0_160, %c0_161, %c0_162] : memref<2x2x16x32xbf16, #tpu.memory_space<vmem>>, vector<1x1x16x32xbf16>
    %258 = vector.shape_cast %257 : vector<1x1x16x32xbf16> to vector<16x32xbf16>
    %cst_163 = arith.constant dense<0.000000e+00> : vector<32x32xf32>
    %259 = tpu.matmul %256, %258, %cst_163 {dimension_numbers = #tpu.dot_dimension_numbers<[1], [0], [0], [1], [0, 0, 1, 1], [], []>} : vector<32x16xbf16>, vector<16x32xbf16>, vector<32x32xf32> -> vector<32x32xf32>
    %260 = arith.addf %212, %259 : vector<32x32xf32>
    %c1_164 = arith.constant 1 : index
    %c1_165 = arith.constant 1 : index
    %c0_166 = arith.constant 0 : index
    %c0_167 = arith.constant 0 : index
    %261 = vector.load %arg4[%c1_164, %c1_165, %c0_166, %c0_167] : memref<2x2x32x16xbf16, #tpu.memory_space<vmem>>, vector<1x1x32x16xbf16>
    %262 = vector.shape_cast %261 : vector<1x1x32x16xbf16> to vector<32x16xbf16>
    %cst_168 = arith.constant dense<0.000000e+00> : vector<32x16xf32>
    %263 = tpu.matmul %211, %262, %cst_168 {dimension_numbers = #tpu.dot_dimension_numbers<[1], [0], [0], [1], [0, 0, 1, 1], [], []>} : vector<32x32xbf16>, vector<32x16xbf16>, vector<32x16xf32> -> vector<32x16xf32>
    %c1_169 = arith.constant 1 : index
    %c1_170 = arith.constant 1 : index
    %c0_171 = arith.constant 0 : index
    %c0_172 = arith.constant 0 : index
    %264 = vector.load %arg5[%c1_169, %c1_170, %c0_171, %c0_172] : memref<2x2x1x16xf32, #tpu.memory_space<vmem>>, vector<1x1x1x16xf32>
    %265 = vector.shape_cast %264 : vector<1x1x1x16xf32> to vector<1x16xf32>
    %266 = vector.broadcast %265 : vector<1x16xf32> to vector<32x16xf32>
    %267 = arith.addf %263, %266 : vector<32x16xf32>
    %c1_173 = arith.constant 1 : index
    %c1_174 = arith.constant 1 : index
    %c0_175 = arith.constant 0 : index
    %c0_176 = arith.constant 0 : index
    %268 = vector.load %arg6[%c1_173, %c1_174, %c0_175, %c0_176] : memref<2x2x32x16xbf16, #tpu.memory_space<vmem>>, vector<1x1x32x16xbf16>
    %269 = vector.shape_cast %268 : vector<1x1x32x16xbf16> to vector<32x16xbf16>
    %cst_177 = arith.constant dense<0.000000e+00> : vector<32x16xf32>
    %270 = tpu.matmul %211, %269, %cst_177 {dimension_numbers = #tpu.dot_dimension_numbers<[1], [0], [0], [1], [0, 0, 1, 1], [], []>} : vector<32x32xbf16>, vector<32x16xbf16>, vector<32x16xf32> -> vector<32x16xf32>
    %c1_178 = arith.constant 1 : index
    %c1_179 = arith.constant 1 : index
    %c0_180 = arith.constant 0 : index
    %c0_181 = arith.constant 0 : index
    %271 = vector.load %arg7[%c1_178, %c1_179, %c0_180, %c0_181] : memref<2x2x1x16xf32, #tpu.memory_space<vmem>>, vector<1x1x1x16xf32>
    %272 = vector.shape_cast %271 : vector<1x1x1x16xf32> to vector<1x16xf32>
    %273 = vector.broadcast %272 : vector<1x16xf32> to vector<32x16xf32>
    %274 = arith.addf %270, %273 : vector<32x16xf32>
    %c1_182 = arith.constant 1 : index
    %c1_183 = arith.constant 1 : index
    %c0_184 = arith.constant 0 : index
    %c0_185 = arith.constant 0 : index
    %275 = vector.load %arg8[%c1_182, %c1_183, %c0_184, %c0_185] : memref<2x2x32x16xbf16, #tpu.memory_space<vmem>>, vector<1x1x32x16xbf16>
    %276 = vector.shape_cast %275 : vector<1x1x32x16xbf16> to vector<32x16xbf16>
    %cst_186 = arith.constant dense<0.000000e+00> : vector<32x16xf32>
    %277 = tpu.matmul %211, %276, %cst_186 {dimension_numbers = #tpu.dot_dimension_numbers<[1], [0], [0], [1], [0, 0, 1, 1], [], []>} : vector<32x32xbf16>, vector<32x16xbf16>, vector<32x16xf32> -> vector<32x16xf32>
    %c1_187 = arith.constant 1 : index
    %c1_188 = arith.constant 1 : index
    %c0_189 = arith.constant 0 : index
    %c0_190 = arith.constant 0 : index
    %278 = vector.load %arg9[%c1_187, %c1_188, %c0_189, %c0_190] : memref<2x2x1x16xf32, #tpu.memory_space<vmem>>, vector<1x1x1x16xf32>
    %279 = vector.shape_cast %278 : vector<1x1x1x16xf32> to vector<1x16xf32>
    %280 = vector.broadcast %279 : vector<1x16xf32> to vector<32x16xf32>
    %281 = arith.addf %277, %280 : vector<32x16xf32>
    %282 = vector.shape_cast %267 : vector<32x16xf32> to vector<4x8x16xf32>
    %283 = arith.truncf %282 : vector<4x8x16xf32> to vector<4x8x16xbf16>
    %284 = vector.shape_cast %274 : vector<32x16xf32> to vector<4x8x16xf32>
    %285 = arith.truncf %284 : vector<4x8x16xf32> to vector<4x8x16xbf16>
    %286 = vector.shape_cast %281 : vector<32x16xf32> to vector<4x8x16xf32>
    %287 = arith.truncf %286 : vector<4x8x16xf32> to vector<4x8x16xbf16>
    "tpu.trace_start"() <{level = 10 : i32, message = "bqd,bkd->bqk"}> : () -> ()
    %cst_191 = arith.constant dense<0.000000e+00> : vector<4x8x8xf32>
    %288 = tpu.matmul %283, %285, %cst_191 {dimension_numbers = #tpu.dot_dimension_numbers<[2], [2], [1], [1], [0, 0, 0, 1, 1, 1], [0], [0]>} : vector<4x8x16xbf16>, vector<4x8x16xbf16>, vector<4x8x8xf32> -> vector<4x8x8xf32>
    "tpu.trace_stop"() : () -> ()
    %289 = vector.broadcast %0 : vector<4x1x8xf32> to vector<4x8x8xf32>
    %290 = arith.addf %288, %289 : vector<4x8x8xf32>
    %cst_192 = arith.constant dense<0xFF800000> : vector<4x8xf32>
    %291 = vector.multi_reduction <maximumf>, %290, %cst_192 [2] : vector<4x8x8xf32> to vector<4x8xf32>
    %292 = vector.shape_cast %291 : vector<4x8xf32> to vector<4x8x1xf32>
    %293 = vector.broadcast %292 : vector<4x8x1xf32> to vector<4x8x8xf32>
    %294 = arith.subf %290, %293 : vector<4x8x8xf32>
    %295 = math.exp %294 : vector<4x8x8xf32>
    %cst_193 = arith.constant dense<0.000000e+00> : vector<4x8xf32>
    %296 = vector.multi_reduction <add>, %295, %cst_193 [2] : vector<4x8x8xf32> to vector<4x8xf32>
    %297 = vector.shape_cast %296 : vector<4x8xf32> to vector<4x8x1xf32>
    %298 = tpu.reciprocal %297 {approx = true} : vector<4x8x1xf32> -> vector<4x8x1xf32>
    %299 = vector.broadcast %298 : vector<4x8x1xf32> to vector<4x8x8xf32>
    %300 = arith.mulf %295, %299 : vector<4x8x8xf32>
    %301 = arith.truncf %300 : vector<4x8x8xf32> to vector<4x8x8xbf16>
    "tpu.trace_start"() <{level = 10 : i32, message = "bqk,bkd->bqd"}> : () -> ()
    %cst_194 = arith.constant dense<0.000000e+00> : vector<4x8x16xf32>
    %302 = tpu.matmul %301, %287, %cst_194 {dimension_numbers = #tpu.dot_dimension_numbers<[2], [1], [1], [2], [0, 0, 0, 1, 1, 2], [0], [0]>} : vector<4x8x8xbf16>, vector<4x8x16xbf16>, vector<4x8x16xf32> -> vector<4x8x16xf32>
    "tpu.trace_stop"() : () -> ()
    %303 = vector.shape_cast %302 : vector<4x8x16xf32> to vector<32x16xf32>
    %304 = arith.truncf %303 : vector<32x16xf32> to vector<32x16xbf16>
    %c1_195 = arith.constant 1 : index
    %c1_196 = arith.constant 1 : index
    %c0_197 = arith.constant 0 : index
    %c0_198 = arith.constant 0 : index
    %305 = vector.load %arg10[%c1_195, %c1_196, %c0_197, %c0_198] : memref<2x2x16x32xbf16, #tpu.memory_space<vmem>>, vector<1x1x16x32xbf16>
    %306 = vector.shape_cast %305 : vector<1x1x16x32xbf16> to vector<16x32xbf16>
    %cst_199 = arith.constant dense<0.000000e+00> : vector<32x32xf32>
    %307 = tpu.matmul %304, %306, %cst_199 {dimension_numbers = #tpu.dot_dimension_numbers<[1], [0], [0], [1], [0, 0, 1, 1], [], []>} : vector<32x16xbf16>, vector<16x32xbf16>, vector<32x32xf32> -> vector<32x32xf32>
    %308 = arith.addf %260, %307 : vector<32x32xf32>
    %c1_200 = arith.constant 1 : index
    %c0_201 = arith.constant 0 : index
    %c0_202 = arith.constant 0 : index
    %309 = vector.load %arg11[%c1_200, %c0_201, %c0_202] : memref<2x1x32xf32, #tpu.memory_space<vmem>>, vector<1x1x32xf32>
    %310 = vector.shape_cast %309 : vector<1x1x32xf32> to vector<1x32xf32>
    %311 = vector.broadcast %310 : vector<1x32xf32> to vector<32x32xf32>
    %312 = arith.addf %308, %311 : vector<32x32xf32>
    %313 = arith.addf %210, %312 : vector<32x32xf32>
    %c1_203 = arith.constant 1 : index
    %c0_204 = arith.constant 0 : index
    %c0_205 = arith.constant 0 : index
    %314 = vector.load %arg12[%c1_203, %c0_204, %c0_205] : memref<2x1x32xf32, #tpu.memory_space<vmem>>, vector<1x1x32xf32>
    %315 = vector.shape_cast %314 : vector<1x1x32xf32> to vector<1x32xf32>
    %c1_206 = arith.constant 1 : index
    %c0_207 = arith.constant 0 : index
    %c0_208 = arith.constant 0 : index
    %316 = vector.load %arg13[%c1_206, %c0_207, %c0_208] : memref<2x1x32xf32, #tpu.memory_space<vmem>>, vector<1x1x32xf32>
    %317 = vector.shape_cast %316 : vector<1x1x32xf32> to vector<1x32xf32>
    %cst_209 = arith.constant dense<0.000000e+00> : vector<32xf32>
    %318 = vector.multi_reduction <add>, %313, %cst_209 [1] : vector<32x32xf32> to vector<32xf32>
    %319 = vector.shape_cast %318 : vector<32xf32> to vector<32x1xf32>
    %cst_210 = arith.constant 3.200000e+01 : f32
    %320 = vector.broadcast %cst_210 : f32 to vector<32x1xf32>
    %321 = arith.divf %319, %320 : vector<32x1xf32>
    %322 = vector.broadcast %321 : vector<32x1xf32> to vector<32x32xf32>
    %323 = arith.subf %313, %322 : vector<32x32xf32>
    %324 = arith.mulf %323, %323 : vector<32x32xf32>
    %cst_211 = arith.constant dense<0.000000e+00> : vector<32xf32>
    %325 = vector.multi_reduction <add>, %324, %cst_211 [1] : vector<32x32xf32> to vector<32xf32>
    %326 = vector.shape_cast %325 : vector<32xf32> to vector<32x1xf32>
    %cst_212 = arith.constant 3.200000e+01 : f32
    %327 = vector.broadcast %cst_212 : f32 to vector<32x1xf32>
    %328 = arith.divf %326, %327 : vector<32x1xf32>
    %329 = vector.broadcast %321 : vector<32x1xf32> to vector<32x32xf32>
    %330 = arith.subf %313, %329 : vector<32x32xf32>
    %cst_213 = arith.constant 9.99999996E-13 : f32
    %331 = vector.broadcast %cst_213 : f32 to vector<32x1xf32>
    %332 = arith.addf %328, %331 : vector<32x1xf32>
    %333 = math.rsqrt %332 : vector<32x1xf32>
    %334 = vector.broadcast %333 : vector<32x1xf32> to vector<32x32xf32>
    %335 = arith.mulf %330, %334 : vector<32x32xf32>
    %336 = vector.broadcast %315 : vector<1x32xf32> to vector<32x32xf32>
    %337 = arith.mulf %335, %336 : vector<32x32xf32>
    %338 = vector.broadcast %317 : vector<1x32xf32> to vector<32x32xf32>
    %339 = arith.addf %337, %338 : vector<32x32xf32>
    %340 = arith.truncf %339 : vector<32x32xf32> to vector<32x32xbf16>
    %c1_214 = arith.constant 1 : index
    %c0_215 = arith.constant 0 : index
    %c0_216 = arith.constant 0 : index
    %341 = vector.load %arg14[%c1_214, %c0_215, %c0_216] : memref<2x32x64xbf16, #tpu.memory_space<vmem>>, vector<1x32x64xbf16>
    %342 = vector.shape_cast %341 : vector<1x32x64xbf16> to vector<32x64xbf16>
    %cst_217 = arith.constant dense<0.000000e+00> : vector<32x64xf32>
    %343 = tpu.matmul %340, %342, %cst_217 {dimension_numbers = #tpu.dot_dimension_numbers<[1], [0], [0], [1], [0, 0, 1, 1], [], []>} : vector<32x32xbf16>, vector<32x64xbf16>, vector<32x64xf32> -> vector<32x64xf32>
    %c1_218 = arith.constant 1 : index
    %c0_219 = arith.constant 0 : index
    %c0_220 = arith.constant 0 : index
    %344 = vector.load %arg15[%c1_218, %c0_219, %c0_220] : memref<2x1x64xf32, #tpu.memory_space<vmem>>, vector<1x1x64xf32>
    %345 = vector.shape_cast %344 : vector<1x1x64xf32> to vector<1x64xf32>
    %346 = vector.broadcast %345 : vector<1x64xf32> to vector<32x64xf32>
    %347 = arith.addf %343, %346 : vector<32x64xf32>
    %cst_221 = arith.constant 5.000000e-01 : f32
    %348 = vector.broadcast %cst_221 : f32 to vector<32x64xf32>
    %349 = arith.mulf %348, %347 : vector<32x64xf32>
    %cst_222 = arith.constant 4.471500e-02 : f32
    %350 = vector.broadcast %cst_222 : f32 to vector<32x64xf32>
    %351 = arith.mulf %350, %347 : vector<32x64xf32>
    %352 = arith.mulf %351, %347 : vector<32x64xf32>
    %353 = arith.mulf %352, %347 : vector<32x64xf32>
    %354 = arith.addf %347, %353 : vector<32x64xf32>
    %cst_223 = arith.constant 0.797884583 : f32
    %355 = vector.broadcast %cst_223 : f32 to vector<32x64xf32>
    %356 = arith.mulf %355, %354 : vector<32x64xf32>
    %357 = math.tanh %356 : vector<32x64xf32>
    %cst_224 = arith.constant 1.000000e+00 : f32
    %358 = vector.broadcast %cst_224 : f32 to vector<32x64xf32>
    %359 = arith.addf %358, %357 : vector<32x64xf32>
    %360 = arith.mulf %349, %359 : vector<32x64xf32>
    %361 = arith.truncf %360 : vector<32x64xf32> to vector<32x64xbf16>
    %c1_225 = arith.constant 1 : index
    %c0_226 = arith.constant 0 : index
    %c0_227 = arith.constant 0 : index
    %362 = vector.load %arg16[%c1_225, %c0_226, %c0_227] : memref<2x64x32xbf16, #tpu.memory_space<vmem>>, vector<1x64x32xbf16>
    %363 = vector.shape_cast %362 : vector<1x64x32xbf16> to vector<64x32xbf16>
    %cst_228 = arith.constant dense<0.000000e+00> : vector<32x32xf32>
    %364 = tpu.matmul %361, %363, %cst_228 {dimension_numbers = #tpu.dot_dimension_numbers<[1], [0], [0], [1], [0, 0, 1, 1], [], []>} : vector<32x64xbf16>, vector<64x32xbf16>, vector<32x32xf32> -> vector<32x32xf32>
    %c1_229 = arith.constant 1 : index
    %c0_230 = arith.constant 0 : index
    %c0_231 = arith.constant 0 : index
    %365 = vector.load %arg17[%c1_229, %c0_230, %c0_231] : memref<2x1x32xf32, #tpu.memory_space<vmem>>, vector<1x1x32xf32>
    %366 = vector.shape_cast %365 : vector<1x1x32xf32> to vector<1x32xf32>
    %367 = vector.broadcast %366 : vector<1x32xf32> to vector<32x32xf32>
    %368 = arith.addf %364, %367 : vector<32x32xf32>
    %369 = arith.addf %339, %368 : vector<32x32xf32>
    %c1_232 = arith.constant 1 : index
    %c0_233 = arith.constant 0 : index
    %c0_234 = arith.constant 0 : index
    %370 = vector.load %arg18[%c1_232, %c0_233, %c0_234] : memref<2x1x32xf32, #tpu.memory_space<vmem>>, vector<1x1x32xf32>
    %371 = vector.shape_cast %370 : vector<1x1x32xf32> to vector<1x32xf32>
    %c1_235 = arith.constant 1 : index
    %c0_236 = arith.constant 0 : index
    %c0_237 = arith.constant 0 : index
    %372 = vector.load %arg19[%c1_235, %c0_236, %c0_237] : memref<2x1x32xf32, #tpu.memory_space<vmem>>, vector<1x1x32xf32>
    %373 = vector.shape_cast %372 : vector<1x1x32xf32> to vector<1x32xf32>
    %cst_238 = arith.constant dense<0.000000e+00> : vector<32xf32>
    %374 = vector.multi_reduction <add>, %369, %cst_238 [1] : vector<32x32xf32> to vector<32xf32>
    %375 = vector.shape_cast %374 : vector<32xf32> to vector<32x1xf32>
    %cst_239 = arith.constant 3.200000e+01 : f32
    %376 = vector.broadcast %cst_239 : f32 to vector<32x1xf32>
    %377 = arith.divf %375, %376 : vector<32x1xf32>
    %378 = vector.broadcast %377 : vector<32x1xf32> to vector<32x32xf32>
    %379 = arith.subf %369, %378 : vector<32x32xf32>
    %380 = arith.mulf %379, %379 : vector<32x32xf32>
    %cst_240 = arith.constant dense<0.000000e+00> : vector<32xf32>
    %381 = vector.multi_reduction <add>, %380, %cst_240 [1] : vector<32x32xf32> to vector<32xf32>
    %382 = vector.shape_cast %381 : vector<32xf32> to vector<32x1xf32>
    %cst_241 = arith.constant 3.200000e+01 : f32
    %383 = vector.broadcast %cst_241 : f32 to vector<32x1xf32>
    %384 = arith.divf %382, %383 : vector<32x1xf32>
    %385 = vector.broadcast %377 : vector<32x1xf32> to vector<32x32xf32>
    %386 = arith.subf %369, %385 : vector<32x32xf32>
    %cst_242 = arith.constant 9.99999996E-13 : f32
    %387 = vector.broadcast %cst_242 : f32 to vector<32x1xf32>
    %388 = arith.addf %384, %387 : vector<32x1xf32>
    %389 = math.rsqrt %388 : vector<32x1xf32>
    %390 = vector.broadcast %389 : vector<32x1xf32> to vector<32x32xf32>
    %391 = arith.mulf %386, %390 : vector<32x32xf32>
    %392 = vector.broadcast %371 : vector<1x32xf32> to vector<32x32xf32>
    %393 = arith.mulf %391, %392 : vector<32x32xf32>
    %394 = vector.broadcast %373 : vector<1x32xf32> to vector<32x32xf32>
    %395 = arith.addf %393, %394 : vector<32x32xf32>
    %c0_243 = arith.constant 0 : index
    %c0_244 = arith.constant 0 : index
    %396 = vector.load %arg20[%c0_243, %c0_244] : memref<32x32xf32, #tpu.memory_space<vmem>>, vector<32x32xf32>
    tpu.vector_store %arg20[%c0_243, %c0_244], %395 {strides = array<i32>} : memref<32x32xf32, #tpu.memory_space<vmem>>, vector<32x32xf32>,
    return
  }
}

</mosaic_0001>

<llo_original>
// kernel: text_encoder_forward.1
$region0: #{text_encoder_forward.1}
  #allocation0 [shape = 'u32[]', space=smem, size = 0x4, offset = 0x4, fixed_abs, tag = 'smem constant byte address 0x4 - core index']
  #allocation1 [shape = 'u32[144,128]{1,0:T(1,128)}', space=vmem, size = 0x12000, scoped, tag = 'internal scratch']
  %s0 = inlined_call_operand.vmem [shape: f32[32,32], index: 0, kind: input, shape index: {}]
  %s1 = inlined_call_operand.vmem [shape: f32[4,1,8], index: 1, kind: input, shape index: {}]
  %s2 = inlined_call_operand.vmem [shape: f32[1,32], index: 2, kind: input, shape index: {}]
  %s3 = inlined_call_operand.vmem [shape: f32[1,32], index: 3, kind: input, shape index: {}]
  %s4 = inlined_call_operand.vmem [shape: bf16[2,2,32,16], index: 4, kind: input, shape index: {}]
  %s5 = inlined_call_operand.vmem [shape: f32[2,2,1,16], index: 5, kind: input, shape index: {}]
  %s6 = inlined_call_operand.vmem [shape: bf16[2,2,32,16], index: 6, kind: input, shape index: {}]
  %s7 = inlined_call_operand.vmem [shape: f32[2,2,1,16], index: 7, kind: input, shape index: {}]
  %s8 = inlined_call_operand.vmem [shape: bf16[2,2,32,16], index: 8, kind: input, shape index: {}]
  %s9 = inlined_call_operand.vmem [shape: f32[2,2,1,16], index: 9, kind: input, shape index: {}]
  %s10 = inlined_call_operand.vmem [shape: bf16[2,2,16,32], index: 10, kind: input, shape index: {}]
  %s11 = inlined_call_operand.vmem [shape: f32[2,1,32], index: 11, kind: input, shape index: {}]
  %s12 = inlined_call_operand.vmem [shape: f32[2,1,32], index: 12, kind: input, shape index: {}]
  %s13 = inlined_call_operand.vmem [shape: f32[2,1,32], index: 13, kind: input, shape index: {}]
  %s14 = inlined_call_operand.vmem [shape: bf16[2,32,64], index: 14, kind: input, shape index: {}]
  %s15 = inlined_call_operand.vmem [shape: f32[2,1,64], index: 15, kind: input, shape index: {}]
  %s16 = inlined_call_operand.vmem [shape: bf16[2,64,32], index: 16, kind: input, shape index: {}]
  %s17 = inlined_call_operand.vmem [shape: f32[2,1,32], index: 17, kind: input, shape index: {}]
  %s18 = inlined_call_operand.vmem [shape: f32[2,1,32], index: 18, kind: input, shape index: {}]
  %s19 = inlined_call_operand.vmem [shape: f32[2,1,32], index: 19, kind: input, shape index: {}]
  %s20 = inlined_call_operand.hbm [shape: f32[32,32], index: 20, kind: output, shape index: {}]
  %s21 = sld [smem:[#allocation0]]
  $region90: #{text_encoder_forward.1} parent=0
    _
  %s23 = ssub.s32 1, %s21
  %s24 = scalar_select 0, %s23, %s21
  $region1: #{text_encoder_forward.1} parent=0
    #allocation2 [shape = 'u8[16384]{0}', space=vmem, size = 0x4000, scoped, tag = 'output window, operand 0, single buffered']
    #allocation3 [shape = 's32[1]{0}', space=sflag, size = 0x4, scoped, tag = 'scoped memory for text_encoder_forward.1']
    %25 = vsyncpa [#allocation3], 0
    // Predicated region
    $region2: #{text_encoder_forward.1} parent=1 // pred_check
      _
    $region3: #{text_encoder_forward.1} parent=1 // pred_check_branch
      %27 = sbr.rel (0) target = $region5
    $region4: #{text_encoder_forward.1} parent=1 // pred_region
      _
    $region5: #{text_encoder_forward.1} parent=1 // pred_fallthru
      _
    // Predicated region
    $region6: #{text_encoder_forward.1} parent=1 // pred_check
      _
    $region7: #{text_encoder_forward.1} parent=1 // pred_check_branch
      %29 = sbr.rel (0) target = $region9
    $region8: #{text_encoder_forward.1} parent=1 // pred_region
      _
    $region9: #{text_encoder_forward.1} parent=1 // pred_fallthru
      _
    // Predicated region
    $region10: #{text_encoder_forward.1} parent=1 // pred_check
      _
    $region11: #{text_encoder_forward.1} parent=1 // pred_check_branch
      %31 = sbr.rel (0) target = $region13
    $region12: #{text_encoder_forward.1} parent=1 // pred_region
      _
    $region13: #{text_encoder_forward.1} parent=1 // pred_fallthru
      _
    // Predicated region
    $region14: #{text_encoder_forward.1} parent=1 // pred_check
      _
    $region15: #{text_encoder_forward.1} parent=1 // pred_check_branch
      %33 = sbr.rel (0) target = $region17
    $region16: #{text_encoder_forward.1} parent=1 // pred_region
      _
    $region17: #{text_encoder_forward.1} parent=1 // pred_fallthru
      _
    // Predicated region
    $region18: #{text_encoder_forward.1} parent=1 // pred_check
      _
    $region19: #{text_encoder_forward.1} parent=1 // pred_check_branch
      %35 = sbr.rel (0) target = $region21
    $region20: #{text_encoder_forward.1} parent=1 // pred_region
      _
    $region21: #{text_encoder_forward.1} parent=1 // pred_fallthru
      _
    // Predicated region
    $region22: #{text_encoder_forward.1} parent=1 // pred_check
      _
    $region23: #{text_encoder_forward.1} parent=1 // pred_check_branch
      %37 = sbr.rel (0) target = $region25
    $region24: #{text_encoder_forward.1} parent=1 // pred_region
      _
    $region25: #{text_encoder_forward.1} parent=1 // pred_fallthru
      _
    // Predicated region
    $region26: #{text_encoder_forward.1} parent=1 // pred_check
      _
    $region27: #{text_encoder_forward.1} parent=1 // pred_check_branch
      %39 = sbr.rel (0) target = $region29
    $region28: #{text_encoder_forward.1} parent=1 // pred_region
      _
    $region29: #{text_encoder_forward.1} parent=1 // pred_fallthru
      _
    // Predicated region
    $region30: #{text_encoder_forward.1} parent=1 // pred_check
      _
    $region31: #{text_encoder_forward.1} parent=1 // pred_check_branch
      %41 = sbr.rel (0) target = $region33
    $region32: #{text_encoder_forward.1} parent=1 // pred_region
      _
    $region33: #{text_encoder_forward.1} parent=1 // pred_fallthru
      _
    // Predicated region
    $region34: #{text_encoder_forward.1} parent=1 // pred_check
      _
    $region35: #{text_encoder_forward.1} parent=1 // pred_check_branch
      %43 = sbr.rel (0) target = $region37
    $region36: #{text_encoder_forward.1} parent=1 // pred_region
      _
    $region37: #{text_encoder_forward.1} parent=1 // pred_fallthru
      _
    // Predicated region
    $region38: #{text_encoder_forward.1} parent=1 // pred_check
      _
    $region39: #{text_encoder_forward.1} parent=1 // pred_check_branch
      %45 = sbr.rel (0) target = $region41
    $region40: #{text_encoder_forward.1} parent=1 // pred_region
      _
    $region41: #{text_encoder_forward.1} parent=1 // pred_fallthru
      _
    // Predicated region
    $region42: #{text_encoder_forward.1} parent=1 // pred_check
      _
    $region43: #{text_encoder_forward.1} parent=1 // pred_check_branch
      %47 = sbr.rel (0) target = $region45
    $region44: #{text_encoder_forward.1} parent=1 // pred_region
      _
    $region45: #{text_encoder_forward.1} parent=1 // pred_fallthru
      _
    // Predicated region
    $region46: #{text_encoder_forward.1} parent=1 // pred_check
      _
    $region47: #{text_encoder_forward.1} parent=1 // pred_check_branch
      %49 = sbr.rel (0) target = $region49
    $region48: #{text_encoder_forward.1} parent=1 // pred_region
      _
    $region49: #{text_encoder_forward.1} parent=1 // pred_fallthru
      _
    // Predicated region
    $region50: #{text_encoder_forward.1} parent=1 // pred_check
      _
    $region51: #{text_encoder_forward.1} parent=1 // pred_check_branch
      %51 = sbr.rel (0) target = $region53
    $region52: #{text_encoder_forward.1} parent=1 // pred_region
      _
    $region53: #{text_encoder_forward.1} parent=1 // pred_fallthru
      _
    // Predicated region
    $region54: #{text_encoder_forward.1} parent=1 // pred_check
      _
    $region55: #{text_encoder_forward.1} parent=1 // pred_check_branch
      %53 = sbr.rel (0) target = $region57
    $region56: #{text_encoder_forward.1} parent=1 // pred_region
      _
    $region57: #{text_encoder_forward.1} parent=1 // pred_fallthru
      _
    // Predicated region
    $region58: #{text_encoder_forward.1} parent=1 // pred_check
      _
    $region59: #{text_encoder_forward.1} parent=1 // pred_check_branch
      %55 = sbr.rel (0) target = $region61
    $region60: #{text_encoder_forward.1} parent=1 // pred_region
      _
    $region61: #{text_encoder_forward.1} parent=1 // pred_fallthru
      _
    // Predicated region
    $region62: #{text_encoder_forward.1} parent=1 // pred_check
      _
    $region63: #{text_encoder_forward.1} parent=1 // pred_check_branch
      %57 = sbr.rel (0) target = $region65
    $region64: #{text_encoder_forward.1} parent=1 // pred_region
      _
    $region65: #{text_encoder_forward.1} parent=1 // pred_fallthru
      _
    // Predicated region
    $region66: #{text_encoder_forward.1} parent=1 // pred_check
      _
    $region67: #{text_encoder_forward.1} parent=1 // pred_check_branch
      %59 = sbr.rel (0) target = $region69
    $region68: #{text_encoder_forward.1} parent=1 // pred_region
      _
    $region69: #{text_encoder_forward.1} parent=1 // pred_fallthru
      _
    // Predicated region
    $region70: #{text_encoder_forward.1} parent=1 // pred_check
      _
    $region71: #{text_encoder_forward.1} parent=1 // pred_check_branch
      %61 = sbr.rel (0) target = $region73
    $region72: #{text_encoder_forward.1} parent=1 // pred_region
      _
    $region73: #{text_encoder_forward.1} parent=1 // pred_fallthru
      _
    // Predicated region
    $region74: #{text_encoder_forward.1} parent=1 // pred_check
      _
    $region75: #{text_encoder_forward.1} parent=1 // pred_check_branch
      %63 = sbr.rel (0) target = $region77
    $region76: #{text_encoder_forward.1} parent=1 // pred_region
      _
    $region77: #{text_encoder_forward.1} parent=1 // pred_fallthru
      _
    // Predicated region
    $region78: #{text_encoder_forward.1} parent=1 // pred_check
      _
    $region79: #{text_encoder_forward.1} parent=1 // pred_check_branch
      %65 = sbr.rel (0) target = $region81
    $region80: #{text_encoder_forward.1} parent=1 // pred_region
      _
    $region81: #{text_encoder_forward.1} parent=1 // pred_fallthru
      _
    %v67 = vld [vmem:[%s1] sm:$0x1]
    %v68 = vld [vmem:[%s1 + $0x1] sm:$0x1]
    %v69 = vld [vmem:[%s1 + $0x2] sm:$0x1]
    %v70 = vld [vmem:[%s1 + $0x3] sm:$0x1]
    %v71 = vld [vmem:[%s0] sm:$0xff]
    %v72 = vld [vmem:[%s0 + $0x8] sm:$0xff]
    %v73 = vld [vmem:[%s0 + $0x10] sm:$0xff]
    %v74 = vld [vmem:[%s0 + $0x18] sm:$0xff]
    %v75 = vld [vmem:[%s2] sm:$0x1]
    %v76 = vld [vmem:[%s3] sm:$0x1]
    %vm77 = vcmask 261120
    %v78 = vsel %vm77, %v71, 0.0
    %79 = vadd.xlane.f32.xlu0 %v78
    %v80 = vpop.xlane.xlu0 %79
    %v81 = vsel %vm77, %v72, 0.0
    %82 = vadd.xlane.f32.xlu0 %v81
    %v83 = vpop.xlane.xlu0 %82
    %v84 = vsel %vm77, %v73, 0.0
    %85 = vadd.xlane.f32.xlu0 %v84
    %v86 = vpop.xlane.xlu0 %85
    %v87 = vsel %vm77, %v74, 0.0
    %88 = vadd.xlane.f32.xlu0 %v87
    %v89 = vpop.xlane.xlu0 %88
    %v90 = vrcp.pop 32.0
    %v91 = vmul.f32 %v80, %v90
    %v92 = vmul.f32 %v83, %v90
    %v93 = vmul.f32 %v86, %v90
    %v94 = vmul.f32 %v89, %v90
    %v95 = vsub.f32 %v71, %v91
    %v96 = vsub.f32 %v72, %v92
    %v97 = vsub.f32 %v73, %v93
    %v98 = vsub.f32 %v74, %v94
    %v99 = vmul.f32 %v95, %v95
    %v100 = vmul.f32 %v96, %v96
    %v101 = vmul.f32 %v97, %v97
    %v102 = vmul.f32 %v98, %v98
    %v103 = vsel %vm77, %v99, 0.0
    %104 = vadd.xlane.f32.xlu0 %v103
    %v105 = vpop.xlane.xlu0 %104
    %v106 = vsel %vm77, %v100, 0.0
    %107 = vadd.xlane.f32.xlu0 %v106
    %v108 = vpop.xlane.xlu0 %107
    %v109 = vsel %vm77, %v101, 0.0
    %110 = vadd.xlane.f32.xlu0 %v109
    %v111 = vpop.xlane.xlu0 %110
    %v112 = vsel %vm77, %v102, 0.0
    %113 = vadd.xlane.f32.xlu0 %v112
    %v114 = vpop.xlane.xlu0 %113
    %v115 = vmul.f32 %v105, %v90
    %v116 = vmul.f32 %v108, %v90
    %v117 = vmul.f32 %v111, %v90
    %v118 = vmul.f32 %v114, %v90
    %v119 = vadd.f32 %v115, 1e-12
    %v120 = vadd.f32 %v116, 1e-12
    %v121 = vadd.f32 %v117, 1e-12
    %v122 = vadd.f32 %v118, 1e-12
    %v123 = vrsqrt.pop %v119
    %v124 = vrsqrt.pop %v120
    %v125 = vrsqrt.pop %v121
    %v126 = vrsqrt.pop %v122
    %v127 = vmul.f32 %v95, %v123
    %v128 = vmul.f32 %v96, %v124
    %v129 = vmul.f32 %v97, %v125
    %v130 = vmul.f32 %v98, %v126
    %v132 = vlaneseq
    %v133 = vshrl.u32 %v132, 7
    %v134 = vsub.s32 0, %v133
    %v135 = vrot.slane %v75, %v134
    %v137 = vmul.f32 %v127, %v135
    %v138 = vmul.f32 %v128, %v135
    %v139 = vmul.f32 %v129, %v135
    %v140 = vmul.f32 %v130, %v135
    %v142 = vlaneseq
    %v143 = vshrl.u32 %v142, 7
    %v144 = vsub.s32 0, %v143
    %v145 = vrot.slane %v76, %v144
    %v147 = vadd.f32 %v137, %v145
    %v148 = vadd.f32 %v138, %v145
    %v149 = vadd.f32 %v139, %v145
    %v150 = vadd.f32 %v140, %v145
    %v151 = vpack.c.bf16 %v148, %v147
    %v152 = vpack.c.bf16 %v150, %v149
    %v153 = vld [vmem:[%s4] sm:$0xf]
    %v154 = vld [vmem:[%s4 + $0x4] sm:$0xf]
    %v155 = vld [vmem:[%s4 + $0x8] sm:$0xf]
    %v156 = vld [vmem:[%s4 + $0xc] sm:$0xf]
    %v157 = vld [vmem:[%s5] sm:$0x1]
    %v159 = vlaneseq
    %v160 = vshrl.u32 %v159, 7
    %v161 = vsub.s32 0, %v160
    %v162 = vrot.slane %v157, %v161
    %v168 = vunpack.c.l.b16 %v153
    %v169 = vunpack.c.l.b16 %v154
    %v170 = vunpack.c.l.b16 %v155
    %v171 = vunpack.c.l.b16 %v156
    %v172 = vpack.c.b16 %v169, %v168
    %v173 = vpack.c.b16 %v171, %v170
    %v177 = vsel %vm77, %v151, 0
    %v180 = vsel %vm77, %v152, 0
    %182 = vmatprep.subr.bf16.mxu0 0
    %183 = vmatpush1.bf16.msra.mxu0 %v172
    %184 = vmatprep.subr.bf16.mxu0 0
    %185 = vmatpush1.bf16.msra.mxu0 %v173
    %186 = vmatprep.subr.bf16.mxu0 0
    %187 = vmatpush1.bf16.msra.mxu0 0
    %188 = vmatprep.subr.bf16.mxu0 0
    %189 = vmatpush1.bf16.msra.mxu0 0
    %190 = vmatprep.subr.bf16.mxu0 0
    %191 = vmatpush1.bf16.msra.mxu0 0
    %192 = vmatprep.subr.bf16.mxu0 0
    %193 = vmatpush1.bf16.msra.mxu0 0
    %194 = vmatprep.subr.bf16.mxu0 0
    %195 = vmatpush1.bf16.msra.mxu0 0
    %196 = vmatprep.subr.bf16.mxu0 0
    %197 = vmatpush1.bf16.msra.mxu0 0
    %198 = vmatprep.subr.bf16.mxu0 0
    %199 = vmatpush1.bf16.msra.mxu0 0
    %200 = vmatprep.subr.bf16.mxu0 0
    %201 = vmatpush1.bf16.msra.mxu0 0
    %202 = vmatprep.subr.bf16.mxu0 0
    %203 = vmatpush1.bf16.msra.mxu0 0
    %204 = vmatprep.subr.bf16.mxu0 0
    %205 = vmatpush1.bf16.msra.mxu0 0
    %206 = vmatprep.subr.bf16.mxu0 0
    %207 = vmatpush1.bf16.msra.mxu0 0
    %208 = vmatprep.subr.bf16.mxu0 0
    %209 = vmatpush1.bf16.msra.mxu0 0
    %210 = vmatprep.subr.bf16.mxu0 0
    %211 = vmatpush1.bf16.msra.mxu0 0
    %212 = vmatprep.subr.bf16.mxu0 0
    %213 = vmatpush1.bf16.msra.mxu0 0
    %214 = vmatprep.mubr.bf16.mxu0 0
    %215 = vmatmul.mubr.bf16.gmra.mrb[0].mxu0 %v177
    %v216 = vpop.f32.mrb[0].mxu0
    %v217 = vadd.f32 %v162, %v216
    %v218 = vpop.f32.mrb[0].mxu0
    %v219 = vpop.f32.mrb[0].mxu0
    %v220 = vadd.f32 %v162, %v219
    %v221 = vpop.f32.mrb[0].mxu0
    %222 = vmatprep.mubr.bf16.mxu0 0
    %223 = vmatmul.mubr.bf16.gmra.mrb[0].mxu0 %v180
    %v224 = vpop.f32.mrb[0].mxu0
    %v225 = vadd.f32 %v162, %v224
    %v226 = vpop.f32.mrb[0].mxu0
    %v227 = vpop.f32.mrb[0].mxu0
    %v228 = vadd.f32 %v162, %v227
    %v229 = vpop.f32.mrb[0].mxu0
    %230 = vdwg.mxu0
    %v231 = vld [vmem:[%s6] sm:$0xf]
    %v232 = vld [vmem:[%s6 + $0x4] sm:$0xf]
    %v233 = vld [vmem:[%s6 + $0x8] sm:$0xf]
    %v234 = vld [vmem:[%s6 + $0xc] sm:$0xf]
    %v235 = vld [vmem:[%s7] sm:$0x1]
    %v237 = vlaneseq
    %v238 = vshrl.u32 %v237, 7
    %v239 = vsub.s32 0, %v238
    %v240 = vrot.slane %v235, %v239
    %v246 = vunpack.c.l.b16 %v231
    %v247 = vunpack.c.l.b16 %v232
    %v248 = vunpack.c.l.b16 %v233
    %v249 = vunpack.c.l.b16 %v234
    %v250 = vpack.c.b16 %v247, %v246
    %v251 = vpack.c.b16 %v249, %v248
    %254 = vmatprep.subr.bf16.mxu0 0
    %255 = vmatpush1.bf16.msra.mxu0 %v250
    %256 = vmatprep.subr.bf16.mxu0 0
    %257 = vmatpush1.bf16.msra.mxu0 %v251
    %258 = vmatprep.subr.bf16.mxu0 0
    %259 = vmatpush1.bf16.msra.mxu0 0
    %260 = vmatprep.subr.bf16.mxu0 0
    %261 = vmatpush1.bf16.msra.mxu0 0
    %262 = vmatprep.subr.bf16.mxu0 0
    %263 = vmatpush1.bf16.msra.mxu0 0
    %264 = vmatprep.subr.bf16.mxu0 0
    %265 = vmatpush1.bf16.msra.mxu0 0
    %266 = vmatprep.subr.bf16.mxu0 0
    %267 = vmatpush1.bf16.msra.mxu0 0
    %268 = vmatprep.subr.bf16.mxu0 0
    %269 = vmatpush1.bf16.msra.mxu0 0
    %270 = vmatprep.subr.bf16.mxu0 0
    %271 = vmatpush1.bf16.msra.mxu0 0
    %272 = vmatprep.subr.bf16.mxu0 0
    %273 = vmatpush1.bf16.msra.mxu0 0
    %274 = vmatprep.subr.bf16.mxu0 0
    %275 = vmatpush1.bf16.msra.mxu0 0
    %276 = vmatprep.subr.bf16.mxu0 0
    %277 = vmatpush1.bf16.msra.mxu0 0
    %278 = vmatprep.subr.bf16.mxu0 0
    %279 = vmatpush1.bf16.msra.mxu0 0
    %280 = vmatprep.subr.bf16.mxu0 0
    %281 = vmatpush1.bf16.msra.mxu0 0
    %282 = vmatprep.subr.bf16.mxu0 0
    %283 = vmatpush1.bf16.msra.mxu0 0
    %284 = vmatprep.subr.bf16.mxu0 0
    %285 = vmatpush1.bf16.msra.mxu0 0
    %286 = vmatprep.mubr.bf16.mxu0 0
    %287 = vmatmul.mubr.bf16.gmra.mrb[0].mxu0 %v177
    %v288 = vpop.f32.mrb[0].mxu0
    %v289 = vadd.f32 %v240, %v288
    %v290 = vpop.f32.mrb[0].mxu0
    %v291 = vpop.f32.mrb[0].mxu0
    %v292 = vadd.f32 %v240, %v291
    %v293 = vpop.f32.mrb[0].mxu0
    %294 = vmatprep.mubr.bf16.mxu0 0
    %295 = vmatmul.mubr.bf16.gmra.mrb[0].mxu0 %v180
    %v296 = vpop.f32.mrb[0].mxu0
    %v297 = vadd.f32 %v240, %v296
    %v298 = vpop.f32.mrb[0].mxu0
    %v299 = vpop.f32.mrb[0].mxu0
    %v300 = vadd.f32 %v240, %v299
    %v301 = vpop.f32.mrb[0].mxu0
    %302 = vdwg.mxu0
    %v303 = vld [vmem:[%s8] sm:$0xf]
    %v304 = vld [vmem:[%s8 + $0x4] sm:$0xf]
    %v305 = vld [vmem:[%s8 + $0x8] sm:$0xf]
    %v306 = vld [vmem:[%s8 + $0xc] sm:$0xf]
    %v307 = vld [vmem:[%s9] sm:$0x1]
    %v309 = vlaneseq
    %v310 = vshrl.u32 %v309, 7
    %v311 = vsub.s32 0, %v310
    %v312 = vrot.slane %v307, %v311
    %v318 = vunpack.c.l.b16 %v303
    %v319 = vunpack.c.l.b16 %v304
    %v320 = vunpack.c.l.b16 %v305
    %v321 = vunpack.c.l.b16 %v306
    %v322 = vpack.c.b16 %v319, %v318
    %v323 = vpack.c.b16 %v321, %v320
    %326 = vmatprep.subr.bf16.mxu0 0
    %327 = vmatpush1.bf16.msra.mxu0 %v322
    %328 = vmatprep.subr.bf16.mxu0 0
    %329 = vmatpush1.bf16.msra.mxu0 %v323
    %330 = vmatprep.subr.bf16.mxu0 0
    %331 = vmatpush1.bf16.msra.mxu0 0
    %332 = vmatprep.subr.bf16.mxu0 0
    %333 = vmatpush1.bf16.msra.mxu0 0
    %334 = vmatprep.subr.bf16.mxu0 0
    %335 = vmatpush1.bf16.msra.mxu0 0
    %336 = vmatprep.subr.bf16.mxu0 0
    %337 = vmatpush1.bf16.msra.mxu0 0
    %338 = vmatprep.subr.bf16.mxu0 0
    %339 = vmatpush1.bf16.msra.mxu0 0
    %340 = vmatprep.subr.bf16.mxu0 0
    %341 = vmatpush1.bf16.msra.mxu0 0
    %342 = vmatprep.subr.bf16.mxu0 0
    %343 = vmatpush1.bf16.msra.mxu0 0
    %344 = vmatprep.subr.bf16.mxu0 0
    %345 = vmatpush1.bf16.msra.mxu0 0
    %346 = vmatprep.subr.bf16.mxu0 0
    %347 = vmatpush1.bf16.msra.mxu0 0
    %348 = vmatprep.subr.bf16.mxu0 0
    %349 = vmatpush1.bf16.msra.mxu0 0
    %350 = vmatprep.subr.bf16.mxu0 0
    %351 = vmatpush1.bf16.msra.mxu0 0
    %352 = vmatprep.subr.bf16.mxu0 0
    %353 = vmatpush1.bf16.msra.mxu0 0
    %354 = vmatprep.subr.bf16.mxu0 0
    %355 = vmatpush1.bf16.msra.mxu0 0
    %356 = vmatprep.subr.bf16.mxu0 0
    %357 = vmatpush1.bf16.msra.mxu0 0
    %358 = vmatprep.mubr.bf16.mxu0 0
    %359 = vmatmul.mubr.bf16.gmra.mrb[0].mxu0 %v177
    %v360 = vpop.f32.mrb[0].mxu0
    %v361 = vadd.f32 %v312, %v360
    %v362 = vpop.f32.mrb[0].mxu0
    %v363 = vpop.f32.mrb[0].mxu0
    %v364 = vadd.f32 %v312, %v363
    %v365 = vpop.f32.mrb[0].mxu0
    %366 = vmatprep.mubr.bf16.mxu0 0
    %367 = vmatmul.mubr.bf16.gmra.mrb[0].mxu0 %v180
    %v368 = vpop.f32.mrb[0].mxu0
    %v369 = vadd.f32 %v312, %v368
    %v370 = vpop.f32.mrb[0].mxu0
    %v371 = vpop.f32.mrb[0].mxu0
    %v372 = vadd.f32 %v312, %v371
    %v373 = vpop.f32.mrb[0].mxu0
    %374 = vdwg.mxu0
    %v375 = vpack.c.bf16 %v217, %v217
    %v376 = vpack.c.bf16 %v220, %v220
    %v377 = vpack.c.bf16 %v225, %v225
    %v378 = vpack.c.bf16 %v228, %v228
    %v379 = vpack.c.bf16 %v289, %v289
    %v380 = vpack.c.bf16 %v292, %v292
    %v381 = vpack.c.bf16 %v297, %v297
    %v382 = vpack.c.bf16 %v300, %v300
    %v383 = vpack.c.bf16 %v361, %v361
    %v384 = vpack.c.bf16 %v364, %v364
    %v385 = vpack.c.bf16 %v369, %v369
    %v386 = vpack.c.bf16 %v372, %v372
    %v391 = vlaneseq
    %v392 = vshrl.u32 %v391, 7
    %v393 = vsub.s32 0, %v392
    %v394 = vrot.slane %v67, %v393
    %v395 = vlaneseq
    %v396 = vshrl.u32 %v395, 7
    %v397 = vsub.s32 0, %v396
    %v398 = vrot.slane %v68, %v397
    %v399 = vlaneseq
    %v400 = vshrl.u32 %v399, 7
    %v401 = vsub.s32 0, %v400
    %v402 = vrot.slane %v69, %v401
    %v403 = vlaneseq
    %v404 = vshrl.u32 %v403, 7
    %v405 = vsub.s32 0, %v404
    %v406 = vrot.slane %v70, %v405
    %vm411 = vcmask 130048
    %v413 = vsel %vm411, %v375, 0
    %v416 = vsel %vm411, %v379, 0
    %418 = vmatprep.subr.bf16.mxu0 0
    %419 = vmatpush1.bf16.xpose.msra.mxu0 %v416
    %420 = vmatprep.subr.bf16.mxu0 0
    %421 = vmatpush1.bf16.xpose.msra.mxu0 0
    %422 = vmatprep.subr.bf16.mxu0 0
    %423 = vmatpush1.bf16.xpose.msra.mxu0 0
    %424 = vmatprep.subr.bf16.mxu0 0
    %425 = vmatpush1.bf16.xpose.msra.mxu0 0
    %426 = vmatprep.subr.bf16.mxu0 0
    %427 = vmatpush1.bf16.xpose.msra.mxu0 0
    %428 = vmatprep.subr.bf16.mxu0 0
    %429 = vmatpush1.bf16.xpose.msra.mxu0 0
    %430 = vmatprep.subr.bf16.mxu0 0
    %431 = vmatpush1.bf16.xpose.msra.mxu0 0
    %432 = vmatprep.subr.bf16.mxu0 0
    %433 = vmatpush1.bf16.xpose.msra.mxu0 0
    %434 = vmatprep.subr.bf16.mxu0 0
    %435 = vmatpush1.bf16.xpose.msra.mxu0 0
    %436 = vmatprep.subr.bf16.mxu0 0
    %437 = vmatpush1.bf16.xpose.msra.mxu0 0
    %438 = vmatprep.subr.bf16.mxu0 0
    %439 = vmatpush1.bf16.xpose.msra.mxu0 0
    %440 = vmatprep.subr.bf16.mxu0 0
    %441 = vmatpush1.bf16.xpose.msra.mxu0 0
    %442 = vmatprep.subr.bf16.mxu0 0
    %443 = vmatpush1.bf16.xpose.msra.mxu0 0
    %444 = vmatprep.subr.bf16.mxu0 0
    %445 = vmatpush1.bf16.xpose.msra.mxu0 0
    %446 = vmatprep.subr.bf16.mxu0 0
    %447 = vmatpush1.bf16.xpose.msra.mxu0 0
    %448 = vmatprep.subr.bf16.mxu0 0
    %449 = vmatpush1.bf16.xpose.msra.mxu0 0
    %450 = vmatprep.mubr.bf16.mxu0 0
    %451 = vmatmul.mubr.bf16.gmra.mrb[0].mxu0 %v413
    %v452 = vpop.f32.mrb[0].mxu0
    %v453 = vadd.f32 %v394, %v452
    %v454 = vpop.f32.mrb[0].mxu0
    %v455 = vpop.f32.mrb[0].mxu0
    %v456 = vpop.f32.mrb[0].mxu0
    %457 = vdwg.mxu0
    %v459 = vsel %vm411, %v376, 0
    %v462 = vsel %vm411, %v380, 0
    %464 = vmatprep.subr.bf16.mxu0 0
    %465 = vmatpush1.bf16.xpose.msra.mxu0 %v462
    %466 = vmatprep.subr.bf16.mxu0 0
    %467 = vmatpush1.bf16.xpose.msra.mxu0 0
    %468 = vmatprep.subr.bf16.mxu0 0
    %469 = vmatpush1.bf16.xpose.msra.mxu0 0
    %470 = vmatprep.subr.bf16.mxu0 0
    %471 = vmatpush1.bf16.xpose.msra.mxu0 0
    %472 = vmatprep.subr.bf16.mxu0 0
    %473 = vmatpush1.bf16.xpose.msra.mxu0 0
    %474 = vmatprep.subr.bf16.mxu0 0
    %475 = vmatpush1.bf16.xpose.msra.mxu0 0
    %476 = vmatprep.subr.bf16.mxu0 0
    %477 = vmatpush1.bf16.xpose.msra.mxu0 0
    %478 = vmatprep.subr.bf16.mxu0 0
    %479 = vmatpush1.bf16.xpose.msra.mxu0 0
    %480 = vmatprep.subr.bf16.mxu0 0
    %481 = vmatpush1.bf16.xpose.msra.mxu0 0
    %482 = vmatprep.subr.bf16.mxu0 0
    %483 = vmatpush1.bf16.xpose.msra.mxu0 0
    %484 = vmatprep.subr.bf16.mxu0 0
    %485 = vmatpush1.bf16.xpose.msra.mxu0 0
    %486 = vmatprep.subr.bf16.mxu0 0
    %487 = vmatpush1.bf16.xpose.msra.mxu0 0
    %488 = vmatprep.subr.bf16.mxu0 0
    %489 = vmatpush1.bf16.xpose.msra.mxu0 0
    %490 = vmatprep.subr.bf16.mxu0 0
    %491 = vmatpush1.bf16.xpose.msra.mxu0 0
    %492 = vmatprep.subr.bf16.mxu0 0
    %493 = vmatpush1.bf16.xpose.msra.mxu0 0
    %494 = vmatprep.subr.bf16.mxu0 0
    %495 = vmatpush1.bf16.xpose.msra.mxu0 0
    %496 = vmatprep.mubr.bf16.mxu0 0
    %497 = vmatmul.mubr.bf16.gmra.mrb[0].mxu0 %v459
    %v498 = vpop.f32.mrb[0].mxu0
    %v499 = vadd.f32 %v398, %v498
    %v500 = vpop.f32.mrb[0].mxu0
    %v501 = vpop.f32.mrb[0].mxu0
    %v502 = vpop.f32.mrb[0].mxu0
    %503 = vdwg.mxu0
    %v505 = vsel %vm411, %v377, 0
    %v508 = vsel %vm411, %v381, 0
    %510 = vmatprep.subr.bf16.mxu0 0
    %511 = vmatpush1.bf16.xpose.msra.mxu0 %v508
    %512 = vmatprep.subr.bf16.mxu0 0
    %513 = vmatpush1.bf16.xpose.msra.mxu0 0
    %514 = vmatprep.subr.bf16.mxu0 0
    %515 = vmatpush1.bf16.xpose.msra.mxu0 0
    %516 = vmatprep.subr.bf16.mxu0 0
    %517 = vmatpush1.bf16.xpose.msra.mxu0 0
    %518 = vmatprep.subr.bf16.mxu0 0
    %519 = vmatpush1.bf16.xpose.msra.mxu0 0
    %520 = vmatprep.subr.bf16.mxu0 0
    %521 = vmatpush1.bf16.xpose.msra.mxu0 0
    %522 = vmatprep.subr.bf16.mxu0 0
    %523 = vmatpush1.bf16.xpose.msra.mxu0 0
    %524 = vmatprep.subr.bf16.mxu0 0
    %525 = vmatpush1.bf16.xpose.msra.mxu0 0
    %526 = vmatprep.subr.bf16.mxu0 0
    %527 = vmatpush1.bf16.xpose.msra.mxu0 0
    %528 = vmatprep.subr.bf16.mxu0 0
    %529 = vmatpush1.bf16.xpose.msra.mxu0 0
    %530 = vmatprep.subr.bf16.mxu0 0
    %531 = vmatpush1.bf16.xpose.msra.mxu0 0
    %532 = vmatprep.subr.bf16.mxu0 0
    %533 = vmatpush1.bf16.xpose.msra.mxu0 0
    %534 = vmatprep.subr.bf16.mxu0 0
    %535 = vmatpush1.bf16.xpose.msra.mxu0 0
    %536 = vmatprep.subr.bf16.mxu0 0
    %537 = vmatpush1.bf16.xpose.msra.mxu0 0
    %538 = vmatprep.subr.bf16.mxu0 0
    %539 = vmatpush1.bf16.xpose.msra.mxu0 0
    %540 = vmatprep.subr.bf16.mxu0 0
    %541 = vmatpush1.bf16.xpose.msra.mxu0 0
    %542 = vmatprep.mubr.bf16.mxu0 0
    %543 = vmatmul.mubr.bf16.gmra.mrb[0].mxu0 %v505
    %v544 = vpop.f32.mrb[0].mxu0
    %v545 = vadd.f32 %v402, %v544
    %v546 = vpop.f32.mrb[0].mxu0
    %v547 = vpop.f32.mrb[0].mxu0
    %v548 = vpop.f32.mrb[0].mxu0
    %549 = vdwg.mxu0
    %v551 = vsel %vm411, %v378, 0
    %v554 = vsel %vm411, %v382, 0
    %556 = vmatprep.subr.bf16.mxu0 0
    %557 = vmatpush1.bf16.xpose.msra.mxu0 %v554
    %558 = vmatprep.subr.bf16.mxu0 0
    %559 = vmatpush1.bf16.xpose.msra.mxu0 0
    %560 = vmatprep.subr.bf16.mxu0 0
    %561 = vmatpush1.bf16.xpose.msra.mxu0 0
    %562 = vmatprep.subr.bf16.mxu0 0
    %563 = vmatpush1.bf16.xpose.msra.mxu0 0
    %564 = vmatprep.subr.bf16.mxu0 0
    %565 = vmatpush1.bf16.xpose.msra.mxu0 0
    %566 = vmatprep.subr.bf16.mxu0 0
    %567 = vmatpush1.bf16.xpose.msra.mxu0 0
    %568 = vmatprep.subr.bf16.mxu0 0
    %569 = vmatpush1.bf16.xpose.msra.mxu0 0
    %570 = vmatprep.subr.bf16.mxu0 0
    %571 = vmatpush1.bf16.xpose.msra.mxu0 0
    %572 = vmatprep.subr.bf16.mxu0 0
    %573 = vmatpush1.bf16.xpose.msra.mxu0 0
    %574 = vmatprep.subr.bf16.mxu0 0
    %575 = vmatpush1.bf16.xpose.msra.mxu0 0
    %576 = vmatprep.subr.bf16.mxu0 0
    %577 = vmatpush1.bf16.xpose.msra.mxu0 0
    %578 = vmatprep.subr.bf16.mxu0 0
    %579 = vmatpush1.bf16.xpose.msra.mxu0 0
    %580 = vmatprep.subr.bf16.mxu0 0
    %581 = vmatpush1.bf16.xpose.msra.mxu0 0
    %582 = vmatprep.subr.bf16.mxu0 0
    %583 = vmatpush1.bf16.xpose.msra.mxu0 0
    %584 = vmatprep.subr.bf16.mxu0 0
    %585 = vmatpush1.bf16.xpose.msra.mxu0 0
    %586 = vmatprep.subr.bf16.mxu0 0
    %587 = vmatpush1.bf16.xpose.msra.mxu0 0
    %588 = vmatprep.mubr.bf16.mxu0 0
    %589 = vmatmul.mubr.bf16.gmra.mrb[0].mxu0 %v551
    %v590 = vpop.f32.mrb[0].mxu0
    %v591 = vadd.f32 %v406, %v590
    %v592 = vpop.f32.mrb[0].mxu0
    %v593 = vpop.f32.mrb[0].mxu0
    %v594 = vpop.f32.mrb[0].mxu0
    %595 = vdwg.mxu0
    %vm596 = vcmask 64512
    %v597 = vsel %vm596, %v453, -inf
    %598 = vmax.xlane.f32.xlu0 %v597
    %v599 = vpop.xlane.xlu0 %598
    %v600 = vsel %vm596, %v499, -inf
    %601 = vmax.xlane.f32.xlu0 %v600
    %v602 = vpop.xlane.xlu0 %601
    %v603 = vsel %vm596, %v545, -inf
    %604 = vmax.xlane.f32.xlu0 %v603
    %v605 = vpop.xlane.xlu0 %604
    %v606 = vsel %vm596, %v591, -inf
    %607 = vmax.xlane.f32.xlu0 %v606
    %v608 = vpop.xlane.xlu0 %607
    %v609 = vsub.f32 %v453, %v599
    %v610 = vsub.f32 %v499, %v602
    %v611 = vsub.f32 %v545, %v605
    %v612 = vsub.f32 %v591, %v608
    %v613 = vmul.f32 %v609, 1.442695
    %v614 = vpow.pop %v613
    %v615 = vmul.f32 %v610, 1.442695
    %v616 = vpow.pop %v615
    %v617 = vmul.f32 %v611, 1.442695
    %v618 = vpow.pop %v617
    %v619 = vmul.f32 %v612, 1.442695
    %v620 = vpow.pop %v619
    %v621 = vsel %vm596, %v614, 0.0
    %622 = vadd.xlane.f32.xlu0 %v621
    %v623 = vpop.xlane.xlu0 %622
    %v624 = vsel %vm596, %v616, 0.0
    %625 = vadd.xlane.f32.xlu0 %v624
    %v626 = vpop.xlane.xlu0 %625
    %v627 = vsel %vm596, %v618, 0.0
    %628 = vadd.xlane.f32.xlu0 %v627
    %v629 = vpop.xlane.xlu0 %628
    %v630 = vsel %vm596, %v620, 0.0
    %631 = vadd.xlane.f32.xlu0 %v630
    %v632 = vpop.xlane.xlu0 %631
    %v633 = vrcp.pop %v623
    %v634 = vrcp.pop %v626
    %v635 = vrcp.pop %v629
    %v636 = vrcp.pop %v632
    %v637 = vmul.f32 %v614, %v633
    %v638 = vmul.f32 %v616, %v634
    %v639 = vmul.f32 %v618, %v635
    %v640 = vmul.f32 %v620, %v636
    %v641 = vpack.c.bf16 %v637, %v637
    %v642 = vpack.c.bf16 %v638, %v638
    %v643 = vpack.c.bf16 %v639, %v639
    %v644 = vpack.c.bf16 %v640, %v640
    %v646 = vsel %vm596, %v641, 0
    %vm648 = vcmask 1043456
    %v650 = vsel %vm648, %v383, 0
    %652 = vmatprep.subr.bf16.mxu0 0
    %653 = vmatpush1.bf16.msra.mxu0 %v650
    %654 = vmatprep.subr.bf16.mxu0 0
    %655 = vmatpush1.bf16.msra.mxu0 0
    %656 = vmatprep.subr.bf16.mxu0 0
    %657 = vmatpush1.bf16.msra.mxu0 0
    %658 = vmatprep.subr.bf16.mxu0 0
    %659 = vmatpush1.bf16.msra.mxu0 0
    %660 = vmatprep.subr.bf16.mxu0 0
    %661 = vmatpush1.bf16.msra.mxu0 0
    %662 = vmatprep.subr.bf16.mxu0 0
    %663 = vmatpush1.bf16.msra.mxu0 0
    %664 = vmatprep.subr.bf16.mxu0 0
    %665 = vmatpush1.bf16.msra.mxu0 0
    %666 = vmatprep.subr.bf16.mxu0 0
    %667 = vmatpush1.bf16.msra.mxu0 0
    %668 = vmatprep.subr.bf16.mxu0 0
    %669 = vmatpush1.bf16.msra.mxu0 0
    %670 = vmatprep.subr.bf16.mxu0 0
    %671 = vmatpush1.bf16.msra.mxu0 0
    %672 = vmatprep.subr.bf16.mxu0 0
    %673 = vmatpush1.bf16.msra.mxu0 0
    %674 = vmatprep.subr.bf16.mxu0 0
    %675 = vmatpush1.bf16.msra.mxu0 0
    %676 = vmatprep.subr.bf16.mxu0 0
    %677 = vmatpush1.bf16.msra.mxu0 0
    %678 = vmatprep.subr.bf16.mxu0 0
    %679 = vmatpush1.bf16.msra.mxu0 0
    %680 = vmatprep.subr.bf16.mxu0 0
    %681 = vmatpush1.bf16.msra.mxu0 0
    %682 = vmatprep.subr.bf16.mxu0 0
    %683 = vmatpush1.bf16.msra.mxu0 0
    %684 = vmatprep.mubr.bf16.mxu0 0
    %685 = vmatmul.mubr.bf16.gmra.mrb[0].mxu0 %v646
    %v686 = vpop.f32.mrb[0].mxu0
    %v687 = vadd.f32 0.0, %v686
    %v688 = vpop.f32.mrb[0].mxu0
    %v689 = vpop.f32.mrb[0].mxu0
    %v690 = vpop.f32.mrb[0].mxu0
    %691 = vdwg.mxu0
    %v693 = vsel %vm596, %v642, 0
    %v696 = vsel %vm648, %v384, 0
    %698 = vmatprep.subr.bf16.mxu0 0
    %699 = vmatpush1.bf16.msra.mxu0 %v696
    %700 = vmatprep.subr.bf16.mxu0 0
    %701 = vmatpush1.bf16.msra.mxu0 0
    %702 = vmatprep.subr.bf16.mxu0 0
    %703 = vmatpush1.bf16.msra.mxu0 0
    %704 = vmatprep.subr.bf16.mxu0 0
    %705 = vmatpush1.bf16.msra.mxu0 0
    %706 = vmatprep.subr.bf16.mxu0 0
    %707 = vmatpush1.bf16.msra.mxu0 0
    %708 = vmatprep.subr.bf16.mxu0 0
    %709 = vmatpush1.bf16.msra.mxu0 0
    %710 = vmatprep.subr.bf16.mxu0 0
    %711 = vmatpush1.bf16.msra.mxu0 0
    %712 = vmatprep.subr.bf16.mxu0 0
    %713 = vmatpush1.bf16.msra.mxu0 0
    %714 = vmatprep.subr.bf16.mxu0 0
    %715 = vmatpush1.bf16.msra.mxu0 0
    %716 = vmatprep.subr.bf16.mxu0 0
    %717 = vmatpush1.bf16.msra.mxu0 0
    %718 = vmatprep.subr.bf16.mxu0 0
    %719 = vmatpush1.bf16.msra.mxu0 0
    %720 = vmatprep.subr.bf16.mxu0 0
    %721 = vmatpush1.bf16.msra.mxu0 0
    %722 = vmatprep.subr.bf16.mxu0 0
    %723 = vmatpush1.bf16.msra.mxu0 0
    %724 = vmatprep.subr.bf16.mxu0 0
    %725 = vmatpush1.bf16.msra.mxu0 0
    %726 = vmatprep.subr.bf16.mxu0 0
    %727 = vmatpush1.bf16.msra.mxu0 0
    %728 = vmatprep.subr.bf16.mxu0 0
    %729 = vmatpush1.bf16.msra.mxu0 0
    %730 = vmatprep.mubr.bf16.mxu0 0
    %731 = vmatmul.mubr.bf16.gmra.mrb[0].mxu0 %v693
    %v732 = vpop.f32.mrb[0].mxu0
    %v733 = vadd.f32 0.0, %v732
    %v734 = vpop.f32.mrb[0].mxu0
    %v735 = vpop.f32.mrb[0].mxu0
    %v736 = vpop.f32.mrb[0].mxu0
    %737 = vdwg.mxu0
    %v739 = vsel %vm596, %v643, 0
    %v742 = vsel %vm648, %v385, 0
    %744 = vmatprep.subr.bf16.mxu0 0
    %745 = vmatpush1.bf16.msra.mxu0 %v742
    %746 = vmatprep.subr.bf16.mxu0 0
    %747 = vmatpush1.bf16.msra.mxu0 0
    %748 = vmatprep.subr.bf16.mxu0 0
    %749 = vmatpush1.bf16.msra.mxu0 0
    %750 = vmatprep.subr.bf16.mxu0 0
    %751 = vmatpush1.bf16.msra.mxu0 0
    %752 = vmatprep.subr.bf16.mxu0 0
    %753 = vmatpush1.bf16.msra.mxu0 0
    %754 = vmatprep.subr.bf16.mxu0 0
    %755 = vmatpush1.bf16.msra.mxu0 0
    %756 = vmatprep.subr.bf16.mxu0 0
    %757 = vmatpush1.bf16.msra.mxu0 0
    %758 = vmatprep.subr.bf16.mxu0 0
    %759 = vmatpush1.bf16.msra.mxu0 0
    %760 = vmatprep.subr.bf16.mxu0 0
    %761 = vmatpush1.bf16.msra.mxu0 0
    %762 = vmatprep.subr.bf16.mxu0 0
    %763 = vmatpush1.bf16.msra.mxu0 0
    %764 = vmatprep.subr.bf16.mxu0 0
    %765 = vmatpush1.bf16.msra.mxu0 0
    %766 = vmatprep.subr.bf16.mxu0 0
    %767 = vmatpush1.bf16.msra.mxu0 0
    %768 = vmatprep.subr.bf16.mxu0 0
    %769 = vmatpush1.bf16.msra.mxu0 0
    %770 = vmatprep.subr.bf16.mxu0 0
    %771 = vmatpush1.bf16.msra.mxu0 0
    %772 = vmatprep.subr.bf16.mxu0 0
    %773 = vmatpush1.bf16.msra.mxu0 0
    %774 = vmatprep.subr.bf16.mxu0 0
    %775 = vmatpush1.bf16.msra.mxu0 0
    %776 = vmatprep.mubr.bf16.mxu0 0
    %777 = vmatmul.mubr.bf16.gmra.mrb[0].mxu0 %v739
    %v778 = vpop.f32.mrb[0].mxu0
    %v779 = vadd.f32 0.0, %v778
    %v780 = vpop.f32.mrb[0].mxu0
    %v781 = vpop.f32.mrb[0].mxu0
    %v782 = vpop.f32.mrb[0].mxu0
    %783 = vdwg.mxu0
    %v785 = vsel %vm596, %v644, 0
    %v788 = vsel %vm648, %v386, 0
    %790 = vmatprep.subr.bf16.mxu0 0
    %791 = vmatpush1.bf16.msra.mxu0 %v788
    %792 = vmatprep.subr.bf16.mxu0 0
    %793 = vmatpush1.bf16.msra.mxu0 0
    %794 = vmatprep.subr.bf16.mxu0 0
    %795 = vmatpush1.bf16.msra.mxu0 0
    %796 = vmatprep.subr.bf16.mxu0 0
    %797 = vmatpush1.bf16.msra.mxu0 0
    %798 = vmatprep.subr.bf16.mxu0 0
    %799 = vmatpush1.bf16.msra.mxu0 0
    %800 = vmatprep.subr.bf16.mxu0 0
    %801 = vmatpush1.bf16.msra.mxu0 0
    %802 = vmatprep.subr.bf16.mxu0 0
    %803 = vmatpush1.bf16.msra.mxu0 0
    %804 = vmatprep.subr.bf16.mxu0 0
    %805 = vmatpush1.bf16.msra.mxu0 0
    %806 = vmatprep.subr.bf16.mxu0 0
    %807 = vmatpush1.bf16.msra.mxu0 0
    %808 = vmatprep.subr.bf16.mxu0 0
    %809 = vmatpush1.bf16.msra.mxu0 0
    %810 = vmatprep.subr.bf16.mxu0 0
    %811 = vmatpush1.bf16.msra.mxu0 0
    %812 = vmatprep.subr.bf16.mxu0 0
    %813 = vmatpush1.bf16.msra.mxu0 0
    %814 = vmatprep.subr.bf16.mxu0 0
    %815 = vmatpush1.bf16.msra.mxu0 0
    %816 = vmatprep.subr.bf16.mxu0 0
    %817 = vmatpush1.bf16.msra.mxu0 0
    %818 = vmatprep.subr.bf16.mxu0 0
    %819 = vmatpush1.bf16.msra.mxu0 0
    %820 = vmatprep.subr.bf16.mxu0 0
    %821 = vmatpush1.bf16.msra.mxu0 0
    %822 = vmatprep.mubr.bf16.mxu0 0
    %823 = vmatmul.mubr.bf16.gmra.mrb[0].mxu0 %v785
    %v824 = vpop.f32.mrb[0].mxu0
    %v825 = vadd.f32 0.0, %v824
    %v826 = vpop.f32.mrb[0].mxu0
    %v827 = vpop.f32.mrb[0].mxu0
    %v828 = vpop.f32.mrb[0].mxu0
    %829 = vdwg.mxu0
    %v830 = vpack.c.bf16 %v733, %v687
    %v831 = vpack.c.bf16 %v825, %v779
    %v832 = vld [vmem:[%s10] sm:$0xf]
    %v833 = vld [vmem:[%s10 + $0x4] sm:$0xf]
    %s834 = scalar_lea.vmem %s4, 16
    %v835 = vld [vmem:[%s834] sm:$0xf]
    %v836 = vld [vmem:[%s834 + $0x4] sm:$0xf]
    %v837 = vld [vmem:[%s834 + $0x8] sm:$0xf]
    %v838 = vld [vmem:[%s834 + $0xc] sm:$0xf]
    %s839 = scalar_lea.vmem %s5, 1
    %v840 = vld [vmem:[%s839] sm:$0x1]
    %v842 = vlaneseq
    %v843 = vshrl.u32 %v842, 7
    %v844 = vsub.s32 0, %v843
    %v845 = vrot.slane %v840, %v844
    %v851 = vunpack.c.l.b16 %v835
    %v852 = vunpack.c.l.b16 %v836
    %v853 = vunpack.c.l.b16 %v837
    %v854 = vunpack.c.l.b16 %v838
    %v855 = vpack.c.b16 %v852, %v851
    %v856 = vpack.c.b16 %v854, %v853
    %859 = vmatprep.subr.bf16.mxu0 0
    %860 = vmatpush1.bf16.msra.mxu0 %v855
    %861 = vmatprep.subr.bf16.mxu0 0
    %862 = vmatpush1.bf16.msra.mxu0 %v856
    %863 = vmatprep.subr.bf16.mxu0 0
    %864 = vmatpush1.bf16.msra.mxu0 0
    %865 = vmatprep.subr.bf16.mxu0 0
    %866 = vmatpush1.bf16.msra.mxu0 0
    %867 = vmatprep.subr.bf16.mxu0 0
    %868 = vmatpush1.bf16.msra.mxu0 0
    %869 = vmatprep.subr.bf16.mxu0 0
    %870 = vmatpush1.bf16.msra.mxu0 0
    %871 = vmatprep.subr.bf16.mxu0 0
    %872 = vmatpush1.bf16.msra.mxu0 0
    %873 = vmatprep.subr.bf16.mxu0 0
    %874 = vmatpush1.bf16.msra.mxu0 0
    %875 = vmatprep.subr.bf16.mxu0 0
    %876 = vmatpush1.bf16.msra.mxu0 0
    %877 = vmatprep.subr.bf16.mxu0 0
    %878 = vmatpush1.bf16.msra.mxu0 0
    %879 = vmatprep.subr.bf16.mxu0 0
    %880 = vmatpush1.bf16.msra.mxu0 0
    %881 = vmatprep.subr.bf16.mxu0 0
    %882 = vmatpush1.bf16.msra.mxu0 0
    %883 = vmatprep.subr.bf16.mxu0 0
    %884 = vmatpush1.bf16.msra.mxu0 0
    %885 = vmatprep.subr.bf16.mxu0 0
    %886 = vmatpush1.bf16.msra.mxu0 0
    %887 = vmatprep.subr.bf16.mxu0 0
    %888 = vmatpush1.bf16.msra.mxu0 0
    %889 = vmatprep.subr.bf16.mxu0 0
    %890 = vmatpush1.bf16.msra.mxu0 0
    %891 = vmatprep.mubr.bf16.mxu0 0
    %892 = vmatmul.mubr.bf16.gmra.mrb[0].mxu0 %v177
    %v893 = vpop.f32.mrb[0].mxu0
    %v894 = vadd.f32 %v845, %v893
    %v895 = vpop.f32.mrb[0].mxu0
    %v896 = vpop.f32.mrb[0].mxu0
    %v897 = vadd.f32 %v845, %v896
    %v898 = vpop.f32.mrb[0].mxu0
    %899 = vmatprep.mubr.bf16.mxu0 0
    %900 = vmatmul.mubr.bf16.gmra.mrb[0].mxu0 %v180
    %v901 = vpop.f32.mrb[0].mxu0
    %v902 = vadd.f32 %v845, %v901
    %v903 = vpop.f32.mrb[0].mxu0
    %v904 = vpop.f32.mrb[0].mxu0
    %v905 = vadd.f32 %v845, %v904
    %v906 = vpop.f32.mrb[0].mxu0
    %907 = vdwg.mxu0
    %s908 = scalar_lea.vmem %s6, 16
    %v909 = vld [vmem:[%s908] sm:$0xf]
    %v910 = vld [vmem:[%s908 + $0x4] sm:$0xf]
    %v911 = vld [vmem:[%s908 + $0x8] sm:$0xf]
    %v912 = vld [vmem:[%s908 + $0xc] sm:$0xf]
    %s913 = scalar_lea.vmem %s7, 1
    %v914 = vld [vmem:[%s913] sm:$0x1]
    %v916 = vlaneseq
    %v917 = vshrl.u32 %v916, 7
    %v918 = vsub.s32 0, %v917
    %v919 = vrot.slane %v914, %v918
    %v925 = vunpack.c.l.b16 %v909
    %v926 = vunpack.c.l.b16 %v910
    %v927 = vunpack.c.l.b16 %v911
    %v928 = vunpack.c.l.b16 %v912
    %v929 = vpack.c.b16 %v926, %v925
    %v930 = vpack.c.b16 %v928, %v927
    %933 = vmatprep.subr.bf16.mxu0 0
    %934 = vmatpush1.bf16.msra.mxu0 %v929
    %935 = vmatprep.subr.bf16.mxu0 0
    %936 = vmatpush1.bf16.msra.mxu0 %v930
    %937 = vmatprep.subr.bf16.mxu0 0
    %938 = vmatpush1.bf16.msra.mxu0 0
    %939 = vmatprep.subr.bf16.mxu0 0
    %940 = vmatpush1.bf16.msra.mxu0 0
    %941 = vmatprep.subr.bf16.mxu0 0
    %942 = vmatpush1.bf16.msra.mxu0 0
    %943 = vmatprep.subr.bf16.mxu0 0
    %944 = vmatpush1.bf16.msra.mxu0 0
    %945 = vmatprep.subr.bf16.mxu0 0
    %946 = vmatpush1.bf16.msra.mxu0 0
    %947 = vmatprep.subr.bf16.mxu0 0
    %948 = vmatpush1.bf16.msra.mxu0 0
    %949 = vmatprep.subr.bf16.mxu0 0
    %950 = vmatpush1.bf16.msra.mxu0 0
    %951 = vmatprep.subr.bf16.mxu0 0
    %952 = vmatpush1.bf16.msra.mxu0 0
    %953 = vmatprep.subr.bf16.mxu0 0
    %954 = vmatpush1.bf16.msra.mxu0 0
    %955 = vmatprep.subr.bf16.mxu0 0
    %956 = vmatpush1.bf16.msra.mxu0 0
    %957 = vmatprep.subr.bf16.mxu0 0
    %958 = vmatpush1.bf16.msra.mxu0 0
    %959 = vmatprep.subr.bf16.mxu0 0
    %960 = vmatpush1.bf16.msra.mxu0 0
    %961 = vmatprep.subr.bf16.mxu0 0
    %962 = vmatpush1.bf16.msra.mxu0 0
    %963 = vmatprep.subr.bf16.mxu0 0
    %964 = vmatpush1.bf16.msra.mxu0 0
    %965 = vmatprep.mubr.bf16.mxu0 0
    %966 = vmatmul.mubr.bf16.gmra.mrb[0].mxu0 %v177
    %v967 = vpop.f32.mrb[0].mxu0
    %v968 = vadd.f32 %v919, %v967
    %v969 = vpop.f32.mrb[0].mxu0
    %v970 = vpop.f32.mrb[0].mxu0
    %v971 = vadd.f32 %v919, %v970
    %v972 = vpop.f32.mrb[0].mxu0
    %973 = vmatprep.mubr.bf16.mxu0 0
    %974 = vmatmul.mubr.bf16.gmra.mrb[0].mxu0 %v180
    %v975 = vpop.f32.mrb[0].mxu0
    %v976 = vadd.f32 %v919, %v975
    %v977 = vpop.f32.mrb[0].mxu0
    %v978 = vpop.f32.mrb[0].mxu0
    %v979 = vadd.f32 %v919, %v978
    %v980 = vpop.f32.mrb[0].mxu0
    %981 = vdwg.mxu0
    %s982 = scalar_lea.vmem %s8, 16
    %v983 = vld [vmem:[%s982] sm:$0xf]
    %v984 = vld [vmem:[%s982 + $0x4] sm:$0xf]
    %v985 = vld [vmem:[%s982 + $0x8] sm:$0xf]
    %v986 = vld [vmem:[%s982 + $0xc] sm:$0xf]
    %s987 = scalar_lea.vmem %s9, 1
    %v988 = vld [vmem:[%s987] sm:$0x1]
    %v990 = vlaneseq
    %v991 = vshrl.u32 %v990, 7
    %v992 = vsub.s32 0, %v991
    %v993 = vrot.slane %v988, %v992
    %v999 = vunpack.c.l.b16 %v983
    %v1000 = vunpack.c.l.b16 %v984
    %v1001 = vunpack.c.l.b16 %v985
    %v1002 = vunpack.c.l.b16 %v986
    %v1003 = vpack.c.b16 %v1000, %v999
    %v1004 = vpack.c.b16 %v1002, %v1001
    %1007 = vmatprep.subr.bf16.mxu0 0
    %1008 = vmatpush1.bf16.msra.mxu0 %v1003
    %1009 = vmatprep.subr.bf16.mxu0 0
    %1010 = vmatpush1.bf16.msra.mxu0 %v1004
    %1011 = vmatprep.subr.bf16.mxu0 0
    %1012 = vmatpush1.bf16.msra.mxu0 0
    %1013 = vmatprep.subr.bf16.mxu0 0
    %1014 = vmatpush1.bf16.msra.mxu0 0
    %1015 = vmatprep.subr.bf16.mxu0 0
    %1016 = vmatpush1.bf16.msra.mxu0 0
    %1017 = vmatprep.subr.bf16.mxu0 0
    %1018 = vmatpush1.bf16.msra.mxu0 0
    %1019 = vmatprep.subr.bf16.mxu0 0
    %1020 = vmatpush1.bf16.msra.mxu0 0
    %1021 = vmatprep.subr.bf16.mxu0 0
    %1022 = vmatpush1.bf16.msra.mxu0 0
    %1023 = vmatprep.subr.bf16.mxu0 0
    %1024 = vmatpush1.bf16.msra.mxu0 0
    %1025 = vmatprep.subr.bf16.mxu0 0
    %1026 = vmatpush1.bf16.msra.mxu0 0
    %1027 = vmatprep.subr.bf16.mxu0 0
    %1028 = vmatpush1.bf16.msra.mxu0 0
    %1029 = vmatprep.subr.bf16.mxu0 0
    %1030 = vmatpush1.bf16.msra.mxu0 0
    %1031 = vmatprep.subr.bf16.mxu0 0
    %1032 = vmatpush1.bf16.msra.mxu0 0
    %1033 = vmatprep.subr.bf16.mxu0 0
    %1034 = vmatpush1.bf16.msra.mxu0 0
    %1035 = vmatprep.subr.bf16.mxu0 0
    %1036 = vmatpush1.bf16.msra.mxu0 0
    %1037 = vmatprep.subr.bf16.mxu0 0
    %1038 = vmatpush1.bf16.msra.mxu0 0
    %1039 = vmatprep.mubr.bf16.mxu0 0
    %1040 = vmatmul.mubr.bf16.gmra.mrb[0].mxu0 %v177
    %v1041 = vpop.f32.mrb[0].mxu0
    %v1042 = vadd.f32 %v993, %v1041
    %v1043 = vpop.f32.mrb[0].mxu0
    %v1044 = vpop.f32.mrb[0].mxu0
    %v1045 = vadd.f32 %v993, %v1044
    %v1046 = vpop.f32.mrb[0].mxu0
    %1047 = vmatprep.mubr.bf16.mxu0 0
    %1048 = vmatmul.mubr.bf16.gmra.mrb[0].mxu0 %v180
    %v1049 = vpop.f32.mrb[0].mxu0
    %v1050 = vadd.f32 %v993, %v1049
    %v1051 = vpop.f32.mrb[0].mxu0
    %v1052 = vpop.f32.mrb[0].mxu0
    %v1053 = vadd.f32 %v993, %v1052
    %v1054 = vpop.f32.mrb[0].mxu0
    %1055 = vdwg.mxu0
    %v1056 = vpack.c.bf16 %v894, %v894
    %v1057 = vpack.c.bf16 %v897, %v897
    %v1058 = vpack.c.bf16 %v902, %v902
    %v1059 = vpack.c.bf16 %v905, %v905
    %v1060 = vpack.c.bf16 %v968, %v968
    %v1061 = vpack.c.bf16 %v971, %v971
    %v1062 = vpack.c.bf16 %v976, %v976
    %v1063 = vpack.c.bf16 %v979, %v979
    %v1064 = vpack.c.bf16 %v1042, %v1042
    %v1065 = vpack.c.bf16 %v1045, %v1045
    %v1066 = vpack.c.bf16 %v1050, %v1050
    %v1067 = vpack.c.bf16 %v1053, %v1053
    %v1069 = vsel %vm411, %v1056, 0
    %v1072 = vsel %vm411, %v1060, 0
    %1074 = vmatprep.subr.bf16.mxu0 0
    %1075 = vmatpush1.bf16.xpose.msra.mxu0 %v1072
    %1076 = vmatprep.subr.bf16.mxu0 0
    %1077 = vmatpush1.bf16.xpose.msra.mxu0 0
    %1078 = vmatprep.subr.bf16.mxu0 0
    %1079 = vmatpush1.bf16.xpose.msra.mxu0 0
    %1080 = vmatprep.subr.bf16.mxu0 0
    %1081 = vmatpush1.bf16.xpose.msra.mxu0 0
    %1082 = vmatprep.subr.bf16.mxu0 0
    %1083 = vmatpush1.bf16.xpose.msra.mxu0 0
    %1084 = vmatprep.subr.bf16.mxu0 0
    %1085 = vmatpush1.bf16.xpose.msra.mxu0 0
    %1086 = vmatprep.subr.bf16.mxu0 0
    %1087 = vmatpush1.bf16.xpose.msra.mxu0 0
    %1088 = vmatprep.subr.bf16.mxu0 0
    %1089 = vmatpush1.bf16.xpose.msra.mxu0 0
    %1090 = vmatprep.subr.bf16.mxu0 0
    %1091 = vmatpush1.bf16.xpose.msra.mxu0 0
    %1092 = vmatprep.subr.bf16.mxu0 0
    %1093 = vmatpush1.bf16.xpose.msra.mxu0 0
    %1094 = vmatprep.subr.bf16.mxu0 0
    %1095 = vmatpush1.bf16.xpose.msra.mxu0 0
    %1096 = vmatprep.subr.bf16.mxu0 0
    %1097 = vmatpush1.bf16.xpose.msra.mxu0 0
    %1098 = vmatprep.subr.bf16.mxu0 0
    %1099 = vmatpush1.bf16.xpose.msra.mxu0 0
    %1100 = vmatprep.subr.bf16.mxu0 0
    %1101 = vmatpush1.bf16.xpose.msra.mxu0 0
    %1102 = vmatprep.subr.bf16.mxu0 0
    %1103 = vmatpush1.bf16.xpose.msra.mxu0 0
    %1104 = vmatprep.subr.bf16.mxu0 0
    %1105 = vmatpush1.bf16.xpose.msra.mxu0 0
    %1106 = vmatprep.mubr.bf16.mxu0 0
    %1107 = vmatmul.mubr.bf16.gmra.mrb[0].mxu0 %v1069
    %v1108 = vpop.f32.mrb[0].mxu0
    %v1109 = vadd.f32 %v394, %v1108
    %v1110 = vpop.f32.mrb[0].mxu0
    %v1111 = vpop.f32.mrb[0].mxu0
    %v1112 = vpop.f32.mrb[0].mxu0
    %1113 = vdwg.mxu0
    %v1115 = vsel %vm411, %v1057, 0
    %v1118 = vsel %vm411, %v1061, 0
    %1120 = vmatprep.subr.bf16.mxu0 0
    %1121 = vmatpush1.bf16.xpose.msra.mxu0 %v1118
    %1122 = vmatprep.subr.bf16.mxu0 0
    %1123 = vmatpush1.bf16.xpose.msra.mxu0 0
    %1124 = vmatprep.subr.bf16.mxu0 0
    %1125 = vmatpush1.bf16.xpose.msra.mxu0 0
    %1126 = vmatprep.subr.bf16.mxu0 0
    %1127 = vmatpush1.bf16.xpose.msra.mxu0 0
    %1128 = vmatprep.subr.bf16.mxu0 0
    %1129 = vmatpush1.bf16.xpose.msra.mxu0 0
    %1130 = vmatprep.subr.bf16.mxu0 0
    %1131 = vmatpush1.bf16.xpose.msra.mxu0 0
    %1132 = vmatprep.subr.bf16.mxu0 0
    %1133 = vmatpush1.bf16.xpose.msra.mxu0 0
    %1134 = vmatprep.subr.bf16.mxu0 0
    %1135 = vmatpush1.bf16.xpose.msra.mxu0 0
    %1136 = vmatprep.subr.bf16.mxu0 0
    %1137 = vmatpush1.bf16.xpose.msra.mxu0 0
    %1138 = vmatprep.subr.bf16.mxu0 0
    %1139 = vmatpush1.bf16.xpose.msra.mxu0 0
    %1140 = vmatprep.subr.bf16.mxu0 0
    %1141 = vmatpush1.bf16.xpose.msra.mxu0 0
    %1142 = vmatprep.subr.bf16.mxu0 0
    %1143 = vmatpush1.bf16.xpose.msra.mxu0 0
    %1144 = vmatprep.subr.bf16.mxu0 0
    %1145 = vmatpush1.bf16.xpose.msra.mxu0 0
    %1146 = vmatprep.subr.bf16.mxu0 0
    %1147 = vmatpush1.bf16.xpose.msra.mxu0 0
    %1148 = vmatprep.subr.bf16.mxu0 0
    %1149 = vmatpush1.bf16.xpose.msra.mxu0 0
    %1150 = vmatprep.subr.bf16.mxu0 0
    %1151 = vmatpush1.bf16.xpose.msra.mxu0 0
    %1152 = vmatprep.mubr.bf16.mxu0 0
    %1153 = vmatmul.mubr.bf16.gmra.mrb[0].mxu0 %v1115
    %v1154 = vpop.f32.mrb[0].mxu0
    %v1155 = vadd.f32 %v398, %v1154
    %v1156 = vpop.f32.mrb[0].mxu0
    %v1157 = vpop.f32.mrb[0].mxu0
    %v1158 = vpop.f32.mrb[0].mxu0
    %1159 = vdwg.mxu0
    %v1161 = vsel %vm411, %v1058, 0
    %v1164 = vsel %vm411, %v1062, 0
    %1166 = vmatprep.subr.bf16.mxu0 0
    %1167 = vmatpush1.bf16.xpose.msra.mxu0 %v1164
    %1168 = vmatprep.subr.bf16.mxu0 0
    %1169 = vmatpush1.bf16.xpose.msra.mxu0 0
    %1170 = vmatprep.subr.bf16.mxu0 0
    %1171 = vmatpush1.bf16.xpose.msra.mxu0 0
    %1172 = vmatprep.subr.bf16.mxu0 0
    %1173 = vmatpush1.bf16.xpose.msra.mxu0 0
    %1174 = vmatprep.subr.bf16.mxu0 0
    %1175 = vmatpush1.bf16.xpose.msra.mxu0 0
    %1176 = vmatprep.subr.bf16.mxu0 0
    %1177 = vmatpush1.bf16.xpose.msra.mxu0 0
    %1178 = vmatprep.subr.bf16.mxu0 0
    %1179 = vmatpush1.bf16.xpose.msra.mxu0 0
    %1180 = vmatprep.subr.bf16.mxu0 0
    %1181 = vmatpush1.bf16.xpose.msra.mxu0 0
    %1182 = vmatprep.subr.bf16.mxu0 0
    %1183 = vmatpush1.bf16.xpose.msra.mxu0 0
    %1184 = vmatprep.subr.bf16.mxu0 0
    %1185 = vmatpush1.bf16.xpose.msra.mxu0 0
    %1186 = vmatprep.subr.bf16.mxu0 0
    %1187 = vmatpush1.bf16.xpose.msra.mxu0 0
    %1188 = vmatprep.subr.bf16.mxu0 0
    %1189 = vmatpush1.bf16.xpose.msra.mxu0 0
    %1190 = vmatprep.subr.bf16.mxu0 0
    %1191 = vmatpush1.bf16.xpose.msra.mxu0 0
    %1192 = vmatprep.subr.bf16.mxu0 0
    %1193 = vmatpush1.bf16.xpose.msra.mxu0 0
    %1194 = vmatprep.subr.bf16.mxu0 0
    %1195 = vmatpush1.bf16.xpose.msra.mxu0 0
    %1196 = vmatprep.subr.bf16.mxu0 0
    %1197 = vmatpush1.bf16.xpose.msra.mxu0 0
    %1198 = vmatprep.mubr.bf16.mxu0 0
    %1199 = vmatmul.mubr.bf16.gmra.mrb[0].mxu0 %v1161
    %v1200 = vpop.f32.mrb[0].mxu0
    %v1201 = vadd.f32 %v402, %v1200
    %v1202 = vpop.f32.mrb[0].mxu0
    %v1203 = vpop.f32.mrb[0].mxu0
    %v1204 = vpop.f32.mrb[0].mxu0
    %1205 = vdwg.mxu0
    %v1207 = vsel %vm411, %v1059, 0
    %v1210 = vsel %vm411, %v1063, 0
    %1212 = vmatprep.subr.bf16.mxu0 0
    %1213 = vmatpush1.bf16.xpose.msra.mxu0 %v1210
    %1214 = vmatprep.subr.bf16.mxu0 0
    %1215 = vmatpush1.bf16.xpose.msra.mxu0 0
    %1216 = vmatprep.subr.bf16.mxu0 0
    %1217 = vmatpush1.bf16.xpose.msra.mxu0 0
    %1218 = vmatprep.subr.bf16.mxu0 0
    %1219 = vmatpush1.bf16.xpose.msra.mxu0 0
    %1220 = vmatprep.subr.bf16.mxu0 0
    %1221 = vmatpush1.bf16.xpose.msra.mxu0 0
    %1222 = vmatprep.subr.bf16.mxu0 0
    %1223 = vmatpush1.bf16.xpose.msra.mxu0 0
    %1224 = vmatprep.subr.bf16.mxu0 0
    %1225 = vmatpush1.bf16.xpose.msra.mxu0 0
    %1226 = vmatprep.subr.bf16.mxu0 0
    %1227 = vmatpush1.bf16.xpose.msra.mxu0 0
    %1228 = vmatprep.subr.bf16.mxu0 0
    %1229 = vmatpush1.bf16.xpose.msra.mxu0 0
    %1230 = vmatprep.subr.bf16.mxu0 0
    %1231 = vmatpush1.bf16.xpose.msra.mxu0 0
    %1232 = vmatprep.subr.bf16.mxu0 0
    %1233 = vmatpush1.bf16.xpose.msra.mxu0 0
    %1234 = vmatprep.subr.bf16.mxu0 0
    %1235 = vmatpush1.bf16.xpose.msra.mxu0 0
    %1236 = vmatprep.subr.bf16.mxu0 0
    %1237 = vmatpush1.bf16.xpose.msra.mxu0 0
    %1238 = vmatprep.subr.bf16.mxu0 0
    %1239 = vmatpush1.bf16.xpose.msra.mxu0 0
    %1240 = vmatprep.subr.bf16.mxu0 0
    %1241 = vmatpush1.bf16.xpose.msra.mxu0 0
    %1242 = vmatprep.subr.bf16.mxu0 0
    %1243 = vmatpush1.bf16.xpose.msra.mxu0 0
    %1244 = vmatprep.mubr.bf16.mxu0 0
    %1245 = vmatmul.mubr.bf16.gmra.mrb[0].mxu0 %v1207
    %v1246 = vpop.f32.mrb[0].mxu0
    %v1247 = vadd.f32 %v406, %v1246
    %v1248 = vpop.f32.mrb[0].mxu0
    %v1249 = vpop.f32.mrb[0].mxu0
    %v1250 = vpop.f32.mrb[0].mxu0
    %1251 = vdwg.mxu0
    %v1252 = vsel %vm596, %v1109, -inf
    %1253 = vmax.xlane.f32.xlu0 %v1252
    %v1254 = vpop.xlane.xlu0 %1253
    %v1255 = vsel %vm596, %v1155, -inf
    %1256 = vmax.xlane.f32.xlu0 %v1255
    %v1257 = vpop.xlane.xlu0 %1256
    %v1258 = vsel %vm596, %v1201, -inf
    %1259 = vmax.xlane.f32.xlu0 %v1258
    %v1260 = vpop.xlane.xlu0 %1259
    %v1261 = vsel %vm596, %v1247, -inf
    %1262 = vmax.xlane.f32.xlu0 %v1261
    %v1263 = vpop.xlane.xlu0 %1262
    %v1264 = vsub.f32 %v1109, %v1254
    %v1265 = vsub.f32 %v1155, %v1257
    %v1266 = vsub.f32 %v1201, %v1260
    %v1267 = vsub.f32 %v1247, %v1263
    %v1268 = vmul.f32 %v1264, 1.442695
    %v1269 = vpow.pop %v1268
    %v1270 = vmul.f32 %v1265, 1.442695
    %v1271 = vpow.pop %v1270
    %v1272 = vmul.f32 %v1266, 1.442695
    %v1273 = vpow.pop %v1272
    %v1274 = vmul.f32 %v1267, 1.442695
    %v1275 = vpow.pop %v1274
    %v1276 = vsel %vm596, %v1269, 0.0
    %1277 = vadd.xlane.f32.xlu0 %v1276
    %v1278 = vpop.xlane.xlu0 %1277
    %v1279 = vsel %vm596, %v1271, 0.0
    %1280 = vadd.xlane.f32.xlu0 %v1279
    %v1281 = vpop.xlane.xlu0 %1280
    %v1282 = vsel %vm596, %v1273, 0.0
    %1283 = vadd.xlane.f32.xlu0 %v1282
    %v1284 = vpop.xlane.xlu0 %1283
    %v1285 = vsel %vm596, %v1275, 0.0
    %1286 = vadd.xlane.f32.xlu0 %v1285
    %v1287 = vpop.xlane.xlu0 %1286
    %v1288 = vrcp.pop %v1278
    %v1289 = vrcp.pop %v1281
    %v1290 = vrcp.pop %v1284
    %v1291 = vrcp.pop %v1287
    %v1292 = vmul.f32 %v1269, %v1288
    %v1293 = vmul.f32 %v1271, %v1289
    %v1294 = vmul.f32 %v1273, %v1290
    %v1295 = vmul.f32 %v1275, %v1291
    %v1296 = vpack.c.bf16 %v1292, %v1292
    %v1297 = vpack.c.bf16 %v1293, %v1293
    %v1298 = vpack.c.bf16 %v1294, %v1294
    %v1299 = vpack.c.bf16 %v1295, %v1295
    %v1301 = vsel %vm596, %v1296, 0
    %v1304 = vsel %vm648, %v1064, 0
    %1306 = vmatprep.subr.bf16.mxu0 0
    %1307 = vmatpush1.bf16.msra.mxu0 %v1304
    %1308 = vmatprep.subr.bf16.mxu0 0
    %1309 = vmatpush1.bf16.msra.mxu0 0
    %1310 = vmatprep.subr.bf16.mxu0 0
    %1311 = vmatpush1.bf16.msra.mxu0 0
    %1312 = vmatprep.subr.bf16.mxu0 0
    %1313 = vmatpush1.bf16.msra.mxu0 0
    %1314 = vmatprep.subr.bf16.mxu0 0
    %1315 = vmatpush1.bf16.msra.mxu0 0
    %1316 = vmatprep.subr.bf16.mxu0 0
    %1317 = vmatpush1.bf16.msra.mxu0 0
    %1318 = vmatprep.subr.bf16.mxu0 0
    %1319 = vmatpush1.bf16.msra.mxu0 0
    %1320 = vmatprep.subr.bf16.mxu0 0
    %1321 = vmatpush1.bf16.msra.mxu0 0
    %1322 = vmatprep.subr.bf16.mxu0 0
    %1323 = vmatpush1.bf16.msra.mxu0 0
    %1324 = vmatprep.subr.bf16.mxu0 0
    %1325 = vmatpush1.bf16.msra.mxu0 0
    %1326 = vmatprep.subr.bf16.mxu0 0
    %1327 = vmatpush1.bf16.msra.mxu0 0
    %1328 = vmatprep.subr.bf16.mxu0 0
    %1329 = vmatpush1.bf16.msra.mxu0 0
    %1330 = vmatprep.subr.bf16.mxu0 0
    %1331 = vmatpush1.bf16.msra.mxu0 0
    %1332 = vmatprep.subr.bf16.mxu0 0
    %1333 = vmatpush1.bf16.msra.mxu0 0
    %1334 = vmatprep.subr.bf16.mxu0 0
    %1335 = vmatpush1.bf16.msra.mxu0 0
    %1336 = vmatprep.subr.bf16.mxu0 0
    %1337 = vmatpush1.bf16.msra.mxu0 0
    %1338 = vmatprep.mubr.bf16.mxu0 0
    %1339 = vmatmul.mubr.bf16.gmra.mrb[0].mxu0 %v1301
    %v1340 = vpop.f32.mrb[0].mxu0
    %v1341 = vadd.f32 0.0, %v1340
    %v1342 = vpop.f32.mrb[0].mxu0
    %v1343 = vpop.f32.mrb[0].mxu0
    %v1344 = vpop.f32.mrb[0].mxu0
    %1345 = vdwg.mxu0
    %v1347 = vsel %vm596, %v1297, 0
    %v1350 = vsel %vm648, %v1065, 0
    %1352 = vmatprep.subr.bf16.mxu0 0
    %1353 = vmatpush1.bf16.msra.mxu0 %v1350
    %1354 = vmatprep.subr.bf16.mxu0 0
    %1355 = vmatpush1.bf16.msra.mxu0 0
    %1356 = vmatprep.subr.bf16.mxu0 0
    %1357 = vmatpush1.bf16.msra.mxu0 0
    %1358 = vmatprep.subr.bf16.mxu0 0
    %1359 = vmatpush1.bf16.msra.mxu0 0
    %1360 = vmatprep.subr.bf16.mxu0 0
    %1361 = vmatpush1.bf16.msra.mxu0 0
    %1362 = vmatprep.subr.bf16.mxu0 0
    %1363 = vmatpush1.bf16.msra.mxu0 0
    %1364 = vmatprep.subr.bf16.mxu0 0
    %1365 = vmatpush1.bf16.msra.mxu0 0
    %1366 = vmatprep.subr.bf16.mxu0 0
    %1367 = vmatpush1.bf16.msra.mxu0 0
    %1368 = vmatprep.subr.bf16.mxu0 0
    %1369 = vmatpush1.bf16.msra.mxu0 0
    %1370 = vmatprep.subr.bf16.mxu0 0
    %1371 = vmatpush1.bf16.msra.mxu0 0
    %1372 = vmatprep.subr.bf16.mxu0 0
    %1373 = vmatpush1.bf16.msra.mxu0 0
    %1374 = vmatprep.subr.bf16.mxu0 0
    %1375 = vmatpush1.bf16.msra.mxu0 0
    %1376 = vmatprep.subr.bf16.mxu0 0
    %1377 = vmatpush1.bf16.msra.mxu0 0
    %1378 = vmatprep.subr.bf16.mxu0 0
    %1379 = vmatpush1.bf16.msra.mxu0 0
    %1380 = vmatprep.subr.bf16.mxu0 0
    %1381 = vmatpush1.bf16.msra.mxu0 0
    %1382 = vmatprep.subr.bf16.mxu0 0
    %1383 = vmatpush1.bf16.msra.mxu0 0
    %1384 = vmatprep.mubr.bf16.mxu0 0
    %1385 = vmatmul.mubr.bf16.gmra.mrb[0].mxu0 %v1347
    %v1386 = vpop.f32.mrb[0].mxu0
    %v1387 = vadd.f32 0.0, %v1386
    %v1388 = vpop.f32.mrb[0].mxu0
    %v1389 = vpop.f32.mrb[0].mxu0
    %v1390 = vpop.f32.mrb[0].mxu0
    %1391 = vdwg.mxu0
    %v1393 = vsel %vm596, %v1298, 0
    %v1396 = vsel %vm648, %v1066, 0
    %1398 = vmatprep.subr.bf16.mxu0 0
    %1399 = vmatpush1.bf16.msra.mxu0 %v1396
    %1400 = vmatprep.subr.bf16.mxu0 0
    %1401 = vmatpush1.bf16.msra.mxu0 0
    %1402 = vmatprep.subr.bf16.mxu0 0
    %1403 = vmatpush1.bf16.msra.mxu0 0
    %1404 = vmatprep.subr.bf16.mxu0 0
    %1405 = vmatpush1.bf16.msra.mxu0 0
    %1406 = vmatprep.subr.bf16.mxu0 0
    %1407 = vmatpush1.bf16.msra.mxu0 0
    %1408 = vmatprep.subr.bf16.mxu0 0
    %1409 = vmatpush1.bf16.msra.mxu0 0
    %1410 = vmatprep.subr.bf16.mxu0 0
    %1411 = vmatpush1.bf16.msra.mxu0 0
    %1412 = vmatprep.subr.bf16.mxu0 0
    %1413 = vmatpush1.bf16.msra.mxu0 0
    %1414 = vmatprep.subr.bf16.mxu0 0
    %1415 = vmatpush1.bf16.msra.mxu0 0
    %1416 = vmatprep.subr.bf16.mxu0 0
    %1417 = vmatpush1.bf16.msra.mxu0 0
    %1418 = vmatprep.subr.bf16.mxu0 0
    %1419 = vmatpush1.bf16.msra.mxu0 0
    %1420 = vmatprep.subr.bf16.mxu0 0
    %1421 = vmatpush1.bf16.msra.mxu0 0
    %1422 = vmatprep.subr.bf16.mxu0 0
    %1423 = vmatpush1.bf16.msra.mxu0 0
    %1424 = vmatprep.subr.bf16.mxu0 0
    %1425 = vmatpush1.bf16.msra.mxu0 0
    %1426 = vmatprep.subr.bf16.mxu0 0
    %1427 = vmatpush1.bf16.msra.mxu0 0
    %1428 = vmatprep.subr.bf16.mxu0 0
    %1429 = vmatpush1.bf16.msra.mxu0 0
    %1430 = vmatprep.mubr.bf16.mxu0 0
    %1431 = vmatmul.mubr.bf16.gmra.mrb[0].mxu0 %v1393
    %v1432 = vpop.f32.mrb[0].mxu0
    %v1433 = vadd.f32 0.0, %v1432
    %v1434 = vpop.f32.mrb[0].mxu0
    %v1435 = vpop.f32.mrb[0].mxu0
    %v1436 = vpop.f32.mrb[0].mxu0
    %1437 = vdwg.mxu0
    %v1439 = vsel %vm596, %v1299, 0
    %v1442 = vsel %vm648, %v1067, 0
    %1444 = vmatprep.subr.bf16.mxu0 0
    %1445 = vmatpush1.bf16.msra.mxu0 %v1442
    %1446 = vmatprep.subr.bf16.mxu0 0
    %1447 = vmatpush1.bf16.msra.mxu0 0
    %1448 = vmatprep.subr.bf16.mxu0 0
    %1449 = vmatpush1.bf16.msra.mxu0 0
    %1450 = vmatprep.subr.bf16.mxu0 0
    %1451 = vmatpush1.bf16.msra.mxu0 0
    %1452 = vmatprep.subr.bf16.mxu0 0
    %1453 = vmatpush1.bf16.msra.mxu0 0
    %1454 = vmatprep.subr.bf16.mxu0 0
    %1455 = vmatpush1.bf16.msra.mxu0 0
    %1456 = vmatprep.subr.bf16.mxu0 0
    %1457 = vmatpush1.bf16.msra.mxu0 0
    %1458 = vmatprep.subr.bf16.mxu0 0
    %1459 = vmatpush1.bf16.msra.mxu0 0
    %1460 = vmatprep.subr.bf16.mxu0 0
    %1461 = vmatpush1.bf16.msra.mxu0 0
    %1462 = vmatprep.subr.bf16.mxu0 0
    %1463 = vmatpush1.bf16.msra.mxu0 0
    %1464 = vmatprep.subr.bf16.mxu0 0
    %1465 = vmatpush1.bf16.msra.mxu0 0
    %1466 = vmatprep.subr.bf16.mxu0 0
    %1467 = vmatpush1.bf16.msra.mxu0 0
    %1468 = vmatprep.subr.bf16.mxu0 0
    %1469 = vmatpush1.bf16.msra.mxu0 0
    %1470 = vmatprep.subr.bf16.mxu0 0
    %1471 = vmatpush1.bf16.msra.mxu0 0
    %1472 = vmatprep.subr.bf16.mxu0 0
    %1473 = vmatpush1.bf16.msra.mxu0 0
    %1474 = vmatprep.subr.bf16.mxu0 0
    %1475 = vmatpush1.bf16.msra.mxu0 0
    %1476 = vmatprep.mubr.bf16.mxu0 0
    %1477 = vmatmul.mubr.bf16.gmra.mrb[0].mxu0 %v1439
    %v1478 = vpop.f32.mrb[0].mxu0
    %v1479 = vadd.f32 0.0, %v1478
    %v1480 = vpop.f32.mrb[0].mxu0
    %v1481 = vpop.f32.mrb[0].mxu0
    %v1482 = vpop.f32.mrb[0].mxu0
    %1483 = vdwg.mxu0
    %v1484 = vpack.c.bf16 %v1387, %v1341
    %v1485 = vpack.c.bf16 %v1479, %v1433
    %s1486 = scalar_lea.vmem %s10, 8
    %v1487 = vld [vmem:[%s1486] sm:$0xf]
    %v1488 = vld [vmem:[%s1486 + $0x4] sm:$0xf]
    %v1491 = vunpack.c.l.b16 %v1487
    %v1492 = vunpack.c.l.b16 %v1488
    %v1493 = vpack.c.b16 %v1492, %v1491
    %v1496 = vsel %vm411, %v1484, 0
    %v1499 = vsel %vm411, %v1485, 0
    %1501 = vmatprep.subr.bf16.mxu0 0
    %1502 = vmatpush1.bf16.msra.mxu0 %v1493
    %1503 = vmatprep.subr.bf16.mxu0 0
    %1504 = vmatpush1.bf16.msra.mxu0 0
    %1505 = vmatprep.subr.bf16.mxu0 0
    %1506 = vmatpush1.bf16.msra.mxu0 0
    %1507 = vmatprep.subr.bf16.mxu0 0
    %1508 = vmatpush1.bf16.msra.mxu0 0
    %1509 = vmatprep.subr.bf16.mxu0 0
    %1510 = vmatpush1.bf16.msra.mxu0 0
    %1511 = vmatprep.subr.bf16.mxu0 0
    %1512 = vmatpush1.bf16.msra.mxu0 0
    %1513 = vmatprep.subr.bf16.mxu0 0
    %1514 = vmatpush1.bf16.msra.mxu0 0
    %1515 = vmatprep.subr.bf16.mxu0 0
    %1516 = vmatpush1.bf16.msra.mxu0 0
    %1517 = vmatprep.subr.bf16.mxu0 0
    %1518 = vmatpush1.bf16.msra.mxu0 0
    %1519 = vmatprep.subr.bf16.mxu0 0
    %1520 = vmatpush1.bf16.msra.mxu0 0
    %1521 = vmatprep.subr.bf16.mxu0 0
    %1522 = vmatpush1.bf16.msra.mxu0 0
    %1523 = vmatprep.subr.bf16.mxu0 0
    %1524 = vmatpush1.bf16.msra.mxu0 0
    %1525 = vmatprep.subr.bf16.mxu0 0
    %1526 = vmatpush1.bf16.msra.mxu0 0
    %1527 = vmatprep.subr.bf16.mxu0 0
    %1528 = vmatpush1.bf16.msra.mxu0 0
    %1529 = vmatprep.subr.bf16.mxu0 0
    %1530 = vmatpush1.bf16.msra.mxu0 0
    %1531 = vmatprep.subr.bf16.mxu0 0
    %1532 = vmatpush1.bf16.msra.mxu0 0
    %1533 = vmatprep.mubr.bf16.mxu0 0
    %1534 = vmatmul.mubr.bf16.gmra.mrb[0].mxu0 %v1496
    %v1535 = vpop.f32.mrb[0].mxu0
    %v1536 = vadd.f32 0.0, %v1535
    %v1537 = vpop.f32.mrb[0].mxu0
    %v1538 = vpop.f32.mrb[0].mxu0
    %v1539 = vadd.f32 0.0, %v1538
    %v1540 = vpop.f32.mrb[0].mxu0
    %1541 = vmatprep.mubr.bf16.mxu0 0
    %1542 = vmatmul.mubr.bf16.gmra.mrb[0].mxu0 %v1499
    %v1543 = vpop.f32.mrb[0].mxu0
    %v1544 = vadd.f32 0.0, %v1543
    %v1545 = vpop.f32.mrb[0].mxu0
    %v1546 = vpop.f32.mrb[0].mxu0
    %v1547 = vadd.f32 0.0, %v1546
    %v1548 = vpop.f32.mrb[0].mxu0
    %1549 = vdwg.mxu0
    %v1552 = vunpack.c.l.b16 %v832
    %v1553 = vunpack.c.l.b16 %v833
    %v1554 = vpack.c.b16 %v1553, %v1552
    %v1557 = vsel %vm411, %v830, 0
    %v1560 = vsel %vm411, %v831, 0
    %1562 = vmatprep.subr.bf16.mxu0 0
    %1563 = vmatpush1.bf16.msra.mxu0 %v1554
    %1564 = vmatprep.subr.bf16.mxu0 0
    %1565 = vmatpush1.bf16.msra.mxu0 0
    %1566 = vmatprep.subr.bf16.mxu0 0
    %1567 = vmatpush1.bf16.msra.mxu0 0
    %1568 = vmatprep.subr.bf16.mxu0 0
    %1569 = vmatpush1.bf16.msra.mxu0 0
    %1570 = vmatprep.subr.bf16.mxu0 0
    %1571 = vmatpush1.bf16.msra.mxu0 0
    %1572 = vmatprep.subr.bf16.mxu0 0
    %1573 = vmatpush1.bf16.msra.mxu0 0
    %1574 = vmatprep.subr.bf16.mxu0 0
    %1575 = vmatpush1.bf16.msra.mxu0 0
    %1576 = vmatprep.subr.bf16.mxu0 0
    %1577 = vmatpush1.bf16.msra.mxu0 0
    %1578 = vmatprep.subr.bf16.mxu0 0
    %1579 = vmatpush1.bf16.msra.mxu0 0
    %1580 = vmatprep.subr.bf16.mxu0 0
    %1581 = vmatpush1.bf16.msra.mxu0 0
    %1582 = vmatprep.subr.bf16.mxu0 0
    %1583 = vmatpush1.bf16.msra.mxu0 0
    %1584 = vmatprep.subr.bf16.mxu0 0
    %1585 = vmatpush1.bf16.msra.mxu0 0
    %1586 = vmatprep.subr.bf16.mxu0 0
    %1587 = vmatpush1.bf16.msra.mxu0 0
    %1588 = vmatprep.subr.bf16.mxu0 0
    %1589 = vmatpush1.bf16.msra.mxu0 0
    %1590 = vmatprep.subr.bf16.mxu0 0
    %1591 = vmatpush1.bf16.msra.mxu0 0
    %1592 = vmatprep.subr.bf16.mxu0 0
    %1593 = vmatpush1.bf16.msra.mxu0 0
    %1594 = vmatprep.mubr.bf16.mxu0 0
    %1595 = vmatmul.mubr.bf16.gmra.mrb[0].mxu0 %v1557
    %v1596 = vpop.f32.mrb[0].mxu0
    %v1597 = vadd.f32 %v1536, %v1596
    %v1598 = vpop.f32.mrb[0].mxu0
    %v1599 = vpop.f32.mrb[0].mxu0
    %v1600 = vadd.f32 %v1539, %v1599
    %v1601 = vpop.f32.mrb[0].mxu0
    %1602 = vmatprep.mubr.bf16.mxu0 0
    %1603 = vmatmul.mubr.bf16.gmra.mrb[0].mxu0 %v1560
    %v1604 = vpop.f32.mrb[0].mxu0
    %v1605 = vadd.f32 %v1544, %v1604
    %v1606 = vpop.f32.mrb[0].mxu0
    %v1607 = vpop.f32.mrb[0].mxu0
    %v1608 = vadd.f32 %v1547, %v1607
    %v1609 = vpop.f32.mrb[0].mxu0
    %1610 = vdwg.mxu0
    %v1611 = vld [vmem:[%s11] sm:$0x1]
    %v1613 = vlaneseq
    %v1614 = vshrl.u32 %v1613, 7
    %v1615 = vsub.s32 0, %v1614
    %v1616 = vrot.slane %v1611, %v1615
    %v1618 = vadd.f32 %v1597, %v1616
    %v1619 = vadd.f32 %v1600, %v1616
    %v1620 = vadd.f32 %v1605, %v1616
    %v1621 = vadd.f32 %v1608, %v1616
    %v1622 = vadd.f32 %v147, %v1618
    %v1623 = vadd.f32 %v148, %v1619
    %v1624 = vadd.f32 %v149, %v1620
    %v1625 = vadd.f32 %v150, %v1621
    %v1626 = vld [vmem:[%s12] sm:$0x1]
    %v1627 = vld [vmem:[%s13] sm:$0x1]
    %v1628 = vsel %vm77, %v1622, 0.0
    %1629 = vadd.xlane.f32.xlu0 %v1628
    %v1630 = vpop.xlane.xlu0 %1629
    %v1631 = vsel %vm77, %v1623, 0.0
    %1632 = vadd.xlane.f32.xlu0 %v1631
    %v1633 = vpop.xlane.xlu0 %1632
    %v1634 = vsel %vm77, %v1624, 0.0
    %1635 = vadd.xlane.f32.xlu0 %v1634
    %v1636 = vpop.xlane.xlu0 %1635
    %v1637 = vsel %vm77, %v1625, 0.0
    %1638 = vadd.xlane.f32.xlu0 %v1637
    %v1639 = vpop.xlane.xlu0 %1638
    %v1640 = vmul.f32 %v1630, %v90
    %v1641 = vmul.f32 %v1633, %v90
    %v1642 = vmul.f32 %v1636, %v90
    %v1643 = vmul.f32 %v1639, %v90
    %v1644 = vsub.f32 %v1622, %v1640
    %v1645 = vsub.f32 %v1623, %v1641
    %v1646 = vsub.f32 %v1624, %v1642
    %v1647 = vsub.f32 %v1625, %v1643
    %v1648 = vmul.f32 %v1644, %v1644
    %v1649 = vmul.f32 %v1645, %v1645
    %v1650 = vmul.f32 %v1646, %v1646
    %v1651 = vmul.f32 %v1647, %v1647
    %v1652 = vsel %vm77, %v1648, 0.0
    %1653 = vadd.xlane.f32.xlu0 %v1652
    %v1654 = vpop.xlane.xlu0 %1653
    %v1655 = vsel %vm77, %v1649, 0.0
    %1656 = vadd.xlane.f32.xlu0 %v1655
    %v1657 = vpop.xlane.xlu0 %1656
    %v1658 = vsel %vm77, %v1650, 0.0
    %1659 = vadd.xlane.f32.xlu0 %v1658
    %v1660 = vpop.xlane.xlu0 %1659
    %v1661 = vsel %vm77, %v1651, 0.0
    %1662 = vadd.xlane.f32.xlu0 %v1661
    %v1663 = vpop.xlane.xlu0 %1662
    %v1664 = vmul.f32 %v1654, %v90
    %v1665 = vmul.f32 %v1657, %v90
    %v1666 = vmul.f32 %v1660, %v90
    %v1667 = vmul.f32 %v1663, %v90
    %v1668 = vadd.f32 %v1664, 1e-12
    %v1669 = vadd.f32 %v1665, 1e-12
    %v1670 = vadd.f32 %v1666, 1e-12
    %v1671 = vadd.f32 %v1667, 1e-12
    %v1672 = vrsqrt.pop %v1668
    %v1673 = vrsqrt.pop %v1669
    %v1674 = vrsqrt.pop %v1670
    %v1675 = vrsqrt.pop %v1671
    %v1676 = vmul.f32 %v1644, %v1672
    %v1677 = vmul.f32 %v1645, %v1673
    %v1678 = vmul.f32 %v1646, %v1674
    %v1679 = vmul.f32 %v1647, %v1675
    %v1681 = vlaneseq
    %v1682 = vshrl.u32 %v1681, 7
    %v1683 = vsub.s32 0, %v1682
    %v1684 = vrot.slane %v1626, %v1683
    %v1686 = vmul.f32 %v1676, %v1684
    %v1687 = vmul.f32 %v1677, %v1684
    %v1688 = vmul.f32 %v1678, %v1684
    %v1689 = vmul.f32 %v1679, %v1684
    %v1691 = vlaneseq
    %v1692 = vshrl.u32 %v1691, 7
    %v1693 = vsub.s32 0, %v1692
    %v1694 = vrot.slane %v1627, %v1693
    %v1696 = vadd.f32 %v1686, %v1694
    %v1697 = vadd.f32 %v1687, %v1694
    %v1698 = vadd.f32 %v1688, %v1694
    %v1699 = vadd.f32 %v1689, %v1694
    %v1700 = vpack.c.bf16 %v1697, %v1696
    %v1701 = vpack.c.bf16 %v1699, %v1698
    %v1702 = vld [vmem:[%s14] sm:$0xf]
    %v1703 = vld [vmem:[%s14 + $0x4] sm:$0xf]
    %v1704 = vld [vmem:[%s14 + $0x8] sm:$0xf]
    %v1705 = vld [vmem:[%s14 + $0xc] sm:$0xf]
    %v1706 = vld [vmem:[%s15] sm:$0x1]
    %v1708 = vlaneseq
    %v1709 = vshrl.u32 %v1708, 7
    %v1710 = vsub.s32 0, %v1709
    %v1711 = vrot.slane %v1706, %v1710
    %v1717 = vunpack.c.l.b16 %v1702
    %v1718 = vunpack.c.l.b16 %v1703
    %v1719 = vunpack.c.l.b16 %v1704
    %v1720 = vunpack.c.l.b16 %v1705
    %v1721 = vpack.c.b16 %v1718, %v1717
    %v1722 = vpack.c.b16 %v1720, %v1719
    %v1726 = vsel %vm77, %v1700, 0
    %v1729 = vsel %vm77, %v1701, 0
    %1731 = vmatprep.subr.bf16.mxu0 0
    %1732 = vmatpush1.bf16.msra.mxu0 %v1721
    %1733 = vmatprep.subr.bf16.mxu0 0
    %1734 = vmatpush1.bf16.msra.mxu0 %v1722
    %1735 = vmatprep.subr.bf16.mxu0 0
    %1736 = vmatpush1.bf16.msra.mxu0 0
    %1737 = vmatprep.subr.bf16.mxu0 0
    %1738 = vmatpush1.bf16.msra.mxu0 0
    %1739 = vmatprep.subr.bf16.mxu0 0
    %1740 = vmatpush1.bf16.msra.mxu0 0
    %1741 = vmatprep.subr.bf16.mxu0 0
    %1742 = vmatpush1.bf16.msra.mxu0 0
    %1743 = vmatprep.subr.bf16.mxu0 0
    %1744 = vmatpush1.bf16.msra.mxu0 0
    %1745 = vmatprep.subr.bf16.mxu0 0
    %1746 = vmatpush1.bf16.msra.mxu0 0
    %1747 = vmatprep.subr.bf16.mxu0 0
    %1748 = vmatpush1.bf16.msra.mxu0 0
    %1749 = vmatprep.subr.bf16.mxu0 0
    %1750 = vmatpush1.bf16.msra.mxu0 0
    %1751 = vmatprep.subr.bf16.mxu0 0
    %1752 = vmatpush1.bf16.msra.mxu0 0
    %1753 = vmatprep.subr.bf16.mxu0 0
    %1754 = vmatpush1.bf16.msra.mxu0 0
    %1755 = vmatprep.subr.bf16.mxu0 0
    %1756 = vmatpush1.bf16.msra.mxu0 0
    %1757 = vmatprep.subr.bf16.mxu0 0
    %1758 = vmatpush1.bf16.msra.mxu0 0
    %1759 = vmatprep.subr.bf16.mxu0 0
    %1760 = vmatpush1.bf16.msra.mxu0 0
    %1761 = vmatprep.subr.bf16.mxu0 0
    %1762 = vmatpush1.bf16.msra.mxu0 0
    %1763 = vmatprep.mubr.bf16.mxu0 0
    %1764 = vmatmul.mubr.bf16.gmra.mrb[0].mxu0 %v1726
    %v1765 = vpop.f32.mrb[0].mxu0
    %v1766 = vadd.f32 %v1711, %v1765
    %v1767 = vpop.f32.mrb[0].mxu0
    %v1768 = vpop.f32.mrb[0].mxu0
    %v1769 = vadd.f32 %v1711, %v1768
    %v1770 = vpop.f32.mrb[0].mxu0
    %1771 = vmatprep.mubr.bf16.mxu0 0
    %1772 = vmatmul.mubr.bf16.gmra.mrb[0].mxu0 %v1729
    %v1773 = vpop.f32.mrb[0].mxu0
    %v1774 = vadd.f32 %v1711, %v1773
    %v1775 = vpop.f32.mrb[0].mxu0
    %v1776 = vpop.f32.mrb[0].mxu0
    %v1777 = vadd.f32 %v1711, %v1776
    %v1778 = vpop.f32.mrb[0].mxu0
    %1779 = vdwg.mxu0
    %v1780 = vmul.f32 %v1766, 0.5
    %v1781 = vmul.f32 %v1769, 0.5
    %v1782 = vmul.f32 %v1774, 0.5
    %v1783 = vmul.f32 %v1777, 0.5
    %v1784 = vmul.f32 %v1766, 0.044715
    %v1785 = vmul.f32 %v1769, 0.044715
    %v1786 = vmul.f32 %v1774, 0.044715
    %v1787 = vmul.f32 %v1777, 0.044715
    %v1788 = vmul.f32 %v1784, %v1766
    %v1789 = vmul.f32 %v1785, %v1769
    %v1790 = vmul.f32 %v1786, %v1774
    %v1791 = vmul.f32 %v1787, %v1777
    %v1792 = vmul.f32 %v1788, %v1766
    %v1793 = vmul.f32 %v1789, %v1769
    %v1794 = vmul.f32 %v1790, %v1774
    %v1795 = vmul.f32 %v1791, %v1777
    %v1796 = vadd.f32 %v1766, %v1792
    %v1797 = vadd.f32 %v1769, %v1793
    %v1798 = vadd.f32 %v1774, %v1794
    %v1799 = vadd.f32 %v1777, %v1795
    %v1800 = vmul.f32 %v1796, 0.7978846
    %v1801 = vmul.f32 %v1797, 0.7978846
    %v1802 = vmul.f32 %v1798, 0.7978846
    %v1803 = vmul.f32 %v1799, 0.7978846
    %v1804 = vtanh.pop %v1800
    %v1805 = vtanh.pop %v1801
    %v1806 = vtanh.pop %v1802
    %v1807 = vtanh.pop %v1803
    %v1808 = vadd.f32 %v1804, 1.0
    %v1809 = vadd.f32 %v1805, 1.0
    %v1810 = vadd.f32 %v1806, 1.0
    %v1811 = vadd.f32 %v1807, 1.0
    %v1812 = vmul.f32 %v1780, %v1808
    %v1813 = vmul.f32 %v1781, %v1809
    %v1814 = vmul.f32 %v1782, %v1810
    %v1815 = vmul.f32 %v1783, %v1811
    %v1816 = vpack.c.bf16 %v1813, %v1812
    %v1817 = vpack.c.bf16 %v1815, %v1814
    %v1818 = vld [vmem:[%s16] sm:$0xf]
    %v1819 = vld [vmem:[%s16 + $0x4] sm:$0xf]
    %v1820 = vld [vmem:[%s16 + $0x8] sm:$0xf]
    %v1821 = vld [vmem:[%s16 + $0xc] sm:$0xf]
    %v1822 = vld [vmem:[%s16 + $0x10] sm:$0xf]
    %v1823 = vld [vmem:[%s16 + $0x14] sm:$0xf]
    %v1824 = vld [vmem:[%s16 + $0x18] sm:$0xf]
    %v1825 = vld [vmem:[%s16 + $0x1c] sm:$0xf]
    %v1826 = vld [vmem:[%s17] sm:$0x1]
    %v1828 = vlaneseq
    %v1829 = vshrl.u32 %v1828, 7
    %v1830 = vsub.s32 0, %v1829
    %v1831 = vrot.slane %v1826, %v1830
    %v1841 = vunpack.c.l.b16 %v1818
    %v1842 = vunpack.c.l.b16 %v1819
    %v1843 = vunpack.c.l.b16 %v1820
    %v1844 = vunpack.c.l.b16 %v1821
    %v1845 = vunpack.c.l.b16 %v1822
    %v1846 = vunpack.c.l.b16 %v1823
    %v1847 = vunpack.c.l.b16 %v1824
    %v1848 = vunpack.c.l.b16 %v1825
    %v1849 = vpack.c.b16 %v1842, %v1841
    %v1850 = vpack.c.b16 %v1844, %v1843
    %v1851 = vpack.c.b16 %v1846, %v1845
    %v1852 = vpack.c.b16 %v1848, %v1847
    %vm1857 = vcmask 523264
    %v1859 = vsel %vm1857, %v1816, 0
    %v1862 = vsel %vm1857, %v1817, 0
    %1864 = vmatprep.subr.bf16.mxu0 0
    %1865 = vmatpush1.bf16.msra.mxu0 %v1849
    %1866 = vmatprep.subr.bf16.mxu0 0
    %1867 = vmatpush1.bf16.msra.mxu0 %v1850
    %1868 = vmatprep.subr.bf16.mxu0 0
    %1869 = vmatpush1.bf16.msra.mxu0 %v1851
    %1870 = vmatprep.subr.bf16.mxu0 0
    %1871 = vmatpush1.bf16.msra.mxu0 %v1852
    %1872 = vmatprep.subr.bf16.mxu0 0
    %1873 = vmatpush1.bf16.msra.mxu0 0
    %1874 = vmatprep.subr.bf16.mxu0 0
    %1875 = vmatpush1.bf16.msra.mxu0 0
    %1876 = vmatprep.subr.bf16.mxu0 0
    %1877 = vmatpush1.bf16.msra.mxu0 0
    %1878 = vmatprep.subr.bf16.mxu0 0
    %1879 = vmatpush1.bf16.msra.mxu0 0
    %1880 = vmatprep.subr.bf16.mxu0 0
    %1881 = vmatpush1.bf16.msra.mxu0 0
    %1882 = vmatprep.subr.bf16.mxu0 0
    %1883 = vmatpush1.bf16.msra.mxu0 0
    %1884 = vmatprep.subr.bf16.mxu0 0
    %1885 = vmatpush1.bf16.msra.mxu0 0
    %1886 = vmatprep.subr.bf16.mxu0 0
    %1887 = vmatpush1.bf16.msra.mxu0 0
    %1888 = vmatprep.subr.bf16.mxu0 0
    %1889 = vmatpush1.bf16.msra.mxu0 0
    %1890 = vmatprep.subr.bf16.mxu0 0
    %1891 = vmatpush1.bf16.msra.mxu0 0
    %1892 = vmatprep.subr.bf16.mxu0 0
    %1893 = vmatpush1.bf16.msra.mxu0 0
    %1894 = vmatprep.subr.bf16.mxu0 0
    %1895 = vmatpush1.bf16.msra.mxu0 0
    %1896 = vmatprep.mubr.bf16.mxu0 0
    %1897 = vmatmul.mubr.bf16.gmra.mrb[0].mxu0 %v1859
    %v1898 = vpop.f32.mrb[0].mxu0
    %v1899 = vadd.f32 %v1831, %v1898
    %v1900 = vpop.f32.mrb[0].mxu0
    %v1901 = vpop.f32.mrb[0].mxu0
    %v1902 = vadd.f32 %v1831, %v1901
    %v1903 = vpop.f32.mrb[0].mxu0
    %1904 = vmatprep.mubr.bf16.mxu0 0
    %1905 = vmatmul.mubr.bf16.gmra.mrb[0].mxu0 %v1862
    %v1906 = vpop.f32.mrb[0].mxu0
    %v1907 = vadd.f32 %v1831, %v1906
    %v1908 = vpop.f32.mrb[0].mxu0
    %v1909 = vpop.f32.mrb[0].mxu0
    %v1910 = vadd.f32 %v1831, %v1909
    %v1911 = vpop.f32.mrb[0].mxu0
    %1912 = vdwg.mxu0
    %v1913 = vadd.f32 %v1696, %v1899
    %v1914 = vadd.f32 %v1697, %v1902
    %v1915 = vadd.f32 %v1698, %v1907
    %v1916 = vadd.f32 %v1699, %v1910
    %v1917 = vld [vmem:[%s18] sm:$0x1]
    %v1918 = vld [vmem:[%s19] sm:$0x1]
    %v1919 = vsel %vm77, %v1913, 0.0
    %1920 = vadd.xlane.f32.xlu0 %v1919
    %v1921 = vpop.xlane.xlu0 %1920
    %v1922 = vsel %vm77, %v1914, 0.0
    %1923 = vadd.xlane.f32.xlu0 %v1922
    %v1924 = vpop.xlane.xlu0 %1923
    %v1925 = vsel %vm77, %v1915, 0.0
    %1926 = vadd.xlane.f32.xlu0 %v1925
    %v1927 = vpop.xlane.xlu0 %1926
    %v1928 = vsel %vm77, %v1916, 0.0
    %1929 = vadd.xlane.f32.xlu0 %v1928
    %v1930 = vpop.xlane.xlu0 %1929
    %v1931 = vmul.f32 %v1921, %v90
    %v1932 = vmul.f32 %v1924, %v90
    %v1933 = vmul.f32 %v1927, %v90
    %v1934 = vmul.f32 %v1930, %v90
    %v1935 = vsub.f32 %v1913, %v1931
    %v1936 = vsub.f32 %v1914, %v1932
    %v1937 = vsub.f32 %v1915, %v1933
    %v1938 = vsub.f32 %v1916, %v1934
    %v1939 = vmul.f32 %v1935, %v1935
    %v1940 = vmul.f32 %v1936, %v1936
    %v1941 = vmul.f32 %v1937, %v1937
    %v1942 = vmul.f32 %v1938, %v1938
    %v1943 = vsel %vm77, %v1939, 0.0
    %1944 = vadd.xlane.f32.xlu0 %v1943
    %v1945 = vpop.xlane.xlu0 %1944
    %v1946 = vsel %vm77, %v1940, 0.0
    %1947 = vadd.xlane.f32.xlu0 %v1946
    %v1948 = vpop.xlane.xlu0 %1947
    %v1949 = vsel %vm77, %v1941, 0.0
    %1950 = vadd.xlane.f32.xlu0 %v1949
    %v1951 = vpop.xlane.xlu0 %1950
    %v1952 = vsel %vm77, %v1942, 0.0
    %1953 = vadd.xlane.f32.xlu0 %v1952
    %v1954 = vpop.xlane.xlu0 %1953
    %v1955 = vmul.f32 %v1945, %v90
    %v1956 = vmul.f32 %v1948, %v90
    %v1957 = vmul.f32 %v1951, %v90
    %v1958 = vmul.f32 %v1954, %v90
    %v1959 = vadd.f32 %v1955, 1e-12
    %v1960 = vadd.f32 %v1956, 1e-12
    %v1961 = vadd.f32 %v1957, 1e-12
    %v1962 = vadd.f32 %v1958, 1e-12
    %v1963 = vrsqrt.pop %v1959
    %v1964 = vrsqrt.pop %v1960
    %v1965 = vrsqrt.pop %v1961
    %v1966 = vrsqrt.pop %v1962
    %v1967 = vmul.f32 %v1935, %v1963
    %v1968 = vmul.f32 %v1936, %v1964
    %v1969 = vmul.f32 %v1937, %v1965
    %v1970 = vmul.f32 %v1938, %v1966
    %v1972 = vlaneseq
    %v1973 = vshrl.u32 %v1972, 7
    %v1974 = vsub.s32 0, %v1973
    %v1975 = vrot.slane %v1917, %v1974
    %v1977 = vmul.f32 %v1967, %v1975
    %v1978 = vmul.f32 %v1968, %v1975
    %v1979 = vmul.f32 %v1969, %v1975
    %v1980 = vmul.f32 %v1970, %v1975
    %v1982 = vlaneseq
    %v1983 = vshrl.u32 %v1982, 7
    %v1984 = vsub.s32 0, %v1983
    %v1985 = vrot.slane %v1918, %v1984
    %v1987 = vadd.f32 %v1977, %v1985
    %v1988 = vadd.f32 %v1978, %v1985
    %v1989 = vadd.f32 %v1979, %v1985
    %v1990 = vadd.f32 %v1980, %v1985
    %v1991 = vpack.c.bf16 %v1988, %v1987
    %v1992 = vpack.c.bf16 %v1990, %v1989
    %s1993 = scalar_lea.vmem %s4, 32
    %v1994 = vld [vmem:[%s1993] sm:$0xf]
    %v1995 = vld [vmem:[%s1993 + $0x4] sm:$0xf]
    %v1996 = vld [vmem:[%s1993 + $0x8] sm:$0xf]
    %v1997 = vld [vmem:[%s1993 + $0xc] sm:$0xf]
    %s1998 = scalar_lea.vmem %s5, 2
    %v1999 = vld [vmem:[%s1998] sm:$0x1]
    %v2001 = vlaneseq
    %v2002 = vshrl.u32 %v2001, 7
    %v2003 = vsub.s32 0, %v2002
    %v2004 = vrot.slane %v1999, %v2003
    %v2010 = vunpack.c.l.b16 %v1994
    %v2011 = vunpack.c.l.b16 %v1995
    %v2012 = vunpack.c.l.b16 %v1996
    %v2013 = vunpack.c.l.b16 %v1997
    %v2014 = vpack.c.b16 %v2011, %v2010
    %v2015 = vpack.c.b16 %v2013, %v2012
    %v2019 = vsel %vm77, %v1991, 0
    %v2022 = vsel %vm77, %v1992, 0
    %2024 = vmatprep.subr.bf16.mxu0 0
    %2025 = vmatpush1.bf16.msra.mxu0 %v2014
    %2026 = vmatprep.subr.bf16.mxu0 0
    %2027 = vmatpush1.bf16.msra.mxu0 %v2015
    %2028 = vmatprep.subr.bf16.mxu0 0
    %2029 = vmatpush1.bf16.msra.mxu0 0
    %2030 = vmatprep.subr.bf16.mxu0 0
    %2031 = vmatpush1.bf16.msra.mxu0 0
    %2032 = vmatprep.subr.bf16.mxu0 0
    %2033 = vmatpush1.bf16.msra.mxu0 0
    %2034 = vmatprep.subr.bf16.mxu0 0
    %2035 = vmatpush1.bf16.msra.mxu0 0
    %2036 = vmatprep.subr.bf16.mxu0 0
    %2037 = vmatpush1.bf16.msra.mxu0 0
    %2038 = vmatprep.subr.bf16.mxu0 0
    %2039 = vmatpush1.bf16.msra.mxu0 0
    %2040 = vmatprep.subr.bf16.mxu0 0
    %2041 = vmatpush1.bf16.msra.mxu0 0
    %2042 = vmatprep.subr.bf16.mxu0 0
    %2043 = vmatpush1.bf16.msra.mxu0 0
    %2044 = vmatprep.subr.bf16.mxu0 0
    %2045 = vmatpush1.bf16.msra.mxu0 0
    %2046 = vmatprep.subr.bf16.mxu0 0
    %2047 = vmatpush1.bf16.msra.mxu0 0
    %2048 = vmatprep.subr.bf16.mxu0 0
    %2049 = vmatpush1.bf16.msra.mxu0 0
    %2050 = vmatprep.subr.bf16.mxu0 0
    %2051 = vmatpush1.bf16.msra.mxu0 0
    %2052 = vmatprep.subr.bf16.mxu0 0
    %2053 = vmatpush1.bf16.msra.mxu0 0
    %2054 = vmatprep.subr.bf16.mxu0 0
    %2055 = vmatpush1.bf16.msra.mxu0 0
    %2056 = vmatprep.mubr.bf16.mxu0 0
    %2057 = vmatmul.mubr.bf16.gmra.mrb[0].mxu0 %v2019
    %v2058 = vpop.f32.mrb[0].mxu0
    %v2059 = vadd.f32 %v2004, %v2058
    %v2060 = vpop.f32.mrb[0].mxu0
    %v2061 = vpop.f32.mrb[0].mxu0
    %v2062 = vadd.f32 %v2004, %v2061
    %v2063 = vpop.f32.mrb[0].mxu0
    %2064 = vmatprep.mubr.bf16.mxu0 0
    %2065 = vmatmul.mubr.bf16.gmra.mrb[0].mxu0 %v2022
    %v2066 = vpop.f32.mrb[0].mxu0
    %v2067 = vadd.f32 %v2004, %v2066
    %v2068 = vpop.f32.mrb[0].mxu0
    %v2069 = vpop.f32.mrb[0].mxu0
    %v2070 = vadd.f32 %v2004, %v2069
    %v2071 = vpop.f32.mrb[0].mxu0
    %2072 = vdwg.mxu0
    %s2073 = scalar_lea.vmem %s6, 32
    %v2074 = vld [vmem:[%s2073] sm:$0xf]
    %v2075 = vld [vmem:[%s2073 + $0x4] sm:$0xf]
    %v2076 = vld [vmem:[%s2073 + $0x8] sm:$0xf]
    %v2077 = vld [vmem:[%s2073 + $0xc] sm:$0xf]
    %s2078 = scalar_lea.vmem %s7, 2
    %v2079 = vld [vmem:[%s2078] sm:$0x1]
    %v2081 = vlaneseq
    %v2082 = vshrl.u32 %v2081, 7
    %v2083 = vsub.s32 0, %v2082
    %v2084 = vrot.slane %v2079, %v2083
    %v2090 = vunpack.c.l.b16 %v2074
    %v2091 = vunpack.c.l.b16 %v2075
    %v2092 = vunpack.c.l.b16 %v2076
    %v2093 = vunpack.c.l.b16 %v2077
    %v2094 = vpack.c.b16 %v2091, %v2090
    %v2095 = vpack.c.b16 %v2093, %v2092
    %2098 = vmatprep.subr.bf16.mxu0 0
    %2099 = vmatpush1.bf16.msra.mxu0 %v2094
    %2100 = vmatprep.subr.bf16.mxu0 0
    %2101 = vmatpush1.bf16.msra.mxu0 %v2095
    %2102 = vmatprep.subr.bf16.mxu0 0
    %2103 = vmatpush1.bf16.msra.mxu0 0
    %2104 = vmatprep.subr.bf16.mxu0 0
    %2105 = vmatpush1.bf16.msra.mxu0 0
    %2106 = vmatprep.subr.bf16.mxu0 0
    %2107 = vmatpush1.bf16.msra.mxu0 0
    %2108 = vmatprep.subr.bf16.mxu0 0
    %2109 = vmatpush1.bf16.msra.mxu0 0
    %2110 = vmatprep.subr.bf16.mxu0 0
    %2111 = vmatpush1.bf16.msra.mxu0 0
    %2112 = vmatprep.subr.bf16.mxu0 0
    %2113 = vmatpush1.bf16.msra.mxu0 0
    %2114 = vmatprep.subr.bf16.mxu0 0
    %2115 = vmatpush1.bf16.msra.mxu0 0
    %2116 = vmatprep.subr.bf16.mxu0 0
    %2117 = vmatpush1.bf16.msra.mxu0 0
    %2118 = vmatprep.subr.bf16.mxu0 0
    %2119 = vmatpush1.bf16.msra.mxu0 0
    %2120 = vmatprep.subr.bf16.mxu0 0
    %2121 = vmatpush1.bf16.msra.mxu0 0
    %2122 = vmatprep.subr.bf16.mxu0 0
    %2123 = vmatpush1.bf16.msra.mxu0 0
    %2124 = vmatprep.subr.bf16.mxu0 0
    %2125 = vmatpush1.bf16.msra.mxu0 0
    %2126 = vmatprep.subr.bf16.mxu0 0
    %2127 = vmatpush1.bf16.msra.mxu0 0
    %2128 = vmatprep.subr.bf16.mxu0 0
    %2129 = vmatpush1.bf16.msra.mxu0 0
    %2130 = vmatprep.mubr.bf16.mxu0 0
    %2131 = vmatmul.mubr.bf16.gmra.mrb[0].mxu0 %v2019
    %v2132 = vpop.f32.mrb[0].mxu0
    %v2133 = vadd.f32 %v2084, %v2132
    %v2134 = vpop.f32.mrb[0].mxu0
    %v2135 = vpop.f32.mrb[0].mxu0
    %v2136 = vadd.f32 %v2084, %v2135
    %v2137 = vpop.f32.mrb[0].mxu0
    %2138 = vmatprep.mubr.bf16.mxu0 0
    %2139 = vmatmul.mubr.bf16.gmra.mrb[0].mxu0 %v2022
    %v2140 = vpop.f32.mrb[0].mxu0
    %v2141 = vadd.f32 %v2084, %v2140
    %v2142 = vpop.f32.mrb[0].mxu0
    %v2143 = vpop.f32.mrb[0].mxu0
    %v2144 = vadd.f32 %v2084, %v2143
    %v2145 = vpop.f32.mrb[0].mxu0
    %2146 = vdwg.mxu0
    %s2147 = scalar_lea.vmem %s8, 32
    %v2148 = vld [vmem:[%s2147] sm:$0xf]
    %v2149 = vld [vmem:[%s2147 + $0x4] sm:$0xf]
    %v2150 = vld [vmem:[%s2147 + $0x8] sm:$0xf]
    %v2151 = vld [vmem:[%s2147 + $0xc] sm:$0xf]
    %s2152 = scalar_lea.vmem %s9, 2
    %v2153 = vld [vmem:[%s2152] sm:$0x1]
    %v2155 = vlaneseq
    %v2156 = vshrl.u32 %v2155, 7
    %v2157 = vsub.s32 0, %v2156
    %v2158 = vrot.slane %v2153, %v2157
    %v2164 = vunpack.c.l.b16 %v2148
    %v2165 = vunpack.c.l.b16 %v2149
    %v2166 = vunpack.c.l.b16 %v2150
    %v2167 = vunpack.c.l.b16 %v2151
    %v2168 = vpack.c.b16 %v2165, %v2164
    %v2169 = vpack.c.b16 %v2167, %v2166
    %2172 = vmatprep.subr.bf16.mxu0 0
    %2173 = vmatpush1.bf16.msra.mxu0 %v2168
    %2174 = vmatprep.subr.bf16.mxu0 0
    %2175 = vmatpush1.bf16.msra.mxu0 %v2169
    %2176 = vmatprep.subr.bf16.mxu0 0
    %2177 = vmatpush1.bf16.msra.mxu0 0
    %2178 = vmatprep.subr.bf16.mxu0 0
    %2179 = vmatpush1.bf16.msra.mxu0 0
    %2180 = vmatprep.subr.bf16.mxu0 0
    %2181 = vmatpush1.bf16.msra.mxu0 0
    %2182 = vmatprep.subr.bf16.mxu0 0
    %2183 = vmatpush1.bf16.msra.mxu0 0
    %2184 = vmatprep.subr.bf16.mxu0 0
    %2185 = vmatpush1.bf16.msra.mxu0 0
    %2186 = vmatprep.subr.bf16.mxu0 0
    %2187 = vmatpush1.bf16.msra.mxu0 0
    %2188 = vmatprep.subr.bf16.mxu0 0
    %2189 = vmatpush1.bf16.msra.mxu0 0
    %2190 = vmatprep.subr.bf16.mxu0 0
    %2191 = vmatpush1.bf16.msra.mxu0 0
    %2192 = vmatprep.subr.bf16.mxu0 0
    %2193 = vmatpush1.bf16.msra.mxu0 0
    %2194 = vmatprep.subr.bf16.mxu0 0
    %2195 = vmatpush1.bf16.msra.mxu0 0
    %2196 = vmatprep.subr.bf16.mxu0 0
    %2197 = vmatpush1.bf16.msra.mxu0 0
    %2198 = vmatprep.subr.bf16.mxu0 0
    %2199 = vmatpush1.bf16.msra.mxu0 0
    %2200 = vmatprep.subr.bf16.mxu0 0
    %2201 = vmatpush1.bf16.msra.mxu0 0
    %2202 = vmatprep.subr.bf16.mxu0 0
    %2203 = vmatpush1.bf16.msra.mxu0 0
    %2204 = vmatprep.mubr.bf16.mxu0 0
    %2205 = vmatmul.mubr.bf16.gmra.mrb[0].mxu0 %v2019
    %v2206 = vpop.f32.mrb[0].mxu0
    %v2207 = vadd.f32 %v2158, %v2206
    %v2208 = vpop.f32.mrb[0].mxu0
    %v2209 = vpop.f32.mrb[0].mxu0
    %v2210 = vadd.f32 %v2158, %v2209
    %v2211 = vpop.f32.mrb[0].mxu0
    %2212 = vmatprep.mubr.bf16.mxu0 0
    %2213 = vmatmul.mubr.bf16.gmra.mrb[0].mxu0 %v2022
    %v2214 = vpop.f32.mrb[0].mxu0
    %v2215 = vadd.f32 %v2158, %v2214
    %v2216 = vpop.f32.mrb[0].mxu0
    %v2217 = vpop.f32.mrb[0].mxu0
    %v2218 = vadd.f32 %v2158, %v2217
    %v2219 = vpop.f32.mrb[0].mxu0
    %2220 = vdwg.mxu0
    %v2221 = vpack.c.bf16 %v2059, %v2059
    %v2222 = vpack.c.bf16 %v2062, %v2062
    %v2223 = vpack.c.bf16 %v2067, %v2067
    %v2224 = vpack.c.bf16 %v2070, %v2070
    %v2225 = vpack.c.bf16 %v2133, %v2133
    %v2226 = vpack.c.bf16 %v2136, %v2136
    %v2227 = vpack.c.bf16 %v2141, %v2141
    %v2228 = vpack.c.bf16 %v2144, %v2144
    %v2229 = vpack.c.bf16 %v2207, %v2207
    %v2230 = vpack.c.bf16 %v2210, %v2210
    %v2231 = vpack.c.bf16 %v2215, %v2215
    %v2232 = vpack.c.bf16 %v2218, %v2218
    %v2234 = vsel %vm411, %v2221, 0
    %v2237 = vsel %vm411, %v2225, 0
    %2239 = vmatprep.subr.bf16.mxu0 0
    %2240 = vmatpush1.bf16.xpose.msra.mxu0 %v2237
    %2241 = vmatprep.subr.bf16.mxu0 0
    %2242 = vmatpush1.bf16.xpose.msra.mxu0 0
    %2243 = vmatprep.subr.bf16.mxu0 0
    %2244 = vmatpush1.bf16.xpose.msra.mxu0 0
    %2245 = vmatprep.subr.bf16.mxu0 0
    %2246 = vmatpush1.bf16.xpose.msra.mxu0 0
    %2247 = vmatprep.subr.bf16.mxu0 0
    %2248 = vmatpush1.bf16.xpose.msra.mxu0 0
    %2249 = vmatprep.subr.bf16.mxu0 0
    %2250 = vmatpush1.bf16.xpose.msra.mxu0 0
    %2251 = vmatprep.subr.bf16.mxu0 0
    %2252 = vmatpush1.bf16.xpose.msra.mxu0 0
    %2253 = vmatprep.subr.bf16.mxu0 0
    %2254 = vmatpush1.bf16.xpose.msra.mxu0 0
    %2255 = vmatprep.subr.bf16.mxu0 0
    %2256 = vmatpush1.bf16.xpose.msra.mxu0 0
    %2257 = vmatprep.subr.bf16.mxu0 0
    %2258 = vmatpush1.bf16.xpose.msra.mxu0 0
    %2259 = vmatprep.subr.bf16.mxu0 0
    %2260 = vmatpush1.bf16.xpose.msra.mxu0 0
    %2261 = vmatprep.subr.bf16.mxu0 0
    %2262 = vmatpush1.bf16.xpose.msra.mxu0 0
    %2263 = vmatprep.subr.bf16.mxu0 0
    %2264 = vmatpush1.bf16.xpose.msra.mxu0 0
    %2265 = vmatprep.subr.bf16.mxu0 0
    %2266 = vmatpush1.bf16.xpose.msra.mxu0 0
    %2267 = vmatprep.subr.bf16.mxu0 0
    %2268 = vmatpush1.bf16.xpose.msra.mxu0 0
    %2269 = vmatprep.subr.bf16.mxu0 0
    %2270 = vmatpush1.bf16.xpose.msra.mxu0 0
    %2271 = vmatprep.mubr.bf16.mxu0 0
    %2272 = vmatmul.mubr.bf16.gmra.mrb[0].mxu0 %v2234
    %v2273 = vpop.f32.mrb[0].mxu0
    %v2274 = vadd.f32 %v394, %v2273
    %v2275 = vpop.f32.mrb[0].mxu0
    %v2276 = vpop.f32.mrb[0].mxu0
    %v2277 = vpop.f32.mrb[0].mxu0
    %2278 = vdwg.mxu0
    %v2280 = vsel %vm411, %v2222, 0
    %v2283 = vsel %vm411, %v2226, 0
    %2285 = vmatprep.subr.bf16.mxu0 0
    %2286 = vmatpush1.bf16.xpose.msra.mxu0 %v2283
    %2287 = vmatprep.subr.bf16.mxu0 0
    %2288 = vmatpush1.bf16.xpose.msra.mxu0 0
    %2289 = vmatprep.subr.bf16.mxu0 0
    %2290 = vmatpush1.bf16.xpose.msra.mxu0 0
    %2291 = vmatprep.subr.bf16.mxu0 0
    %2292 = vmatpush1.bf16.xpose.msra.mxu0 0
    %2293 = vmatprep.subr.bf16.mxu0 0
    %2294 = vmatpush1.bf16.xpose.msra.mxu0 0
    %2295 = vmatprep.subr.bf16.mxu0 0
    %2296 = vmatpush1.bf16.xpose.msra.mxu0 0
    %2297 = vmatprep.subr.bf16.mxu0 0
    %2298 = vmatpush1.bf16.xpose.msra.mxu0 0
    %2299 = vmatprep.subr.bf16.mxu0 0
    %2300 = vmatpush1.bf16.xpose.msra.mxu0 0
    %2301 = vmatprep.subr.bf16.mxu0 0
    %2302 = vmatpush1.bf16.xpose.msra.mxu0 0
    %2303 = vmatprep.subr.bf16.mxu0 0
    %2304 = vmatpush1.bf16.xpose.msra.mxu0 0
    %2305 = vmatprep.subr.bf16.mxu0 0
    %2306 = vmatpush1.bf16.xpose.msra.mxu0 0
    %2307 = vmatprep.subr.bf16.mxu0 0
    %2308 = vmatpush1.bf16.xpose.msra.mxu0 0
    %2309 = vmatprep.subr.bf16.mxu0 0
    %2310 = vmatpush1.bf16.xpose.msra.mxu0 0
    %2311 = vmatprep.subr.bf16.mxu0 0
    %2312 = vmatpush1.bf16.xpose.msra.mxu0 0
    %2313 = vmatprep.subr.bf16.mxu0 0
    %2314 = vmatpush1.bf16.xpose.msra.mxu0 0
    %2315 = vmatprep.subr.bf16.mxu0 0
    %2316 = vmatpush1.bf16.xpose.msra.mxu0 0
    %2317 = vmatprep.mubr.bf16.mxu0 0
    %2318 = vmatmul.mubr.bf16.gmra.mrb[0].mxu0 %v2280
    %v2319 = vpop.f32.mrb[0].mxu0
    %v2320 = vadd.f32 %v398, %v2319
    %v2321 = vpop.f32.mrb[0].mxu0
    %v2322 = vpop.f32.mrb[0].mxu0
    %v2323 = vpop.f32.mrb[0].mxu0
    %2324 = vdwg.mxu0
    %v2326 = vsel %vm411, %v2223, 0
    %v2329 = vsel %vm411, %v2227, 0
    %2331 = vmatprep.subr.bf16.mxu0 0
    %2332 = vmatpush1.bf16.xpose.msra.mxu0 %v2329
    %2333 = vmatprep.subr.bf16.mxu0 0
    %2334 = vmatpush1.bf16.xpose.msra.mxu0 0
    %2335 = vmatprep.subr.bf16.mxu0 0
    %2336 = vmatpush1.bf16.xpose.msra.mxu0 0
    %2337 = vmatprep.subr.bf16.mxu0 0
    %2338 = vmatpush1.bf16.xpose.msra.mxu0 0
    %2339 = vmatprep.subr.bf16.mxu0 0
    %2340 = vmatpush1.bf16.xpose.msra.mxu0 0
    %2341 = vmatprep.subr.bf16.mxu0 0
    %2342 = vmatpush1.bf16.xpose.msra.mxu0 0
    %2343 = vmatprep.subr.bf16.mxu0 0
    %2344 = vmatpush1.bf16.xpose.msra.mxu0 0
    %2345 = vmatprep.subr.bf16.mxu0 0
    %2346 = vmatpush1.bf16.xpose.msra.mxu0 0
    %2347 = vmatprep.subr.bf16.mxu0 0
    %2348 = vmatpush1.bf16.xpose.msra.mxu0 0
    %2349 = vmatprep.subr.bf16.mxu0 0
    %2350 = vmatpush1.bf16.xpose.msra.mxu0 0
    %2351 = vmatprep.subr.bf16.mxu0 0
    %2352 = vmatpush1.bf16.xpose.msra.mxu0 0
    %2353 = vmatprep.subr.bf16.mxu0 0
    %2354 = vmatpush1.bf16.xpose.msra.mxu0 0
    %2355 = vmatprep.subr.bf16.mxu0 0
    %2356 = vmatpush1.bf16.xpose.msra.mxu0 0
    %2357 = vmatprep.subr.bf16.mxu0 0
    %2358 = vmatpush1.bf16.xpose.msra.mxu0 0
    %2359 = vmatprep.subr.bf16.mxu0 0
    %2360 = vmatpush1.bf16.xpose.msra.mxu0 0
    %2361 = vmatprep.subr.bf16.mxu0 0
    %2362 = vmatpush1.bf16.xpose.msra.mxu0 0
    %2363 = vmatprep.mubr.bf16.mxu0 0
    %2364 = vmatmul.mubr.bf16.gmra.mrb[0].mxu0 %v2326
    %v2365 = vpop.f32.mrb[0].mxu0
    %v2366 = vadd.f32 %v402, %v2365
    %v2367 = vpop.f32.mrb[0].mxu0
    %v2368 = vpop.f32.mrb[0].mxu0
    %v2369 = vpop.f32.mrb[0].mxu0
    %2370 = vdwg.mxu0
    %v2372 = vsel %vm411, %v2224, 0
    %v2375 = vsel %vm411, %v2228, 0
    %2377 = vmatprep.subr.bf16.mxu0 0
    %2378 = vmatpush1.bf16.xpose.msra.mxu0 %v2375
    %2379 = vmatprep.subr.bf16.mxu0 0
    %2380 = vmatpush1.bf16.xpose.msra.mxu0 0
    %2381 = vmatprep.subr.bf16.mxu0 0
    %2382 = vmatpush1.bf16.xpose.msra.mxu0 0
    %2383 = vmatprep.subr.bf16.mxu0 0
    %2384 = vmatpush1.bf16.xpose.msra.mxu0 0
    %2385 = vmatprep.subr.bf16.mxu0 0
    %2386 = vmatpush1.bf16.xpose.msra.mxu0 0
    %2387 = vmatprep.subr.bf16.mxu0 0
    %2388 = vmatpush1.bf16.xpose.msra.mxu0 0
    %2389 = vmatprep.subr.bf16.mxu0 0
    %2390 = vmatpush1.bf16.xpose.msra.mxu0 0
    %2391 = vmatprep.subr.bf16.mxu0 0
    %2392 = vmatpush1.bf16.xpose.msra.mxu0 0
    %2393 = vmatprep.subr.bf16.mxu0 0
    %2394 = vmatpush1.bf16.xpose.msra.mxu0 0
    %2395 = vmatprep.subr.bf16.mxu0 0
    %2396 = vmatpush1.bf16.xpose.msra.mxu0 0
    %2397 = vmatprep.subr.bf16.mxu0 0
    %2398 = vmatpush1.bf16.xpose.msra.mxu0 0
    %2399 = vmatprep.subr.bf16.mxu0 0
    %2400 = vmatpush1.bf16.xpose.msra.mxu0 0
    %2401 = vmatprep.subr.bf16.mxu0 0
    %2402 = vmatpush1.bf16.xpose.msra.mxu0 0
    %2403 = vmatprep.subr.bf16.mxu0 0
    %2404 = vmatpush1.bf16.xpose.msra.mxu0 0
    %2405 = vmatprep.subr.bf16.mxu0 0
    %2406 = vmatpush1.bf16.xpose.msra.mxu0 0
    %2407 = vmatprep.subr.bf16.mxu0 0
    %2408 = vmatpush1.bf16.xpose.msra.mxu0 0
    %2409 = vmatprep.mubr.bf16.mxu0 0
    %2410 = vmatmul.mubr.bf16.gmra.mrb[0].mxu0 %v2372
    %v2411 = vpop.f32.mrb[0].mxu0
    %v2412 = vadd.f32 %v406, %v2411
    %v2413 = vpop.f32.mrb[0].mxu0
    %v2414 = vpop.f32.mrb[0].mxu0
    %v2415 = vpop.f32.mrb[0].mxu0
    %2416 = vdwg.mxu0
    %v2417 = vsel %vm596, %v2274, -inf
    %2418 = vmax.xlane.f32.xlu0 %v2417
    %v2419 = vpop.xlane.xlu0 %2418
    %v2420 = vsel %vm596, %v2320, -inf
    %2421 = vmax.xlane.f32.xlu0 %v2420
    %v2422 = vpop.xlane.xlu0 %2421
    %v2423 = vsel %vm596, %v2366, -inf
    %2424 = vmax.xlane.f32.xlu0 %v2423
    %v2425 = vpop.xlane.xlu0 %2424
    %v2426 = vsel %vm596, %v2412, -inf
    %2427 = vmax.xlane.f32.xlu0 %v2426
    %v2428 = vpop.xlane.xlu0 %2427
    %v2429 = vsub.f32 %v2274, %v2419
    %v2430 = vsub.f32 %v2320, %v2422
    %v2431 = vsub.f32 %v2366, %v2425
    %v2432 = vsub.f32 %v2412, %v2428
    %v2433 = vmul.f32 %v2429, 1.442695
    %v2434 = vpow.pop %v2433
    %v2435 = vmul.f32 %v2430, 1.442695
    %v2436 = vpow.pop %v2435
    %v2437 = vmul.f32 %v2431, 1.442695
    %v2438 = vpow.pop %v2437
    %v2439 = vmul.f32 %v2432, 1.442695
    %v2440 = vpow.pop %v2439
    %v2441 = vsel %vm596, %v2434, 0.0
    %2442 = vadd.xlane.f32.xlu0 %v2441
    %v2443 = vpop.xlane.xlu0 %2442
    %v2444 = vsel %vm596, %v2436, 0.0
    %2445 = vadd.xlane.f32.xlu0 %v2444
    %v2446 = vpop.xlane.xlu0 %2445
    %v2447 = vsel %vm596, %v2438, 0.0
    %2448 = vadd.xlane.f32.xlu0 %v2447
    %v2449 = vpop.xlane.xlu0 %2448
    %v2450 = vsel %vm596, %v2440, 0.0
    %2451 = vadd.xlane.f32.xlu0 %v2450
    %v2452 = vpop.xlane.xlu0 %2451
    %v2453 = vrcp.pop %v2443
    %v2454 = vrcp.pop %v2446
    %v2455 = vrcp.pop %v2449
    %v2456 = vrcp.pop %v2452
    %v2457 = vmul.f32 %v2434, %v2453
    %v2458 = vmul.f32 %v2436, %v2454
    %v2459 = vmul.f32 %v2438, %v2455
    %v2460 = vmul.f32 %v2440, %v2456
    %v2461 = vpack.c.bf16 %v2457, %v2457
    %v2462 = vpack.c.bf16 %v2458, %v2458
    %v2463 = vpack.c.bf16 %v2459, %v2459
    %v2464 = vpack.c.bf16 %v2460, %v2460
    %v2466 = vsel %vm596, %v2461, 0
    %v2469 = vsel %vm648, %v2229, 0
    %2471 = vmatprep.subr.bf16.mxu0 0
    %2472 = vmatpush1.bf16.msra.mxu0 %v2469
    %2473 = vmatprep.subr.bf16.mxu0 0
    %2474 = vmatpush1.bf16.msra.mxu0 0
    %2475 = vmatprep.subr.bf16.mxu0 0
    %2476 = vmatpush1.bf16.msra.mxu0 0
    %2477 = vmatprep.subr.bf16.mxu0 0
    %2478 = vmatpush1.bf16.msra.mxu0 0
    %2479 = vmatprep.subr.bf16.mxu0 0
    %2480 = vmatpush1.bf16.msra.mxu0 0
    %2481 = vmatprep.subr.bf16.mxu0 0
    %2482 = vmatpush1.bf16.msra.mxu0 0
    %2483 = vmatprep.subr.bf16.mxu0 0
    %2484 = vmatpush1.bf16.msra.mxu0 0
    %2485 = vmatprep.subr.bf16.mxu0 0
    %2486 = vmatpush1.bf16.msra.mxu0 0
    %2487 = vmatprep.subr.bf16.mxu0 0
    %2488 = vmatpush1.bf16.msra.mxu0 0
    %2489 = vmatprep.subr.bf16.mxu0 0
    %2490 = vmatpush1.bf16.msra.mxu0 0
    %2491 = vmatprep.subr.bf16.mxu0 0
    %2492 = vmatpush1.bf16.msra.mxu0 0
    %2493 = vmatprep.subr.bf16.mxu0 0
    %2494 = vmatpush1.bf16.msra.mxu0 0
    %2495 = vmatprep.subr.bf16.mxu0 0
    %2496 = vmatpush1.bf16.msra.mxu0 0
    %2497 = vmatprep.subr.bf16.mxu0 0
    %2498 = vmatpush1.bf16.msra.mxu0 0
    %2499 = vmatprep.subr.bf16.mxu0 0
    %2500 = vmatpush1.bf16.msra.mxu0 0
    %2501 = vmatprep.subr.bf16.mxu0 0
    %2502 = vmatpush1.bf16.msra.mxu0 0
    %2503 = vmatprep.mubr.bf16.mxu0 0
    %2504 = vmatmul.mubr.bf16.gmra.mrb[0].mxu0 %v2466
    %v2505 = vpop.f32.mrb[0].mxu0
    %v2506 = vadd.f32 0.0, %v2505
    %v2507 = vpop.f32.mrb[0].mxu0
    %v2508 = vpop.f32.mrb[0].mxu0
    %v2509 = vpop.f32.mrb[0].mxu0
    %2510 = vdwg.mxu0
    %v2512 = vsel %vm596, %v2462, 0
    %v2515 = vsel %vm648, %v2230, 0
    %2517 = vmatprep.subr.bf16.mxu0 0
    %2518 = vmatpush1.bf16.msra.mxu0 %v2515
    %2519 = vmatprep.subr.bf16.mxu0 0
    %2520 = vmatpush1.bf16.msra.mxu0 0
    %2521 = vmatprep.subr.bf16.mxu0 0
    %2522 = vmatpush1.bf16.msra.mxu0 0
    %2523 = vmatprep.subr.bf16.mxu0 0
    %2524 = vmatpush1.bf16.msra.mxu0 0
    %2525 = vmatprep.subr.bf16.mxu0 0
    %2526 = vmatpush1.bf16.msra.mxu0 0
    %2527 = vmatprep.subr.bf16.mxu0 0
    %2528 = vmatpush1.bf16.msra.mxu0 0
    %2529 = vmatprep.subr.bf16.mxu0 0
    %2530 = vmatpush1.bf16.msra.mxu0 0
    %2531 = vmatprep.subr.bf16.mxu0 0
    %2532 = vmatpush1.bf16.msra.mxu0 0
    %2533 = vmatprep.subr.bf16.mxu0 0
    %2534 = vmatpush1.bf16.msra.mxu0 0
    %2535 = vmatprep.subr.bf16.mxu0 0
    %2536 = vmatpush1.bf16.msra.mxu0 0
    %2537 = vmatprep.subr.bf16.mxu0 0
    %2538 = vmatpush1.bf16.msra.mxu0 0
    %2539 = vmatprep.subr.bf16.mxu0 0
    %2540 = vmatpush1.bf16.msra.mxu0 0
    %2541 = vmatprep.subr.bf16.mxu0 0
    %2542 = vmatpush1.bf16.msra.mxu0 0
    %2543 = vmatprep.subr.bf16.mxu0 0
    %2544 = vmatpush1.bf16.msra.mxu0 0
    %2545 = vmatprep.subr.bf16.mxu0 0
    %2546 = vmatpush1.bf16.msra.mxu0 0
    %2547 = vmatprep.subr.bf16.mxu0 0
    %2548 = vmatpush1.bf16.msra.mxu0 0
    %2549 = vmatprep.mubr.bf16.mxu0 0
    %2550 = vmatmul.mubr.bf16.gmra.mrb[0].mxu0 %v2512
    %v2551 = vpop.f32.mrb[0].mxu0
    %v2552 = vadd.f32 0.0, %v2551
    %v2553 = vpop.f32.mrb[0].mxu0
    %v2554 = vpop.f32.mrb[0].mxu0
    %v2555 = vpop.f32.mrb[0].mxu0
    %2556 = vdwg.mxu0
    %v2558 = vsel %vm596, %v2463, 0
    %v2561 = vsel %vm648, %v2231, 0
    %2563 = vmatprep.subr.bf16.mxu0 0
    %2564 = vmatpush1.bf16.msra.mxu0 %v2561
    %2565 = vmatprep.subr.bf16.mxu0 0
    %2566 = vmatpush1.bf16.msra.mxu0 0
    %2567 = vmatprep.subr.bf16.mxu0 0
    %2568 = vmatpush1.bf16.msra.mxu0 0
    %2569 = vmatprep.subr.bf16.mxu0 0
    %2570 = vmatpush1.bf16.msra.mxu0 0
    %2571 = vmatprep.subr.bf16.mxu0 0
    %2572 = vmatpush1.bf16.msra.mxu0 0
    %2573 = vmatprep.subr.bf16.mxu0 0
    %2574 = vmatpush1.bf16.msra.mxu0 0
    %2575 = vmatprep.subr.bf16.mxu0 0
    %2576 = vmatpush1.bf16.msra.mxu0 0
    %2577 = vmatprep.subr.bf16.mxu0 0
    %2578 = vmatpush1.bf16.msra.mxu0 0
    %2579 = vmatprep.subr.bf16.mxu0 0
    %2580 = vmatpush1.bf16.msra.mxu0 0
    %2581 = vmatprep.subr.bf16.mxu0 0
    %2582 = vmatpush1.bf16.msra.mxu0 0
    %2583 = vmatprep.subr.bf16.mxu0 0
    %2584 = vmatpush1.bf16.msra.mxu0 0
    %2585 = vmatprep.subr.bf16.mxu0 0
    %2586 = vmatpush1.bf16.msra.mxu0 0
    %2587 = vmatprep.subr.bf16.mxu0 0
    %2588 = vmatpush1.bf16.msra.mxu0 0
    %2589 = vmatprep.subr.bf16.mxu0 0
    %2590 = vmatpush1.bf16.msra.mxu0 0
    %2591 = vmatprep.subr.bf16.mxu0 0
    %2592 = vmatpush1.bf16.msra.mxu0 0
    %2593 = vmatprep.subr.bf16.mxu0 0
    %2594 = vmatpush1.bf16.msra.mxu0 0
    %2595 = vmatprep.mubr.bf16.mxu0 0
    %2596 = vmatmul.mubr.bf16.gmra.mrb[0].mxu0 %v2558
    %v2597 = vpop.f32.mrb[0].mxu0
    %v2598 = vadd.f32 0.0, %v2597
    %v2599 = vpop.f32.mrb[0].mxu0
    %v2600 = vpop.f32.mrb[0].mxu0
    %v2601 = vpop.f32.mrb[0].mxu0
    %2602 = vdwg.mxu0
    %v2604 = vsel %vm596, %v2464, 0
    %v2607 = vsel %vm648, %v2232, 0
    %2609 = vmatprep.subr.bf16.mxu0 0
    %2610 = vmatpush1.bf16.msra.mxu0 %v2607
    %2611 = vmatprep.subr.bf16.mxu0 0
    %2612 = vmatpush1.bf16.msra.mxu0 0
    %2613 = vmatprep.subr.bf16.mxu0 0
    %2614 = vmatpush1.bf16.msra.mxu0 0
    %2615 = vmatprep.subr.bf16.mxu0 0
    %2616 = vmatpush1.bf16.msra.mxu0 0
    %2617 = vmatprep.subr.bf16.mxu0 0
    %2618 = vmatpush1.bf16.msra.mxu0 0
    %2619 = vmatprep.subr.bf16.mxu0 0
    %2620 = vmatpush1.bf16.msra.mxu0 0
    %2621 = vmatprep.subr.bf16.mxu0 0
    %2622 = vmatpush1.bf16.msra.mxu0 0
    %2623 = vmatprep.subr.bf16.mxu0 0
    %2624 = vmatpush1.bf16.msra.mxu0 0
    %2625 = vmatprep.subr.bf16.mxu0 0
    %2626 = vmatpush1.bf16.msra.mxu0 0
    %2627 = vmatprep.subr.bf16.mxu0 0
    %2628 = vmatpush1.bf16.msra.mxu0 0
    %2629 = vmatprep.subr.bf16.mxu0 0
    %2630 = vmatpush1.bf16.msra.mxu0 0
    %2631 = vmatprep.subr.bf16.mxu0 0
    %2632 = vmatpush1.bf16.msra.mxu0 0
    %2633 = vmatprep.subr.bf16.mxu0 0
    %2634 = vmatpush1.bf16.msra.mxu0 0
    %2635 = vmatprep.subr.bf16.mxu0 0
    %2636 = vmatpush1.bf16.msra.mxu0 0
    %2637 = vmatprep.subr.bf16.mxu0 0
    %2638 = vmatpush1.bf16.msra.mxu0 0
    %2639 = vmatprep.subr.bf16.mxu0 0
    %2640 = vmatpush1.bf16.msra.mxu0 0
    %2641 = vmatprep.mubr.bf16.mxu0 0
    %2642 = vmatmul.mubr.bf16.gmra.mrb[0].mxu0 %v2604
    %v2643 = vpop.f32.mrb[0].mxu0
    %v2644 = vadd.f32 0.0, %v2643
    %v2645 = vpop.f32.mrb[0].mxu0
    %v2646 = vpop.f32.mrb[0].mxu0
    %v2647 = vpop.f32.mrb[0].mxu0
    %2648 = vdwg.mxu0
    %v2649 = vpack.c.bf16 %v2552, %v2506
    %v2650 = vpack.c.bf16 %v2644, %v2598
    %s2651 = scalar_lea.vmem %s10, 16
    %v2652 = vld [vmem:[%s2651] sm:$0xf]
    %v2653 = vld [vmem:[%s2651 + $0x4] sm:$0xf]
    %s2654 = scalar_lea.vmem %s4, 48
    %v2655 = vld [vmem:[%s2654] sm:$0xf]
    %v2656 = vld [vmem:[%s2654 + $0x4] sm:$0xf]
    %v2657 = vld [vmem:[%s2654 + $0x8] sm:$0xf]
    %v2658 = vld [vmem:[%s2654 + $0xc] sm:$0xf]
    %s2659 = scalar_lea.vmem %s5, 3
    %v2660 = vld [vmem:[%s2659] sm:$0x1]
    %v2662 = vlaneseq
    %v2663 = vshrl.u32 %v2662, 7
    %v2664 = vsub.s32 0, %v2663
    %v2665 = vrot.slane %v2660, %v2664
    %v2671 = vunpack.c.l.b16 %v2655
    %v2672 = vunpack.c.l.b16 %v2656
    %v2673 = vunpack.c.l.b16 %v2657
    %v2674 = vunpack.c.l.b16 %v2658
    %v2675 = vpack.c.b16 %v2672, %v2671
    %v2676 = vpack.c.b16 %v2674, %v2673
    %2679 = vmatprep.subr.bf16.mxu0 0
    %2680 = vmatpush1.bf16.msra.mxu0 %v2675
    %2681 = vmatprep.subr.bf16.mxu0 0
    %2682 = vmatpush1.bf16.msra.mxu0 %v2676
    %2683 = vmatprep.subr.bf16.mxu0 0
    %2684 = vmatpush1.bf16.msra.mxu0 0
    %2685 = vmatprep.subr.bf16.mxu0 0
    %2686 = vmatpush1.bf16.msra.mxu0 0
    %2687 = vmatprep.subr.bf16.mxu0 0
    %2688 = vmatpush1.bf16.msra.mxu0 0
    %2689 = vmatprep.subr.bf16.mxu0 0
    %2690 = vmatpush1.bf16.msra.mxu0 0
    %2691 = vmatprep.subr.bf16.mxu0 0
    %2692 = vmatpush1.bf16.msra.mxu0 0
    %2693 = vmatprep.subr.bf16.mxu0 0
    %2694 = vmatpush1.bf16.msra.mxu0 0
    %2695 = vmatprep.subr.bf16.mxu0 0
    %2696 = vmatpush1.bf16.msra.mxu0 0
    %2697 = vmatprep.subr.bf16.mxu0 0
    %2698 = vmatpush1.bf16.msra.mxu0 0
    %2699 = vmatprep.subr.bf16.mxu0 0
    %2700 = vmatpush1.bf16.msra.mxu0 0
    %2701 = vmatprep.subr.bf16.mxu0 0
    %2702 = vmatpush1.bf16.msra.mxu0 0
    %2703 = vmatprep.subr.bf16.mxu0 0
    %2704 = vmatpush1.bf16.msra.mxu0 0
    %2705 = vmatprep.subr.bf16.mxu0 0
    %2706 = vmatpush1.bf16.msra.mxu0 0
    %2707 = vmatprep.subr.bf16.mxu0 0
    %2708 = vmatpush1.bf16.msra.mxu0 0
    %2709 = vmatprep.subr.bf16.mxu0 0
    %2710 = vmatpush1.bf16.msra.mxu0 0
    %2711 = vmatprep.mubr.bf16.mxu0 0
    %2712 = vmatmul.mubr.bf16.gmra.mrb[0].mxu0 %v2019
    %v2713 = vpop.f32.mrb[0].mxu0
    %v2714 = vadd.f32 %v2665, %v2713
    %v2715 = vpop.f32.mrb[0].mxu0
    %v2716 = vpop.f32.mrb[0].mxu0
    %v2717 = vadd.f32 %v2665, %v2716
    %v2718 = vpop.f32.mrb[0].mxu0
    %2719 = vmatprep.mubr.bf16.mxu0 0
    %2720 = vmatmul.mubr.bf16.gmra.mrb[0].mxu0 %v2022
    %v2721 = vpop.f32.mrb[0].mxu0
    %v2722 = vadd.f32 %v2665, %v2721
    %v2723 = vpop.f32.mrb[0].mxu0
    %v2724 = vpop.f32.mrb[0].mxu0
    %v2725 = vadd.f32 %v2665, %v2724
    %v2726 = vpop.f32.mrb[0].mxu0
    %2727 = vdwg.mxu0
    %s2728 = scalar_lea.vmem %s6, 48
    %v2729 = vld [vmem:[%s2728] sm:$0xf]
    %v2730 = vld [vmem:[%s2728 + $0x4] sm:$0xf]
    %v2731 = vld [vmem:[%s2728 + $0x8] sm:$0xf]
    %v2732 = vld [vmem:[%s2728 + $0xc] sm:$0xf]
    %s2733 = scalar_lea.vmem %s7, 3
    %v2734 = vld [vmem:[%s2733] sm:$0x1]
    %v2736 = vlaneseq
    %v2737 = vshrl.u32 %v2736, 7
    %v2738 = vsub.s32 0, %v2737
    %v2739 = vrot.slane %v2734, %v2738
    %v2745 = vunpack.c.l.b16 %v2729
    %v2746 = vunpack.c.l.b16 %v2730
    %v2747 = vunpack.c.l.b16 %v2731
    %v2748 = vunpack.c.l.b16 %v2732
    %v2749 = vpack.c.b16 %v2746, %v2745
    %v2750 = vpack.c.b16 %v2748, %v2747
    %2753 = vmatprep.subr.bf16.mxu0 0
    %2754 = vmatpush1.bf16.msra.mxu0 %v2749
    %2755 = vmatprep.subr.bf16.mxu0 0
    %2756 = vmatpush1.bf16.msra.mxu0 %v2750
    %2757 = vmatprep.subr.bf16.mxu0 0
    %2758 = vmatpush1.bf16.msra.mxu0 0
    %2759 = vmatprep.subr.bf16.mxu0 0
    %2760 = vmatpush1.bf16.msra.mxu0 0
    %2761 = vmatprep.subr.bf16.mxu0 0
    %2762 = vmatpush1.bf16.msra.mxu0 0
    %2763 = vmatprep.subr.bf16.mxu0 0
    %2764 = vmatpush1.bf16.msra.mxu0 0
    %2765 = vmatprep.subr.bf16.mxu0 0
    %2766 = vmatpush1.bf16.msra.mxu0 0
    %2767 = vmatprep.subr.bf16.mxu0 0
    %2768 = vmatpush1.bf16.msra.mxu0 0
    %2769 = vmatprep.subr.bf16.mxu0 0
    %2770 = vmatpush1.bf16.msra.mxu0 0
    %2771 = vmatprep.subr.bf16.mxu0 0
    %2772 = vmatpush1.bf16.msra.mxu0 0
    %2773 = vmatprep.subr.bf16.mxu0 0
    %2774 = vmatpush1.bf16.msra.mxu0 0
    %2775 = vmatprep.subr.bf16.mxu0 0
    %2776 = vmatpush1.bf16.msra.mxu0 0
    %2777 = vmatprep.subr.bf16.mxu0 0
    %2778 = vmatpush1.bf16.msra.mxu0 0
    %2779 = vmatprep.subr.bf16.mxu0 0
    %2780 = vmatpush1.bf16.msra.mxu0 0
    %2781 = vmatprep.subr.bf16.mxu0 0
    %2782 = vmatpush1.bf16.msra.mxu0 0
    %2783 = vmatprep.subr.bf16.mxu0 0
    %2784 = vmatpush1.bf16.msra.mxu0 0
    %2785 = vmatprep.mubr.bf16.mxu0 0
    %2786 = vmatmul.mubr.bf16.gmra.mrb[0].mxu0 %v2019
    %v2787 = vpop.f32.mrb[0].mxu0
    %v2788 = vadd.f32 %v2739, %v2787
    %v2789 = vpop.f32.mrb[0].mxu0
    %v2790 = vpop.f32.mrb[0].mxu0
    %v2791 = vadd.f32 %v2739, %v2790
    %v2792 = vpop.f32.mrb[0].mxu0
    %2793 = vmatprep.mubr.bf16.mxu0 0
    %2794 = vmatmul.mubr.bf16.gmra.mrb[0].mxu0 %v2022
    %v2795 = vpop.f32.mrb[0].mxu0
    %v2796 = vadd.f32 %v2739, %v2795
    %v2797 = vpop.f32.mrb[0].mxu0
    %v2798 = vpop.f32.mrb[0].mxu0
    %v2799 = vadd.f32 %v2739, %v2798
    %v2800 = vpop.f32.mrb[0].mxu0
    %2801 = vdwg.mxu0
    %s2802 = scalar_lea.vmem %s8, 48
    %v2803 = vld [vmem:[%s2802] sm:$0xf]
    %v2804 = vld [vmem:[%s2802 + $0x4] sm:$0xf]
    %v2805 = vld [vmem:[%s2802 + $0x8] sm:$0xf]
    %v2806 = vld [vmem:[%s2802 + $0xc] sm:$0xf]
    %s2807 = scalar_lea.vmem %s9, 3
    %v2808 = vld [vmem:[%s2807] sm:$0x1]
    %v2810 = vlaneseq
    %v2811 = vshrl.u32 %v2810, 7
    %v2812 = vsub.s32 0, %v2811
    %v2813 = vrot.slane %v2808, %v2812
    %v2819 = vunpack.c.l.b16 %v2803
    %v2820 = vunpack.c.l.b16 %v2804
    %v2821 = vunpack.c.l.b16 %v2805
    %v2822 = vunpack.c.l.b16 %v2806
    %v2823 = vpack.c.b16 %v2820, %v2819
    %v2824 = vpack.c.b16 %v2822, %v2821
    %2827 = vmatprep.subr.bf16.mxu0 0
    %2828 = vmatpush1.bf16.msra.mxu0 %v2823
    %2829 = vmatprep.subr.bf16.mxu0 0
    %2830 = vmatpush1.bf16.msra.mxu0 %v2824
    %2831 = vmatprep.subr.bf16.mxu0 0
    %2832 = vmatpush1.bf16.msra.mxu0 0
    %2833 = vmatprep.subr.bf16.mxu0 0
    %2834 = vmatpush1.bf16.msra.mxu0 0
    %2835 = vmatprep.subr.bf16.mxu0 0
    %2836 = vmatpush1.bf16.msra.mxu0 0
    %2837 = vmatprep.subr.bf16.mxu0 0
    %2838 = vmatpush1.bf16.msra.mxu0 0
    %2839 = vmatprep.subr.bf16.mxu0 0
    %2840 = vmatpush1.bf16.msra.mxu0 0
    %2841 = vmatprep.subr.bf16.mxu0 0
    %2842 = vmatpush1.bf16.msra.mxu0 0
    %2843 = vmatprep.subr.bf16.mxu0 0
    %2844 = vmatpush1.bf16.msra.mxu0 0
    %2845 = vmatprep.subr.bf16.mxu0 0
    %2846 = vmatpush1.bf16.msra.mxu0 0
    %2847 = vmatprep.subr.bf16.mxu0 0
    %2848 = vmatpush1.bf16.msra.mxu0 0
    %2849 = vmatprep.subr.bf16.mxu0 0
    %2850 = vmatpush1.bf16.msra.mxu0 0
    %2851 = vmatprep.subr.bf16.mxu0 0
    %2852 = vmatpush1.bf16.msra.mxu0 0
    %2853 = vmatprep.subr.bf16.mxu0 0
    %2854 = vmatpush1.bf16.msra.mxu0 0
    %2855 = vmatprep.subr.bf16.mxu0 0
    %2856 = vmatpush1.bf16.msra.mxu0 0
    %2857 = vmatprep.subr.bf16.mxu0 0
    %2858 = vmatpush1.bf16.msra.mxu0 0
    %2859 = vmatprep.mubr.bf16.mxu0 0
    %2860 = vmatmul.mubr.bf16.gmra.mrb[0].mxu0 %v2019
    %v2861 = vpop.f32.mrb[0].mxu0
    %v2862 = vadd.f32 %v2813, %v2861
    %v2863 = vpop.f32.mrb[0].mxu0
    %v2864 = vpop.f32.mrb[0].mxu0
    %v2865 = vadd.f32 %v2813, %v2864
    %v2866 = vpop.f32.mrb[0].mxu0
    %2867 = vmatprep.mubr.bf16.mxu0 0
    %2868 = vmatmul.mubr.bf16.gmra.mrb[0].mxu0 %v2022
    %v2869 = vpop.f32.mrb[0].mxu0
    %v2870 = vadd.f32 %v2813, %v2869
    %v2871 = vpop.f32.mrb[0].mxu0
    %v2872 = vpop.f32.mrb[0].mxu0
    %v2873 = vadd.f32 %v2813, %v2872
    %v2874 = vpop.f32.mrb[0].mxu0
    %2875 = vdwg.mxu0
    %v2876 = vpack.c.bf16 %v2714, %v2714
    %v2877 = vpack.c.bf16 %v2717, %v2717
    %v2878 = vpack.c.bf16 %v2722, %v2722
    %v2879 = vpack.c.bf16 %v2725, %v2725
    %v2880 = vpack.c.bf16 %v2788, %v2788
    %v2881 = vpack.c.bf16 %v2791, %v2791
    %v2882 = vpack.c.bf16 %v2796, %v2796
    %v2883 = vpack.c.bf16 %v2799, %v2799
    %v2884 = vpack.c.bf16 %v2862, %v2862
    %v2885 = vpack.c.bf16 %v2865, %v2865
    %v2886 = vpack.c.bf16 %v2870, %v2870
    %v2887 = vpack.c.bf16 %v2873, %v2873
    %v2889 = vsel %vm411, %v2876, 0
    %v2892 = vsel %vm411, %v2880, 0
    %2894 = vmatprep.subr.bf16.mxu0 0
    %2895 = vmatpush1.bf16.xpose.msra.mxu0 %v2892
    %2896 = vmatprep.subr.bf16.mxu0 0
    %2897 = vmatpush1.bf16.xpose.msra.mxu0 0
    %2898 = vmatprep.subr.bf16.mxu0 0
    %2899 = vmatpush1.bf16.xpose.msra.mxu0 0
    %2900 = vmatprep.subr.bf16.mxu0 0
    %2901 = vmatpush1.bf16.xpose.msra.mxu0 0
    %2902 = vmatprep.subr.bf16.mxu0 0
    %2903 = vmatpush1.bf16.xpose.msra.mxu0 0
    %2904 = vmatprep.subr.bf16.mxu0 0
    %2905 = vmatpush1.bf16.xpose.msra.mxu0 0
    %2906 = vmatprep.subr.bf16.mxu0 0
    %2907 = vmatpush1.bf16.xpose.msra.mxu0 0
    %2908 = vmatprep.subr.bf16.mxu0 0
    %2909 = vmatpush1.bf16.xpose.msra.mxu0 0
    %2910 = vmatprep.subr.bf16.mxu0 0
    %2911 = vmatpush1.bf16.xpose.msra.mxu0 0
    %2912 = vmatprep.subr.bf16.mxu0 0
    %2913 = vmatpush1.bf16.xpose.msra.mxu0 0
    %2914 = vmatprep.subr.bf16.mxu0 0
    %2915 = vmatpush1.bf16.xpose.msra.mxu0 0
    %2916 = vmatprep.subr.bf16.mxu0 0
    %2917 = vmatpush1.bf16.xpose.msra.mxu0 0
    %2918 = vmatprep.subr.bf16.mxu0 0
    %2919 = vmatpush1.bf16.xpose.msra.mxu0 0
    %2920 = vmatprep.subr.bf16.mxu0 0
    %2921 = vmatpush1.bf16.xpose.msra.mxu0 0
    %2922 = vmatprep.subr.bf16.mxu0 0
    %2923 = vmatpush1.bf16.xpose.msra.mxu0 0
    %2924 = vmatprep.subr.bf16.mxu0 0
    %2925 = vmatpush1.bf16.xpose.msra.mxu0 0
    %2926 = vmatprep.mubr.bf16.mxu0 0
    %2927 = vmatmul.mubr.bf16.gmra.mrb[0].mxu0 %v2889
    %v2928 = vpop.f32.mrb[0].mxu0
    %v2929 = vadd.f32 %v394, %v2928
    %v2930 = vpop.f32.mrb[0].mxu0
    %v2931 = vpop.f32.mrb[0].mxu0
    %v2932 = vpop.f32.mrb[0].mxu0
    %2933 = vdwg.mxu0
    %v2935 = vsel %vm411, %v2877, 0
    %v2938 = vsel %vm411, %v2881, 0
    %2940 = vmatprep.subr.bf16.mxu0 0
    %2941 = vmatpush1.bf16.xpose.msra.mxu0 %v2938
    %2942 = vmatprep.subr.bf16.mxu0 0
    %2943 = vmatpush1.bf16.xpose.msra.mxu0 0
    %2944 = vmatprep.subr.bf16.mxu0 0
    %2945 = vmatpush1.bf16.xpose.msra.mxu0 0
    %2946 = vmatprep.subr.bf16.mxu0 0
    %2947 = vmatpush1.bf16.xpose.msra.mxu0 0
    %2948 = vmatprep.subr.bf16.mxu0 0
    %2949 = vmatpush1.bf16.xpose.msra.mxu0 0
    %2950 = vmatprep.subr.bf16.mxu0 0
    %2951 = vmatpush1.bf16.xpose.msra.mxu0 0
    %2952 = vmatprep.subr.bf16.mxu0 0
    %2953 = vmatpush1.bf16.xpose.msra.mxu0 0
    %2954 = vmatprep.subr.bf16.mxu0 0
    %2955 = vmatpush1.bf16.xpose.msra.mxu0 0
    %2956 = vmatprep.subr.bf16.mxu0 0
    %2957 = vmatpush1.bf16.xpose.msra.mxu0 0
    %2958 = vmatprep.subr.bf16.mxu0 0
    %2959 = vmatpush1.bf16.xpose.msra.mxu0 0
    %2960 = vmatprep.subr.bf16.mxu0 0
    %2961 = vmatpush1.bf16.xpose.msra.mxu0 0
    %2962 = vmatprep.subr.bf16.mxu0 0
    %2963 = vmatpush1.bf16.xpose.msra.mxu0 0
    %2964 = vmatprep.subr.bf16.mxu0 0
    %2965 = vmatpush1.bf16.xpose.msra.mxu0 0
    %2966 = vmatprep.subr.bf16.mxu0 0
    %2967 = vmatpush1.bf16.xpose.msra.mxu0 0
    %2968 = vmatprep.subr.bf16.mxu0 0
    %2969 = vmatpush1.bf16.xpose.msra.mxu0 0
    %2970 = vmatprep.subr.bf16.mxu0 0
    %2971 = vmatpush1.bf16.xpose.msra.mxu0 0
    %2972 = vmatprep.mubr.bf16.mxu0 0
    %2973 = vmatmul.mubr.bf16.gmra.mrb[0].mxu0 %v2935
    %v2974 = vpop.f32.mrb[0].mxu0
    %v2975 = vadd.f32 %v398, %v2974
    %v2976 = vpop.f32.mrb[0].mxu0
    %v2977 = vpop.f32.mrb[0].mxu0
    %v2978 = vpop.f32.mrb[0].mxu0
    %2979 = vdwg.mxu0
    %v2981 = vsel %vm411, %v2878, 0
    %v2984 = vsel %vm411, %v2882, 0
    %2986 = vmatprep.subr.bf16.mxu0 0
    %2987 = vmatpush1.bf16.xpose.msra.mxu0 %v2984
    %2988 = vmatprep.subr.bf16.mxu0 0
    %2989 = vmatpush1.bf16.xpose.msra.mxu0 0
    %2990 = vmatprep.subr.bf16.mxu0 0
    %2991 = vmatpush1.bf16.xpose.msra.mxu0 0
    %2992 = vmatprep.subr.bf16.mxu0 0
    %2993 = vmatpush1.bf16.xpose.msra.mxu0 0
    %2994 = vmatprep.subr.bf16.mxu0 0
    %2995 = vmatpush1.bf16.xpose.msra.mxu0 0
    %2996 = vmatprep.subr.bf16.mxu0 0
    %2997 = vmatpush1.bf16.xpose.msra.mxu0 0
    %2998 = vmatprep.subr.bf16.mxu0 0
    %2999 = vmatpush1.bf16.xpose.msra.mxu0 0
    %3000 = vmatprep.subr.bf16.mxu0 0
    %3001 = vmatpush1.bf16.xpose.msra.mxu0 0
    %3002 = vmatprep.subr.bf16.mxu0 0
    %3003 = vmatpush1.bf16.xpose.msra.mxu0 0
    %3004 = vmatprep.subr.bf16.mxu0 0
    %3005 = vmatpush1.bf16.xpose.msra.mxu0 0
    %3006 = vmatprep.subr.bf16.mxu0 0
    %3007 = vmatpush1.bf16.xpose.msra.mxu0 0
    %3008 = vmatprep.subr.bf16.mxu0 0
    %3009 = vmatpush1.bf16.xpose.msra.mxu0 0
    %3010 = vmatprep.subr.bf16.mxu0 0
    %3011 = vmatpush1.bf16.xpose.msra.mxu0 0
    %3012 = vmatprep.subr.bf16.mxu0 0
    %3013 = vmatpush1.bf16.xpose.msra.mxu0 0
    %3014 = vmatprep.subr.bf16.mxu0 0
    %3015 = vmatpush1.bf16.xpose.msra.mxu0 0
    %3016 = vmatprep.subr.bf16.mxu0 0
    %3017 = vmatpush1.bf16.xpose.msra.mxu0 0
    %3018 = vmatprep.mubr.bf16.mxu0 0
    %3019 = vmatmul.mubr.bf16.gmra.mrb[0].mxu0 %v2981
    %v3020 = vpop.f32.mrb[0].mxu0
    %v3021 = vadd.f32 %v402, %v3020
    %v3022 = vpop.f32.mrb[0].mxu0
    %v3023 = vpop.f32.mrb[0].mxu0
    %v3024 = vpop.f32.mrb[0].mxu0
    %3025 = vdwg.mxu0
    %v3027 = vsel %vm411, %v2879, 0
    %v3030 = vsel %vm411, %v2883, 0
    %3032 = vmatprep.subr.bf16.mxu0 0
    %3033 = vmatpush1.bf16.xpose.msra.mxu0 %v3030
    %3034 = vmatprep.subr.bf16.mxu0 0
    %3035 = vmatpush1.bf16.xpose.msra.mxu0 0
    %3036 = vmatprep.subr.bf16.mxu0 0
    %3037 = vmatpush1.bf16.xpose.msra.mxu0 0
    %3038 = vmatprep.subr.bf16.mxu0 0
    %3039 = vmatpush1.bf16.xpose.msra.mxu0 0
    %3040 = vmatprep.subr.bf16.mxu0 0
    %3041 = vmatpush1.bf16.xpose.msra.mxu0 0
    %3042 = vmatprep.subr.bf16.mxu0 0
    %3043 = vmatpush1.bf16.xpose.msra.mxu0 0
    %3044 = vmatprep.subr.bf16.mxu0 0
    %3045 = vmatpush1.bf16.xpose.msra.mxu0 0
    %3046 = vmatprep.subr.bf16.mxu0 0
    %3047 = vmatpush1.bf16.xpose.msra.mxu0 0
    %3048 = vmatprep.subr.bf16.mxu0 0
    %3049 = vmatpush1.bf16.xpose.msra.mxu0 0
    %3050 = vmatprep.subr.bf16.mxu0 0
    %3051 = vmatpush1.bf16.xpose.msra.mxu0 0
    %3052 = vmatprep.subr.bf16.mxu0 0
    %3053 = vmatpush1.bf16.xpose.msra.mxu0 0
    %3054 = vmatprep.subr.bf16.mxu0 0
    %3055 = vmatpush1.bf16.xpose.msra.mxu0 0
    %3056 = vmatprep.subr.bf16.mxu0 0
    %3057 = vmatpush1.bf16.xpose.msra.mxu0 0
    %3058 = vmatprep.subr.bf16.mxu0 0
    %3059 = vmatpush1.bf16.xpose.msra.mxu0 0
    %3060 = vmatprep.subr.bf16.mxu0 0
    %3061 = vmatpush1.bf16.xpose.msra.mxu0 0
    %3062 = vmatprep.subr.bf16.mxu0 0
    %3063 = vmatpush1.bf16.xpose.msra.mxu0 0
    %3064 = vmatprep.mubr.bf16.mxu0 0
    %3065 = vmatmul.mubr.bf16.gmra.mrb[0].mxu0 %v3027
    %v3066 = vpop.f32.mrb[0].mxu0
    %v3067 = vadd.f32 %v406, %v3066
    %v3068 = vpop.f32.mrb[0].mxu0
    %v3069 = vpop.f32.mrb[0].mxu0
    %v3070 = vpop.f32.mrb[0].mxu0
    %3071 = vdwg.mxu0
    %v3072 = vsel %vm596, %v2929, -inf
    %3073 = vmax.xlane.f32.xlu0 %v3072
    %v3074 = vpop.xlane.xlu0 %3073
    %v3075 = vsel %vm596, %v2975, -inf
    %3076 = vmax.xlane.f32.xlu0 %v3075
    %v3077 = vpop.xlane.xlu0 %3076
    %v3078 = vsel %vm596, %v3021, -inf
    %3079 = vmax.xlane.f32.xlu0 %v3078
    %v3080 = vpop.xlane.xlu0 %3079
    %v3081 = vsel %vm596, %v3067, -inf
    %3082 = vmax.xlane.f32.xlu0 %v3081
    %v3083 = vpop.xlane.xlu0 %3082
    %v3084 = vsub.f32 %v2929, %v3074
    %v3085 = vsub.f32 %v2975, %v3077
    %v3086 = vsub.f32 %v3021, %v3080
    %v3087 = vsub.f32 %v3067, %v3083
    %v3088 = vmul.f32 %v3084, 1.442695
    %v3089 = vpow.pop %v3088
    %v3090 = vmul.f32 %v3085, 1.442695
    %v3091 = vpow.pop %v3090
    %v3092 = vmul.f32 %v3086, 1.442695
    %v3093 = vpow.pop %v3092
    %v3094 = vmul.f32 %v3087, 1.442695
    %v3095 = vpow.pop %v3094
    %v3096 = vsel %vm596, %v3089, 0.0
    %3097 = vadd.xlane.f32.xlu0 %v3096
    %v3098 = vpop.xlane.xlu0 %3097
    %v3099 = vsel %vm596, %v3091, 0.0
    %3100 = vadd.xlane.f32.xlu0 %v3099
    %v3101 = vpop.xlane.xlu0 %3100
    %v3102 = vsel %vm596, %v3093, 0.0
    %3103 = vadd.xlane.f32.xlu0 %v3102
    %v3104 = vpop.xlane.xlu0 %3103
    %v3105 = vsel %vm596, %v3095, 0.0
    %3106 = vadd.xlane.f32.xlu0 %v3105
    %v3107 = vpop.xlane.xlu0 %3106
    %v3108 = vrcp.pop %v3098
    %v3109 = vrcp.pop %v3101
    %v3110 = vrcp.pop %v3104
    %v3111 = vrcp.pop %v3107
    %v3112 = vmul.f32 %v3089, %v3108
    %v3113 = vmul.f32 %v3091, %v3109
    %v3114 = vmul.f32 %v3093, %v3110
    %v3115 = vmul.f32 %v3095, %v3111
    %v3116 = vpack.c.bf16 %v3112, %v3112
    %v3117 = vpack.c.bf16 %v3113, %v3113
    %v3118 = vpack.c.bf16 %v3114, %v3114
    %v3119 = vpack.c.bf16 %v3115, %v3115
    %v3121 = vsel %vm596, %v3116, 0
    %v3124 = vsel %vm648, %v2884, 0
    %3126 = vmatprep.subr.bf16.mxu0 0
    %3127 = vmatpush1.bf16.msra.mxu0 %v3124
    %3128 = vmatprep.subr.bf16.mxu0 0
    %3129 = vmatpush1.bf16.msra.mxu0 0
    %3130 = vmatprep.subr.bf16.mxu0 0
    %3131 = vmatpush1.bf16.msra.mxu0 0
    %3132 = vmatprep.subr.bf16.mxu0 0
    %3133 = vmatpush1.bf16.msra.mxu0 0
    %3134 = vmatprep.subr.bf16.mxu0 0
    %3135 = vmatpush1.bf16.msra.mxu0 0
    %3136 = vmatprep.subr.bf16.mxu0 0
    %3137 = vmatpush1.bf16.msra.mxu0 0
    %3138 = vmatprep.subr.bf16.mxu0 0
    %3139 = vmatpush1.bf16.msra.mxu0 0
    %3140 = vmatprep.subr.bf16.mxu0 0
    %3141 = vmatpush1.bf16.msra.mxu0 0
    %3142 = vmatprep.subr.bf16.mxu0 0
    %3143 = vmatpush1.bf16.msra.mxu0 0
    %3144 = vmatprep.subr.bf16.mxu0 0
    %3145 = vmatpush1.bf16.msra.mxu0 0
    %3146 = vmatprep.subr.bf16.mxu0 0
    %3147 = vmatpush1.bf16.msra.mxu0 0
    %3148 = vmatprep.subr.bf16.mxu0 0
    %3149 = vmatpush1.bf16.msra.mxu0 0
    %3150 = vmatprep.subr.bf16.mxu0 0
    %3151 = vmatpush1.bf16.msra.mxu0 0
    %3152 = vmatprep.subr.bf16.mxu0 0
    %3153 = vmatpush1.bf16.msra.mxu0 0
    %3154 = vmatprep.subr.bf16.mxu0 0
    %3155 = vmatpush1.bf16.msra.mxu0 0
    %3156 = vmatprep.subr.bf16.mxu0 0
    %3157 = vmatpush1.bf16.msra.mxu0 0
    %3158 = vmatprep.mubr.bf16.mxu0 0
    %3159 = vmatmul.mubr.bf16.gmra.mrb[0].mxu0 %v3121
    %v3160 = vpop.f32.mrb[0].mxu0
    %v3161 = vadd.f32 0.0, %v3160
    %v3162 = vpop.f32.mrb[0].mxu0
    %v3163 = vpop.f32.mrb[0].mxu0
    %v3164 = vpop.f32.mrb[0].mxu0
    %3165 = vdwg.mxu0
    %v3167 = vsel %vm596, %v3117, 0
    %v3170 = vsel %vm648, %v2885, 0
    %3172 = vmatprep.subr.bf16.mxu0 0
    %3173 = vmatpush1.bf16.msra.mxu0 %v3170
    %3174 = vmatprep.subr.bf16.mxu0 0
    %3175 = vmatpush1.bf16.msra.mxu0 0
    %3176 = vmatprep.subr.bf16.mxu0 0
    %3177 = vmatpush1.bf16.msra.mxu0 0
    %3178 = vmatprep.subr.bf16.mxu0 0
    %3179 = vmatpush1.bf16.msra.mxu0 0
    %3180 = vmatprep.subr.bf16.mxu0 0
    %3181 = vmatpush1.bf16.msra.mxu0 0
    %3182 = vmatprep.subr.bf16.mxu0 0
    %3183 = vmatpush1.bf16.msra.mxu0 0
    %3184 = vmatprep.subr.bf16.mxu0 0
    %3185 = vmatpush1.bf16.msra.mxu0 0
    %3186 = vmatprep.subr.bf16.mxu0 0
    %3187 = vmatpush1.bf16.msra.mxu0 0
    %3188 = vmatprep.subr.bf16.mxu0 0
    %3189 = vmatpush1.bf16.msra.mxu0 0
    %3190 = vmatprep.subr.bf16.mxu0 0
    %3191 = vmatpush1.bf16.msra.mxu0 0
    %3192 = vmatprep.subr.bf16.mxu0 0
    %3193 = vmatpush1.bf16.msra.mxu0 0
    %3194 = vmatprep.subr.bf16.mxu0 0
    %3195 = vmatpush1.bf16.msra.mxu0 0
    %3196 = vmatprep.subr.bf16.mxu0 0
    %3197 = vmatpush1.bf16.msra.mxu0 0
    %3198 = vmatprep.subr.bf16.mxu0 0
    %3199 = vmatpush1.bf16.msra.mxu0 0
    %3200 = vmatprep.subr.bf16.mxu0 0
    %3201 = vmatpush1.bf16.msra.mxu0 0
    %3202 = vmatprep.subr.bf16.mxu0 0
    %3203 = vmatpush1.bf16.msra.mxu0 0
    %3204 = vmatprep.mubr.bf16.mxu0 0
    %3205 = vmatmul.mubr.bf16.gmra.mrb[0].mxu0 %v3167
    %v3206 = vpop.f32.mrb[0].mxu0
    %v3207 = vadd.f32 0.0, %v3206
    %v3208 = vpop.f32.mrb[0].mxu0
    %v3209 = vpop.f32.mrb[0].mxu0
    %v3210 = vpop.f32.mrb[0].mxu0
    %3211 = vdwg.mxu0
    %v3213 = vsel %vm596, %v3118, 0
    %v3216 = vsel %vm648, %v2886, 0
    %3218 = vmatprep.subr.bf16.mxu0 0
    %3219 = vmatpush1.bf16.msra.mxu0 %v3216
    %3220 = vmatprep.subr.bf16.mxu0 0
    %3221 = vmatpush1.bf16.msra.mxu0 0
    %3222 = vmatprep.subr.bf16.mxu0 0
    %3223 = vmatpush1.bf16.msra.mxu0 0
    %3224 = vmatprep.subr.bf16.mxu0 0
    %3225 = vmatpush1.bf16.msra.mxu0 0
    %3226 = vmatprep.subr.bf16.mxu0 0
    %3227 = vmatpush1.bf16.msra.mxu0 0
    %3228 = vmatprep.subr.bf16.mxu0 0
    %3229 = vmatpush1.bf16.msra.mxu0 0
    %3230 = vmatprep.subr.bf16.mxu0 0
    %3231 = vmatpush1.bf16.msra.mxu0 0
    %3232 = vmatprep.subr.bf16.mxu0 0
    %3233 = vmatpush1.bf16.msra.mxu0 0
    %3234 = vmatprep.subr.bf16.mxu0 0
    %3235 = vmatpush1.bf16.msra.mxu0 0
    %3236 = vmatprep.subr.bf16.mxu0 0
    %3237 = vmatpush1.bf16.msra.mxu0 0
    %3238 = vmatprep.subr.bf16.mxu0 0
    %3239 = vmatpush1.bf16.msra.mxu0 0
    %3240 = vmatprep.subr.bf16.mxu0 0
    %3241 = vmatpush1.bf16.msra.mxu0 0
    %3242 = vmatprep.subr.bf16.mxu0 0
    %3243 = vmatpush1.bf16.msra.mxu0 0
    %3244 = vmatprep.subr.bf16.mxu0 0
    %3245 = vmatpush1.bf16.msra.mxu0 0
    %3246 = vmatprep.subr.bf16.mxu0 0
    %3247 = vmatpush1.bf16.msra.mxu0 0
    %3248 = vmatprep.subr.bf16.mxu0 0
    %3249 = vmatpush1.bf16.msra.mxu0 0
    %3250 = vmatprep.mubr.bf16.mxu0 0
    %3251 = vmatmul.mubr.bf16.gmra.mrb[0].mxu0 %v3213
    %v3252 = vpop.f32.mrb[0].mxu0
    %v3253 = vadd.f32 0.0, %v3252
    %v3254 = vpop.f32.mrb[0].mxu0
    %v3255 = vpop.f32.mrb[0].mxu0
    %v3256 = vpop.f32.mrb[0].mxu0
    %3257 = vdwg.mxu0
    %v3259 = vsel %vm596, %v3119, 0
    %v3262 = vsel %vm648, %v2887, 0
    %3264 = vmatprep.subr.bf16.mxu0 0
    %3265 = vmatpush1.bf16.msra.mxu0 %v3262
    %3266 = vmatprep.subr.bf16.mxu0 0
    %3267 = vmatpush1.bf16.msra.mxu0 0
    %3268 = vmatprep.subr.bf16.mxu0 0
    %3269 = vmatpush1.bf16.msra.mxu0 0
    %3270 = vmatprep.subr.bf16.mxu0 0
    %3271 = vmatpush1.bf16.msra.mxu0 0
    %3272 = vmatprep.subr.bf16.mxu0 0
    %3273 = vmatpush1.bf16.msra.mxu0 0
    %3274 = vmatprep.subr.bf16.mxu0 0
    %3275 = vmatpush1.bf16.msra.mxu0 0
    %3276 = vmatprep.subr.bf16.mxu0 0
    %3277 = vmatpush1.bf16.msra.mxu0 0
    %3278 = vmatprep.subr.bf16.mxu0 0
    %3279 = vmatpush1.bf16.msra.mxu0 0
    %3280 = vmatprep.subr.bf16.mxu0 0
    %3281 = vmatpush1.bf16.msra.mxu0 0
    %3282 = vmatprep.subr.bf16.mxu0 0
    %3283 = vmatpush1.bf16.msra.mxu0 0
    %3284 = vmatprep.subr.bf16.mxu0 0
    %3285 = vmatpush1.bf16.msra.mxu0 0
    %3286 = vmatprep.subr.bf16.mxu0 0
    %3287 = vmatpush1.bf16.msra.mxu0 0
    %3288 = vmatprep.subr.bf16.mxu0 0
    %3289 = vmatpush1.bf16.msra.mxu0 0
    %3290 = vmatprep.subr.bf16.mxu0 0
    %3291 = vmatpush1.bf16.msra.mxu0 0
    %3292 = vmatprep.subr.bf16.mxu0 0
    %3293 = vmatpush1.bf16.msra.mxu0 0
    %3294 = vmatprep.subr.bf16.mxu0 0
    %3295 = vmatpush1.bf16.msra.mxu0 0
    %3296 = vmatprep.mubr.bf16.mxu0 0
    %3297 = vmatmul.mubr.bf16.gmra.mrb[0].mxu0 %v3259
    %v3298 = vpop.f32.mrb[0].mxu0
    %v3299 = vadd.f32 0.0, %v3298
    %v3300 = vpop.f32.mrb[0].mxu0
    %v3301 = vpop.f32.mrb[0].mxu0
    %v3302 = vpop.f32.mrb[0].mxu0
    %3303 = vdwg.mxu0
    %v3304 = vpack.c.bf16 %v3207, %v3161
    %v3305 = vpack.c.bf16 %v3299, %v3253
    %s3306 = scalar_lea.vmem %s10, 24
    %v3307 = vld [vmem:[%s3306] sm:$0xf]
    %v3308 = vld [vmem:[%s3306 + $0x4] sm:$0xf]
    %v3311 = vunpack.c.l.b16 %v3307
    %v3312 = vunpack.c.l.b16 %v3308
    %v3313 = vpack.c.b16 %v3312, %v3311
    %v3316 = vsel %vm411, %v3304, 0
    %v3319 = vsel %vm411, %v3305, 0
    %3321 = vmatprep.subr.bf16.mxu0 0
    %3322 = vmatpush1.bf16.msra.mxu0 %v3313
    %3323 = vmatprep.subr.bf16.mxu0 0
    %3324 = vmatpush1.bf16.msra.mxu0 0
    %3325 = vmatprep.subr.bf16.mxu0 0
    %3326 = vmatpush1.bf16.msra.mxu0 0
    %3327 = vmatprep.subr.bf16.mxu0 0
    %3328 = vmatpush1.bf16.msra.mxu0 0
    %3329 = vmatprep.subr.bf16.mxu0 0
    %3330 = vmatpush1.bf16.msra.mxu0 0
    %3331 = vmatprep.subr.bf16.mxu0 0
    %3332 = vmatpush1.bf16.msra.mxu0 0
    %3333 = vmatprep.subr.bf16.mxu0 0
    %3334 = vmatpush1.bf16.msra.mxu0 0
    %3335 = vmatprep.subr.bf16.mxu0 0
    %3336 = vmatpush1.bf16.msra.mxu0 0
    %3337 = vmatprep.subr.bf16.mxu0 0
    %3338 = vmatpush1.bf16.msra.mxu0 0
    %3339 = vmatprep.subr.bf16.mxu0 0
    %3340 = vmatpush1.bf16.msra.mxu0 0
    %3341 = vmatprep.subr.bf16.mxu0 0
    %3342 = vmatpush1.bf16.msra.mxu0 0
    %3343 = vmatprep.subr.bf16.mxu0 0
    %3344 = vmatpush1.bf16.msra.mxu0 0
    %3345 = vmatprep.subr.bf16.mxu0 0
    %3346 = vmatpush1.bf16.msra.mxu0 0
    %3347 = vmatprep.subr.bf16.mxu0 0
    %3348 = vmatpush1.bf16.msra.mxu0 0
    %3349 = vmatprep.subr.bf16.mxu0 0
    %3350 = vmatpush1.bf16.msra.mxu0 0
    %3351 = vmatprep.subr.bf16.mxu0 0
    %3352 = vmatpush1.bf16.msra.mxu0 0
    %3353 = vmatprep.mubr.bf16.mxu0 0
    %3354 = vmatmul.mubr.bf16.gmra.mrb[0].mxu0 %v3316
    %v3355 = vpop.f32.mrb[0].mxu0
    %v3356 = vadd.f32 0.0, %v3355
    %v3357 = vpop.f32.mrb[0].mxu0
    %v3358 = vpop.f32.mrb[0].mxu0
    %v3359 = vadd.f32 0.0, %v3358
    %v3360 = vpop.f32.mrb[0].mxu0
    %3361 = vmatprep.mubr.bf16.mxu0 0
    %3362 = vmatmul.mubr.bf16.gmra.mrb[0].mxu0 %v3319
    %v3363 = vpop.f32.mrb[0].mxu0
    %v3364 = vadd.f32 0.0, %v3363
    %v3365 = vpop.f32.mrb[0].mxu0
    %v3366 = vpop.f32.mrb[0].mxu0
    %v3367 = vadd.f32 0.0, %v3366
    %v3368 = vpop.f32.mrb[0].mxu0
    %3369 = vdwg.mxu0
    %v3372 = vunpack.c.l.b16 %v2652
    %v3373 = vunpack.c.l.b16 %v2653
    %v3374 = vpack.c.b16 %v3373, %v3372
    %v3377 = vsel %vm411, %v2649, 0
    %v3380 = vsel %vm411, %v2650, 0
    %3382 = vmatprep.subr.bf16.mxu0 0
    %3383 = vmatpush1.bf16.msra.mxu0 %v3374
    %3384 = vmatprep.subr.bf16.mxu0 0
    %3385 = vmatpush1.bf16.msra.mxu0 0
    %3386 = vmatprep.subr.bf16.mxu0 0
    %3387 = vmatpush1.bf16.msra.mxu0 0
    %3388 = vmatprep.subr.bf16.mxu0 0
    %3389 = vmatpush1.bf16.msra.mxu0 0
    %3390 = vmatprep.subr.bf16.mxu0 0
    %3391 = vmatpush1.bf16.msra.mxu0 0
    %3392 = vmatprep.subr.bf16.mxu0 0
    %3393 = vmatpush1.bf16.msra.mxu0 0
    %3394 = vmatprep.subr.bf16.mxu0 0
    %3395 = vmatpush1.bf16.msra.mxu0 0
    %3396 = vmatprep.subr.bf16.mxu0 0
    %3397 = vmatpush1.bf16.msra.mxu0 0
    %3398 = vmatprep.subr.bf16.mxu0 0
    %3399 = vmatpush1.bf16.msra.mxu0 0
    %3400 = vmatprep.subr.bf16.mxu0 0
    %3401 = vmatpush1.bf16.msra.mxu0 0
    %3402 = vmatprep.subr.bf16.mxu0 0
    %3403 = vmatpush1.bf16.msra.mxu0 0
    %3404 = vmatprep.subr.bf16.mxu0 0
    %3405 = vmatpush1.bf16.msra.mxu0 0
    %3406 = vmatprep.subr.bf16.mxu0 0
    %3407 = vmatpush1.bf16.msra.mxu0 0
    %3408 = vmatprep.subr.bf16.mxu0 0
    %3409 = vmatpush1.bf16.msra.mxu0 0
    %3410 = vmatprep.subr.bf16.mxu0 0
    %3411 = vmatpush1.bf16.msra.mxu0 0
    %3412 = vmatprep.subr.bf16.mxu0 0
    %3413 = vmatpush1.bf16.msra.mxu0 0
    %3414 = vmatprep.mubr.bf16.mxu0 0
    %3415 = vmatmul.mubr.bf16.gmra.mrb[0].mxu0 %v3377
    %v3416 = vpop.f32.mrb[0].mxu0
    %v3417 = vadd.f32 %v3356, %v3416
    %v3418 = vpop.f32.mrb[0].mxu0
    %v3419 = vpop.f32.mrb[0].mxu0
    %v3420 = vadd.f32 %v3359, %v3419
    %v3421 = vpop.f32.mrb[0].mxu0
    %3422 = vmatprep.mubr.bf16.mxu0 0
    %3423 = vmatmul.mubr.bf16.gmra.mrb[0].mxu0 %v3380
    %v3424 = vpop.f32.mrb[0].mxu0
    %v3425 = vadd.f32 %v3364, %v3424
    %v3426 = vpop.f32.mrb[0].mxu0
    %v3427 = vpop.f32.mrb[0].mxu0
    %v3428 = vadd.f32 %v3367, %v3427
    %v3429 = vpop.f32.mrb[0].mxu0
    %3430 = vdwg.mxu0
    %s3431 = scalar_lea.vmem %s11, 1
    %v3432 = vld [vmem:[%s3431] sm:$0x1]
    %v3434 = vlaneseq
    %v3435 = vshrl.u32 %v3434, 7
    %v3436 = vsub.s32 0, %v3435
    %v3437 = vrot.slane %v3432, %v3436
    %v3439 = vadd.f32 %v3417, %v3437
    %v3440 = vadd.f32 %v3420, %v3437
    %v3441 = vadd.f32 %v3425, %v3437
    %v3442 = vadd.f32 %v3428, %v3437
    %v3443 = vadd.f32 %v1987, %v3439
    %v3444 = vadd.f32 %v1988, %v3440
    %v3445 = vadd.f32 %v1989, %v3441
    %v3446 = vadd.f32 %v1990, %v3442
    %s3447 = scalar_lea.vmem %s12, 1
    %v3448 = vld [vmem:[%s3447] sm:$0x1]
    %s3449 = scalar_lea.vmem %s13, 1
    %v3450 = vld [vmem:[%s3449] sm:$0x1]
    %v3451 = vsel %vm77, %v3443, 0.0
    %3452 = vadd.xlane.f32.xlu0 %v3451
    %v3453 = vpop.xlane.xlu0 %3452
    %v3454 = vsel %vm77, %v3444, 0.0
    %3455 = vadd.xlane.f32.xlu0 %v3454
    %v3456 = vpop.xlane.xlu0 %3455
    %v3457 = vsel %vm77, %v3445, 0.0
    %3458 = vadd.xlane.f32.xlu0 %v3457
    %v3459 = vpop.xlane.xlu0 %3458
    %v3460 = vsel %vm77, %v3446, 0.0
    %3461 = vadd.xlane.f32.xlu0 %v3460
    %v3462 = vpop.xlane.xlu0 %3461
    %v3463 = vmul.f32 %v3453, %v90
    %v3464 = vmul.f32 %v3456, %v90
    %v3465 = vmul.f32 %v3459, %v90
    %v3466 = vmul.f32 %v3462, %v90
    %v3467 = vsub.f32 %v3443, %v3463
    %v3468 = vsub.f32 %v3444, %v3464
    %v3469 = vsub.f32 %v3445, %v3465
    %v3470 = vsub.f32 %v3446, %v3466
    %v3471 = vmul.f32 %v3467, %v3467
    %v3472 = vmul.f32 %v3468, %v3468
    %v3473 = vmul.f32 %v3469, %v3469
    %v3474 = vmul.f32 %v3470, %v3470
    %v3475 = vsel %vm77, %v3471, 0.0
    %3476 = vadd.xlane.f32.xlu0 %v3475
    %v3477 = vpop.xlane.xlu0 %3476
    %v3478 = vsel %vm77, %v3472, 0.0
    %3479 = vadd.xlane.f32.xlu0 %v3478
    %v3480 = vpop.xlane.xlu0 %3479
    %v3481 = vsel %vm77, %v3473, 0.0
    %3482 = vadd.xlane.f32.xlu0 %v3481
    %v3483 = vpop.xlane.xlu0 %3482
    %v3484 = vsel %vm77, %v3474, 0.0
    %3485 = vadd.xlane.f32.xlu0 %v3484
    %v3486 = vpop.xlane.xlu0 %3485
    %v3487 = vmul.f32 %v3477, %v90
    %v3488 = vmul.f32 %v3480, %v90
    %v3489 = vmul.f32 %v3483, %v90
    %v3490 = vmul.f32 %v3486, %v90
    %v3491 = vadd.f32 %v3487, 1e-12
    %v3492 = vadd.f32 %v3488, 1e-12
    %v3493 = vadd.f32 %v3489, 1e-12
    %v3494 = vadd.f32 %v3490, 1e-12
    %v3495 = vrsqrt.pop %v3491
    %v3496 = vrsqrt.pop %v3492
    %v3497 = vrsqrt.pop %v3493
    %v3498 = vrsqrt.pop %v3494
    %v3499 = vmul.f32 %v3467, %v3495
    %v3500 = vmul.f32 %v3468, %v3496
    %v3501 = vmul.f32 %v3469, %v3497
    %v3502 = vmul.f32 %v3470, %v3498
    %v3504 = vlaneseq
    %v3505 = vshrl.u32 %v3504, 7
    %v3506 = vsub.s32 0, %v3505
    %v3507 = vrot.slane %v3448, %v3506
    %v3509 = vmul.f32 %v3499, %v3507
    %v3510 = vmul.f32 %v3500, %v3507
    %v3511 = vmul.f32 %v3501, %v3507
    %v3512 = vmul.f32 %v3502, %v3507
    %v3514 = vlaneseq
    %v3515 = vshrl.u32 %v3514, 7
    %v3516 = vsub.s32 0, %v3515
    %v3517 = vrot.slane %v3450, %v3516
    %v3519 = vadd.f32 %v3509, %v3517
    %v3520 = vadd.f32 %v3510, %v3517
    %v3521 = vadd.f32 %v3511, %v3517
    %v3522 = vadd.f32 %v3512, %v3517
    %v3523 = vpack.c.bf16 %v3520, %v3519
    %v3524 = vpack.c.bf16 %v3522, %v3521
    %s3525 = scalar_lea.vmem %s14, 16
    %v3526 = vld [vmem:[%s3525] sm:$0xf]
    %v3527 = vld [vmem:[%s3525 + $0x4] sm:$0xf]
    %v3528 = vld [vmem:[%s3525 + $0x8] sm:$0xf]
    %v3529 = vld [vmem:[%s3525 + $0xc] sm:$0xf]
    %s3530 = scalar_lea.vmem %s15, 1
    %v3531 = vld [vmem:[%s3530] sm:$0x1]
    %v3533 = vlaneseq
    %v3534 = vshrl.u32 %v3533, 7
    %v3535 = vsub.s32 0, %v3534
    %v3536 = vrot.slane %v3531, %v3535
    %v3542 = vunpack.c.l.b16 %v3526
    %v3543 = vunpack.c.l.b16 %v3527
    %v3544 = vunpack.c.l.b16 %v3528
    %v3545 = vunpack.c.l.b16 %v3529
    %v3546 = vpack.c.b16 %v3543, %v3542
    %v3547 = vpack.c.b16 %v3545, %v3544
    %v3551 = vsel %vm77, %v3523, 0
    %v3554 = vsel %vm77, %v3524, 0
    %3556 = vmatprep.subr.bf16.mxu0 0
    %3557 = vmatpush1.bf16.msra.mxu0 %v3546
    %3558 = vmatprep.subr.bf16.mxu0 0
    %3559 = vmatpush1.bf16.msra.mxu0 %v3547
    %3560 = vmatprep.subr.bf16.mxu0 0
    %3561 = vmatpush1.bf16.msra.mxu0 0
    %3562 = vmatprep.subr.bf16.mxu0 0
    %3563 = vmatpush1.bf16.msra.mxu0 0
    %3564 = vmatprep.subr.bf16.mxu0 0
    %3565 = vmatpush1.bf16.msra.mxu0 0
    %3566 = vmatprep.subr.bf16.mxu0 0
    %3567 = vmatpush1.bf16.msra.mxu0 0
    %3568 = vmatprep.subr.bf16.mxu0 0
    %3569 = vmatpush1.bf16.msra.mxu0 0
    %3570 = vmatprep.subr.bf16.mxu0 0
    %3571 = vmatpush1.bf16.msra.mxu0 0
    %3572 = vmatprep.subr.bf16.mxu0 0
    %3573 = vmatpush1.bf16.msra.mxu0 0
    %3574 = vmatprep.subr.bf16.mxu0 0
    %3575 = vmatpush1.bf16.msra.mxu0 0
    %3576 = vmatprep.subr.bf16.mxu0 0
    %3577 = vmatpush1.bf16.msra.mxu0 0
    %3578 = vmatprep.subr.bf16.mxu0 0
    %3579 = vmatpush1.bf16.msra.mxu0 0
    %3580 = vmatprep.subr.bf16.mxu0 0
    %3581 = vmatpush1.bf16.msra.mxu0 0
    %3582 = vmatprep.subr.bf16.mxu0 0
    %3583 = vmatpush1.bf16.msra.mxu0 0
    %3584 = vmatprep.subr.bf16.mxu0 0
    %3585 = vmatpush1.bf16.msra.mxu0 0
    %3586 = vmatprep.subr.bf16.mxu0 0
    %3587 = vmatpush1.bf16.msra.mxu0 0
    %3588 = vmatprep.mubr.bf16.mxu0 0
    %3589 = vmatmul.mubr.bf16.gmra.mrb[0].mxu0 %v3551
    %v3590 = vpop.f32.mrb[0].mxu0
    %v3591 = vadd.f32 %v3536, %v3590
    %v3592 = vpop.f32.mrb[0].mxu0
    %v3593 = vpop.f32.mrb[0].mxu0
    %v3594 = vadd.f32 %v3536, %v3593
    %v3595 = vpop.f32.mrb[0].mxu0
    %3596 = vmatprep.mubr.bf16.mxu0 0
    %3597 = vmatmul.mubr.bf16.gmra.mrb[0].mxu0 %v3554
    %v3598 = vpop.f32.mrb[0].mxu0
    %v3599 = vadd.f32 %v3536, %v3598
    %v3600 = vpop.f32.mrb[0].mxu0
    %v3601 = vpop.f32.mrb[0].mxu0
    %v3602 = vadd.f32 %v3536, %v3601
    %v3603 = vpop.f32.mrb[0].mxu0
    %3604 = vdwg.mxu0
    %v3605 = vmul.f32 %v3591, 0.5
    %v3606 = vmul.f32 %v3594, 0.5
    %v3607 = vmul.f32 %v3599, 0.5
    %v3608 = vmul.f32 %v3602, 0.5
    %v3609 = vmul.f32 %v3591, 0.044715
    %v3610 = vmul.f32 %v3594, 0.044715
    %v3611 = vmul.f32 %v3599, 0.044715
    %v3612 = vmul.f32 %v3602, 0.044715
    %v3613 = vmul.f32 %v3609, %v3591
    %v3614 = vmul.f32 %v3610, %v3594
    %v3615 = vmul.f32 %v3611, %v3599
    %v3616 = vmul.f32 %v3612, %v3602
    %v3617 = vmul.f32 %v3613, %v3591
    %v3618 = vmul.f32 %v3614, %v3594
    %v3619 = vmul.f32 %v3615, %v3599
    %v3620 = vmul.f32 %v3616, %v3602
    %v3621 = vadd.f32 %v3591, %v3617
    %v3622 = vadd.f32 %v3594, %v3618
    %v3623 = vadd.f32 %v3599, %v3619
    %v3624 = vadd.f32 %v3602, %v3620
    %v3625 = vmul.f32 %v3621, 0.7978846
    %v3626 = vmul.f32 %v3622, 0.7978846
    %v3627 = vmul.f32 %v3623, 0.7978846
    %v3628 = vmul.f32 %v3624, 0.7978846
    %v3629 = vtanh.pop %v3625
    %v3630 = vtanh.pop %v3626
    %v3631 = vtanh.pop %v3627
    %v3632 = vtanh.pop %v3628
    %v3633 = vadd.f32 %v3629, 1.0
    %v3634 = vadd.f32 %v3630, 1.0
    %v3635 = vadd.f32 %v3631, 1.0
    %v3636 = vadd.f32 %v3632, 1.0
    %v3637 = vmul.f32 %v3605, %v3633
    %v3638 = vmul.f32 %v3606, %v3634
    %v3639 = vmul.f32 %v3607, %v3635
    %v3640 = vmul.f32 %v3608, %v3636
    %v3641 = vpack.c.bf16 %v3638, %v3637
    %v3642 = vpack.c.bf16 %v3640, %v3639
    %s3643 = scalar_lea.vmem %s16, 32
    %v3644 = vld [vmem:[%s3643] sm:$0xf]
    %v3645 = vld [vmem:[%s3643 + $0x4] sm:$0xf]
    %v3646 = vld [vmem:[%s3643 + $0x8] sm:$0xf]
    %v3647 = vld [vmem:[%s3643 + $0xc] sm:$0xf]
    %v3648 = vld [vmem:[%s3643 + $0x10] sm:$0xf]
    %v3649 = vld [vmem:[%s3643 + $0x14] sm:$0xf]
    %v3650 = vld [vmem:[%s3643 + $0x18] sm:$0xf]
    %v3651 = vld [vmem:[%s3643 + $0x1c] sm:$0xf]
    %s3652 = scalar_lea.vmem %s17, 1
    %v3653 = vld [vmem:[%s3652] sm:$0x1]
    %v3655 = vlaneseq
    %v3656 = vshrl.u32 %v3655, 7
    %v3657 = vsub.s32 0, %v3656
    %v3658 = vrot.slane %v3653, %v3657
    %v3668 = vunpack.c.l.b16 %v3644
    %v3669 = vunpack.c.l.b16 %v3645
    %v3670 = vunpack.c.l.b16 %v3646
    %v3671 = vunpack.c.l.b16 %v3647
    %v3672 = vunpack.c.l.b16 %v3648
    %v3673 = vunpack.c.l.b16 %v3649
    %v3674 = vunpack.c.l.b16 %v3650
    %v3675 = vunpack.c.l.b16 %v3651
    %v3676 = vpack.c.b16 %v3669, %v3668
    %v3677 = vpack.c.b16 %v3671, %v3670
    %v3678 = vpack.c.b16 %v3673, %v3672
    %v3679 = vpack.c.b16 %v3675, %v3674
    %v3685 = vsel %vm1857, %v3641, 0
    %v3688 = vsel %vm1857, %v3642, 0
    %3690 = vmatprep.subr.bf16.mxu0 0
    %3691 = vmatpush1.bf16.msra.mxu0 %v3676
    %3692 = vmatprep.subr.bf16.mxu0 0
    %3693 = vmatpush1.bf16.msra.mxu0 %v3677
    %3694 = vmatprep.subr.bf16.mxu0 0
    %3695 = vmatpush1.bf16.msra.mxu0 %v3678
    %3696 = vmatprep.subr.bf16.mxu0 0
    %3697 = vmatpush1.bf16.msra.mxu0 %v3679
    %3698 = vmatprep.subr.bf16.mxu0 0
    %3699 = vmatpush1.bf16.msra.mxu0 0
    %3700 = vmatprep.subr.bf16.mxu0 0
    %3701 = vmatpush1.bf16.msra.mxu0 0
    %3702 = vmatprep.subr.bf16.mxu0 0
    %3703 = vmatpush1.bf16.msra.mxu0 0
    %3704 = vmatprep.subr.bf16.mxu0 0
    %3705 = vmatpush1.bf16.msra.mxu0 0
    %3706 = vmatprep.subr.bf16.mxu0 0
    %3707 = vmatpush1.bf16.msra.mxu0 0
    %3708 = vmatprep.subr.bf16.mxu0 0
    %3709 = vmatpush1.bf16.msra.mxu0 0
    %3710 = vmatprep.subr.bf16.mxu0 0
    %3711 = vmatpush1.bf16.msra.mxu0 0
    %3712 = vmatprep.subr.bf16.mxu0 0
    %3713 = vmatpush1.bf16.msra.mxu0 0
    %3714 = vmatprep.subr.bf16.mxu0 0
    %3715 = vmatpush1.bf16.msra.mxu0 0
    %3716 = vmatprep.subr.bf16.mxu0 0
    %3717 = vmatpush1.bf16.msra.mxu0 0
    %3718 = vmatprep.subr.bf16.mxu0 0
    %3719 = vmatpush1.bf16.msra.mxu0 0
    %3720 = vmatprep.subr.bf16.mxu0 0
    %3721 = vmatpush1.bf16.msra.mxu0 0
    %3722 = vmatprep.mubr.bf16.mxu0 0
    %3723 = vmatmul.mubr.bf16.gmra.mrb[0].mxu0 %v3685
    %v3724 = vpop.f32.mrb[0].mxu0
    %v3725 = vadd.f32 %v3658, %v3724
    %v3726 = vpop.f32.mrb[0].mxu0
    %v3727 = vpop.f32.mrb[0].mxu0
    %v3728 = vadd.f32 %v3658, %v3727
    %v3729 = vpop.f32.mrb[0].mxu0
    %3730 = vmatprep.mubr.bf16.mxu0 0
    %3731 = vmatmul.mubr.bf16.gmra.mrb[0].mxu0 %v3688
    %v3732 = vpop.f32.mrb[0].mxu0
    %v3733 = vadd.f32 %v3658, %v3732
    %v3734 = vpop.f32.mrb[0].mxu0
    %v3735 = vpop.f32.mrb[0].mxu0
    %v3736 = vadd.f32 %v3658, %v3735
    %v3737 = vpop.f32.mrb[0].mxu0
    %3738 = vdwg.mxu0
    %v3739 = vadd.f32 %v3519, %v3725
    %v3740 = vadd.f32 %v3520, %v3728
    %v3741 = vadd.f32 %v3521, %v3733
    %v3742 = vadd.f32 %v3522, %v3736
    %s3743 = scalar_lea.vmem %s18, 1
    %v3744 = vld [vmem:[%s3743] sm:$0x1]
    %s3745 = scalar_lea.vmem %s19, 1
    %v3746 = vld [vmem:[%s3745] sm:$0x1]
    %v3747 = vsel %vm77, %v3739, 0.0
    %3748 = vadd.xlane.f32.xlu0 %v3747
    %v3749 = vpop.xlane.xlu0 %3748
    %v3750 = vsel %vm77, %v3740, 0.0
    %3751 = vadd.xlane.f32.xlu0 %v3750
    %v3752 = vpop.xlane.xlu0 %3751
    %v3753 = vsel %vm77, %v3741, 0.0
    %3754 = vadd.xlane.f32.xlu0 %v3753
    %v3755 = vpop.xlane.xlu0 %3754
    %v3756 = vsel %vm77, %v3742, 0.0
    %3757 = vadd.xlane.f32.xlu0 %v3756
    %v3758 = vpop.xlane.xlu0 %3757
    %v3759 = vmul.f32 %v3749, %v90
    %v3760 = vmul.f32 %v3752, %v90
    %v3761 = vmul.f32 %v3755, %v90
    %v3762 = vmul.f32 %v3758, %v90
    %v3763 = vsub.f32 %v3739, %v3759
    %v3764 = vsub.f32 %v3740, %v3760
    %v3765 = vsub.f32 %v3741, %v3761
    %v3766 = vsub.f32 %v3742, %v3762
    %v3767 = vmul.f32 %v3763, %v3763
    %v3768 = vmul.f32 %v3764, %v3764
    %v3769 = vmul.f32 %v3765, %v3765
    %v3770 = vmul.f32 %v3766, %v3766
    %v3771 = vsel %vm77, %v3767, 0.0
    %3772 = vadd.xlane.f32.xlu0 %v3771
    %v3773 = vpop.xlane.xlu0 %3772
    %v3774 = vsel %vm77, %v3768, 0.0
    %3775 = vadd.xlane.f32.xlu0 %v3774
    %v3776 = vpop.xlane.xlu0 %3775
    %v3777 = vsel %vm77, %v3769, 0.0
    %3778 = vadd.xlane.f32.xlu0 %v3777
    %v3779 = vpop.xlane.xlu0 %3778
    %v3780 = vsel %vm77, %v3770, 0.0
    %3781 = vadd.xlane.f32.xlu0 %v3780
    %v3782 = vpop.xlane.xlu0 %3781
    %v3783 = vmul.f32 %v3773, %v90
    %v3784 = vmul.f32 %v3776, %v90
    %v3785 = vmul.f32 %v3779, %v90
    %v3786 = vmul.f32 %v3782, %v90
    %v3787 = vadd.f32 %v3783, 1e-12
    %v3788 = vadd.f32 %v3784, 1e-12
    %v3789 = vadd.f32 %v3785, 1e-12
    %v3790 = vadd.f32 %v3786, 1e-12
    %v3791 = vrsqrt.pop %v3787
    %v3792 = vrsqrt.pop %v3788
    %v3793 = vrsqrt.pop %v3789
    %v3794 = vrsqrt.pop %v3790
    %v3795 = vmul.f32 %v3763, %v3791
    %v3796 = vmul.f32 %v3764, %v3792
    %v3797 = vmul.f32 %v3765, %v3793
    %v3798 = vmul.f32 %v3766, %v3794
    %v3800 = vlaneseq
    %v3801 = vshrl.u32 %v3800, 7
    %v3802 = vsub.s32 0, %v3801
    %v3803 = vrot.slane %v3744, %v3802
    %v3805 = vmul.f32 %v3795, %v3803
    %v3806 = vmul.f32 %v3796, %v3803
    %v3807 = vmul.f32 %v3797, %v3803
    %v3808 = vmul.f32 %v3798, %v3803
    %v3810 = vlaneseq
    %v3811 = vshrl.u32 %v3810, 7
    %v3812 = vsub.s32 0, %v3811
    %v3813 = vrot.slane %v3746, %v3812
    %v3815 = vadd.f32 %v3805, %v3813
    %v3816 = vadd.f32 %v3806, %v3813
    %v3817 = vadd.f32 %v3807, %v3813
    %v3818 = vadd.f32 %v3808, %v3813
    %3819 = vst.msk [vmem:[#allocation2] sm:$0xff] %vm77, %v3815
    %3820 = vst.msk [vmem:[#allocation2 + $0x8] sm:$0xff] %vm77, %v3816
    %3821 = vst.msk [vmem:[#allocation2 + $0x10] sm:$0xff] %vm77, %v3817
    %3822 = vst.msk [vmem:[#allocation2 + $0x18] sm:$0xff] %vm77, %v3818
    // Predicated region
    $region82: #{text_encoder_forward.1} parent=1 // pred_check
      _
    $region83: #{text_encoder_forward.1} parent=1 // pred_check_branch
      %3824 = sbr.rel (0) target = $region85
    $region84: #{text_encoder_forward.1} parent=1 // pred_region
      %s3826 = ssub.s32 512, 512
      %3827 = vsyncadd [#allocation3], %s3826
      %s3828 = sshll.u32 [#allocation2], 4
      %s3829 = int_to_ptr.vmem [resolvable:$true] %s3828
      %3834 = dma.vmem_to_hbm [thread:$0]  %s3829, 512, %s20, [#allocation3], 128, 128, 8
    $region85: #{text_encoder_forward.1} parent=1 // pred_fallthru
      _
    // Predicated region
    $region86: #{text_encoder_forward.1} parent=1 // pred_check
      _
    $region87: #{text_encoder_forward.1} parent=1 // pred_check_branch
      %3836 = sbr.rel (0) target = $region89
    $region88: #{text_encoder_forward.1} parent=1 // pred_region
      %3837 = dma.done [#allocation3], 512
    $region89: #{text_encoder_forward.1} parent=1 // pred_fallthru
      _
    %3838 = vsyncpa [#allocation3], 1

</llo_original>
